<compile_context>
chip_gen: v7x
topology: tpu7x:2x2x1
jax: 0.10.0
libtpu: 0.0.40
codegen_flags: <defaults>
</compile_context>

<pallas_src>
import functools

import jax
import jax.numpy as jnp
from jax import lax
from jax.experimental import pallas as pl
from jax.experimental.pallas import tpu as pltpu


def _silu(x):
    return x * jax.nn.sigmoid(x)


def _round_up(x, m):
    return (x + m - 1) // m * m


def _pick_band_rows(h, w, target):
    """Largest TR <= target with H % TR == 0 and (TR*W) % 8 == 0."""
    for tr in range(min(h, target), 0, -1):
        if h % tr == 0 and (tr * w) % 8 == 0:
            return tr
    return h  # single band: block == full extent, no alignment constraint


_FRONT = 8  # slack rows at the front of the flat cv1 buffer


def _make_bottleneck_kernel(TR, W, add):
    TRW = TR * W

    def kernel(xb_ref, xt_ref, xbt_ref, el_ref, er_ref,
               w1_ref, w2_ref, s1_ref, b1_ref, s2_ref, b2_ref,
               o_ref, x1f_ref):
        band = pl.program_id(1)
        nbands = pl.num_programs(1)
        C2p = w2_ref.shape[2]

        w1 = w1_ref[...]
        s1 = s1_ref[...]
        sh1 = b1_ref[...]

        def cv1(x2d):
            # 1x1 conv (bf16 MXU matmul) + folded BN + SiLU; math in f32.
            y = jnp.dot(x2d.astype(jnp.bfloat16), w1,
                        preferred_element_type=jnp.float32)
            y = y * s1 + sh1
            return _silu(y)

        y_body = cv1(xb_ref[...])                       # (TR*W, c_p)
        y_top = cv1(xt_ref[...])                        # (W, c_p)
        y_bot = cv1(xbt_ref[...])                       # (W, c_p)

        # The 3x3 "same" padding acts on cv1's OUTPUT, so halo rows outside the
        # image must be zero after cv1 (the halo blocks were border-clamped).
        y_top = y_top * (band > 0).astype(jnp.float32)
        y_bot = y_bot * (band < nbands - 1).astype(jnp.float32)

        # Flat layout: x1f[_FRONT + q*W + c] = x1_band[q, c], q in [0, TR+2).
        x1f_ref[pl.ds(_FRONT, W), :] = y_top
        x1f_ref[pl.ds(_FRONT + W, TRW), :] = y_body
        x1f_ref[pl.ds(_FRONT + (TR + 1) * W, W), :] = y_bot

        left_edge = el_ref[...] > 0.5                   # (TR*W, 1) masks for
        right_edge = er_ref[...] > 0.5                  # the W zero-padding

        # cv2: 3x3 conv as 9 shifted contiguous slices -> 2-D bf16 matmuls,
        # f32 accumulation.
        acc = jnp.zeros((TRW, C2p), jnp.float32)
        for kh in range(3):
            for kw in range(3):
                start = _FRONT - 1 + kh * W + kw
                v = x1f_ref[pl.ds(start, TRW), :]
                if kw == 0:
                    v = jnp.where(left_edge, jnp.zeros_like(v), v)
                elif kw == 2:
                    v = jnp.where(right_edge, jnp.zeros_like(v), v)
                acc = acc + jnp.dot(v.astype(jnp.bfloat16),
                                    w2_ref[kh * 3 + kw],
                                    preferred_element_type=jnp.float32)

        y2 = _silu(acc * s2_ref[...] + b2_ref[...])
        if add:
            y2 = y2 + xb_ref[...]                       # exact f32 residual
        o_ref[...] = y2.astype(o_ref.dtype)

    return kernel


def bottleneck_forward(x_nchw, params, shortcut=True, band_rows=8):
    """Bottleneck.forward: x + cv2(cv1(x)) if (shortcut and c1 == c2)."""
    N, C1, H, W = x_nchw.shape
    w1 = params["w1"]                      # (c1, c_)
    w2 = params["w2"]                      # (9, c_, c2), tap = kh*3 + kw
    c_ = w1.shape[1]
    C2 = w2.shape[2]
    add = bool(shortcut and C1 == C2)

    LANE = 128
    C1p = _round_up(C1, LANE)
    c_p = _round_up(c_, LANE)
    C2p = _round_up(C2, LANE)

    # NCHW -> NHWC (channels on lanes), pad channels to lane multiples.
    x = jnp.transpose(x_nchw, (0, 2, 3, 1)).astype(jnp.float32)
    if C1p != C1:
        x = jnp.pad(x, ((0, 0), (0, 0), (0, 0), (0, C1p - C1)))
    x_flat = x.reshape(N, H * W, C1p)

    TR = _pick_band_rows(H, W, band_rows)
    B = H // TR
    TRW = TR * W

    # Lane-padded weights / folded-BN params; matmul operands pre-cast to bf16.
    w1p = jnp.pad(w1, ((0, C1p - C1), (0, c_p - c_))).astype(jnp.bfloat16)
    w2p = jnp.pad(w2, ((0, 0), (0, c_p - c_), (0, C2p - C2))).astype(jnp.bfloat16)
    s1p = jnp.pad(params["s1"], (0, c_p - c_)).reshape(1, c_p).astype(jnp.float32)
    b1p = jnp.pad(params["b1"], (0, c_p - c_)).reshape(1, c_p).astype(jnp.float32)
    s2p = jnp.pad(params["s2"], (0, C2p - C2)).reshape(1, C2p).astype(jnp.float32)
    b2p = jnp.pad(params["b2"], (0, C2p - C2)).reshape(1, C2p).astype(jnp.float32)

    # Left / right image-column masks for one row band (flat row-major layout).
    col = jnp.arange(TRW, dtype=jnp.int32) % W
    edge_l = (col == 0).astype(jnp.float32).reshape(TRW, 1)
    edge_r = (col == W - 1).astype(jnp.float32).reshape(TRW, 1)

    kernel = _make_bottleneck_kernel(TR, W, add)

    flops = 2 * N * H * W * (C1p * c_p + 9 * c_p * C2p)
    cost = pl.CostEstimate(
        flops=flops,
        transcendentals=N * H * W * (c_p + C2p),
        bytes_accessed=4 * N * H * W * (C1p + C2p)
        + 4 * N * B * W * C1p
        + 2 * (C1p * c_p + 9 * c_p * C2p),
    )

    out = pl.pallas_call(
        kernel,
        out_shape=jax.ShapeDtypeStruct((N, H * W, C2p), jnp.float32),
        grid_spec=pltpu.PrefetchScalarGridSpec(
            num_scalar_prefetch=0,
            grid=(N, B),
            in_specs=[
                # band of TR image rows, flattened to (TR*W, C1p)
                pl.BlockSpec((None, TRW, C1p), lambda n, b: (n, b, 0)),
                # 1-row top / bottom halo (clamped at the image border)
                pl.BlockSpec((None, None, W, C1p),
                             lambda n, b: (n, jnp.maximum(b * TR - 1, 0), 0, 0)),
                pl.BlockSpec((None, None, W, C1p),
                             lambda n, b: (n, jnp.minimum(b * TR + TR, H - 1), 0, 0)),
                # edge-column masks
                pl.BlockSpec((TRW, 1), lambda n, b: (0, 0)),
                pl.BlockSpec((TRW, 1), lambda n, b: (0, 0)),
                # weights / folded BN
                pl.BlockSpec((C1p, c_p), lambda n, b: (0, 0)),
                pl.BlockSpec((9, c_p, C2p), lambda n, b: (0, 0, 0)),
                pl.BlockSpec((1, c_p), lambda n, b: (0, 0)),
                pl.BlockSpec((1, c_p), lambda n, b: (0, 0)),
                pl.BlockSpec((1, C2p), lambda n, b: (0, 0)),
                pl.BlockSpec((1, C2p), lambda n, b: (0, 0)),
            ],
            out_specs=pl.BlockSpec((None, TRW, C2p), lambda n, b: (n, b, 0)),
            scratch_shapes=[
                pltpu.VMEM(((TR + 2) * W + 2 * _FRONT, c_p), jnp.float32),
            ],
        ),
        compiler_params=pltpu.CompilerParams(
            dimension_semantics=("parallel", "parallel"),
            vmem_limit_bytes=32 * 1024 * 1024,
        ),
        cost_estimate=cost,
    )(x_flat, x, x, edge_l, edge_r, w1p, w2p, s1p, b1p, s2p, b2p)

    out = out.reshape(N, H, W, C2p)[..., :C2]
    return jnp.transpose(out, (0, 3, 1, 2))  # NHWC -> NCHW


# ------------------------- params / reference ------------------------------ #

def init_bottleneck_params(key, c1, c2, e=0.5):
    c_ = int(c2 * e)
    k1, k2, k3, k4, k5, k6 = jax.random.split(key, 6)
    # conv weights in PyTorch layout [out, in, kh, kw]
    w1_t = 0.1 * jax.random.normal(k1, (c_, c1, 1, 1), jnp.float32)
    w2_t = 0.1 * jax.random.normal(k2, (c2, c_, 3, 3), jnp.float32)

    def folded_bn(kg, kb, c):
        gamma = 1.0 + 0.1 * jax.random.normal(kg, (c,), jnp.float32)
        beta = 0.1 * jax.random.normal(kb, (c,), jnp.float32)
        mean = 0.05 * jnp.arange(c, dtype=jnp.float32)
        var = 1.0 + 0.02 * jnp.arange(c, dtype=jnp.float32)
        scale = gamma / jnp.sqrt(var + 1e-5)
        shift = beta - mean * scale
        return scale, shift

    s1, b1 = folded_bn(k3, k4, c_)
    s2, b2 = folded_bn(k5, k6, c2)
    return dict(
        w1=jnp.transpose(w1_t[:, :, 0, 0], (1, 0)),               # (c1, c_)
        w2=jnp.transpose(w2_t, (2, 3, 1, 0)).reshape(9, c_, c2),   # (9, c_, c2)
        s1=s1, b1=b1, s2=s2, b2=b2,
        w1_t=w1_t, w2_t=w2_t,                                      # for reference
    )


def bottleneck_ref(x_nchw, params, shortcut=True):
    """Pure-JAX f32 reference (NCHW, matches the PyTorch module semantics)."""
    c2 = params["w2_t"].shape[0]
    y1 = lax.conv_general_dilated(x_nchw, params["w1_t"], (1, 1), "VALID",
                                  dimension_numbers=("NCHW", "OIHW", "NCHW"))
    y1 = y1 * params["s1"].reshape(1, -1, 1, 1) + params["b1"].reshape(1, -1, 1, 1)
    y1 = _silu(y1)
    y2 = lax.conv_general_dilated(y1, params["w2_t"], (1, 1), ((1, 1), (1, 1)),
                                  dimension_numbers=("NCHW", "OIHW", "NCHW"))
    y2 = y2 * params["s2"].reshape(1, -1, 1, 1) + params["b2"].reshape(1, -1, 1, 1)
    y2 = _silu(y2)
    add = shortcut and (x_nchw.shape[1] == c2)
    return x_nchw + y2 if add else y2


if __name__ == "__main__":
    key = jax.random.PRNGKey(0)
    kx, kp = jax.random.split(key)

    N, C1, C2, H, W = 2, 4, 4, 16, 16           # c_ = int(C2 * 0.5) = 2
    x = jax.random.normal(kx, (N, C1, H, W), jnp.float32)
    params = init_bottleneck_params(kp, C1, C2, e=0.5)

    fwd = jax.jit(functools.partial(bottleneck_forward, params=params,
                                    shortcut=True))
    out = jax.block_until_ready(fwd(x))

    ref = bottleneck_ref(x, params, shortcut=True)
    assert out.shape == (N, C2, H, W), out.shape
    max_err = float(jnp.max(jnp.abs(out - ref)))
    # bf16 MXU operands (f32 accumulate) -> looser tolerance than pure f32.
    assert jnp.allclose(out, ref, atol=2e-2, rtol=2e-2), max_err

    print("KERNEL_OK")
</pallas_src>

<mosaic_0001>
module attributes {stable_mosaic.version = 11 : i64} {
  func.func @kernel(%arg0: i32, %arg1: i32, %arg2: memref<1x128x128xf32, #tpu.memory_space<vmem>>, %arg3: memref<1x1x16x128xf32, #tpu.memory_space<vmem>>, %arg4: memref<1x1x16x128xf32, #tpu.memory_space<vmem>>, %arg5: memref<128x1xf32, #tpu.memory_space<vmem>>, %arg6: memref<128x1xf32, #tpu.memory_space<vmem>>, %arg7: memref<128x128xbf16, #tpu.memory_space<vmem>>, %arg8: memref<9x128x128xbf16, #tpu.memory_space<vmem>>, %arg9: memref<1x128xf32, #tpu.memory_space<vmem>>, %arg10: memref<1x128xf32, #tpu.memory_space<vmem>>, %arg11: memref<1x128xf32, #tpu.memory_space<vmem>>, %arg12: memref<1x128xf32, #tpu.memory_space<vmem>>, %arg13: memref<1x128x128xf32, #tpu.memory_space<vmem>>, %arg14: memref<176x128xf32, #tpu.memory_space<vmem>>) attributes {dimension_semantics = [#tpu.dimension_semantics<parallel>, #tpu.dimension_semantics<parallel>], iteration_bounds = array<i64: 2, 2>, scalar_prefetch = 0 : i64, scratch_operands = 1 : i64, tpu.core_type = #tpu.core_type<tc>, window_params = [{transform_indices = @transform_0, window_bounds = array<i64: 1, 128, 128>}, {transform_indices = @transform_1, window_bounds = array<i64: 1, 1, 16, 128>}, {transform_indices = @transform_2, window_bounds = array<i64: 1, 1, 16, 128>}, {pipeline_mode = #tpu.pipeline_mode<synchronous>, transform_indices = @transform_3, window_bounds = array<i64: 128, 1>}, {pipeline_mode = #tpu.pipeline_mode<synchronous>, transform_indices = @transform_4, window_bounds = array<i64: 128, 1>}, {pipeline_mode = #tpu.pipeline_mode<synchronous>, transform_indices = @transform_5, window_bounds = array<i64: 128, 128>}, {pipeline_mode = #tpu.pipeline_mode<synchronous>, transform_indices = @transform_6, window_bounds = array<i64: 9, 128, 128>}, {pipeline_mode = #tpu.pipeline_mode<synchronous>, transform_indices = @transform_7, window_bounds = array<i64: 1, 128>}, {pipeline_mode = #tpu.pipeline_mode<synchronous>, transform_indices = @transform_8, window_bounds = array<i64: 1, 128>}, {pipeline_mode = #tpu.pipeline_mode<synchronous>, transform_indices = @transform_9, window_bounds = array<i64: 1, 128>}, {pipeline_mode = #tpu.pipeline_mode<synchronous>, transform_indices = @transform_10, window_bounds = array<i64: 1, 128>}, {transform_indices = @transform_11, window_bounds = array<i64: 1, 128, 128>}]} {
    %c0 = arith.constant 0 : index
    %c0_0 = arith.constant 0 : index
    %0 = vector.load %arg7[%c0, %c0_0] : memref<128x128xbf16, #tpu.memory_space<vmem>>, vector<128x128xbf16>
    %c0_1 = arith.constant 0 : index
    %c0_2 = arith.constant 0 : index
    %1 = vector.load %arg9[%c0_1, %c0_2] : memref<1x128xf32, #tpu.memory_space<vmem>>, vector<1x128xf32>
    %c0_3 = arith.constant 0 : index
    %c0_4 = arith.constant 0 : index
    %2 = vector.load %arg10[%c0_3, %c0_4] : memref<1x128xf32, #tpu.memory_space<vmem>>, vector<1x128xf32>
    %c0_5 = arith.constant 0 : index
    %c0_6 = arith.constant 0 : index
    %c0_7 = arith.constant 0 : index
    %3 = vector.load %arg2[%c0_5, %c0_6, %c0_7] : memref<1x128x128xf32, #tpu.memory_space<vmem>>, vector<1x128x128xf32>
    %4 = vector.shape_cast %3 : vector<1x128x128xf32> to vector<128x128xf32>
    %5 = arith.truncf %4 : vector<128x128xf32> to vector<128x128xbf16>
    %cst = arith.constant dense<0.000000e+00> : vector<128x128xf32>
    %6 = tpu.matmul %5, %0, %cst {dimension_numbers = #tpu.dot_dimension_numbers<[1], [0], [0], [1], [0, 0, 1, 1], [], []>} : vector<128x128xbf16>, vector<128x128xbf16>, vector<128x128xf32> -> vector<128x128xf32>
    %7 = vector.broadcast %1 : vector<1x128xf32> to vector<128x128xf32>
    %8 = arith.mulf %6, %7 : vector<128x128xf32>
    %9 = vector.broadcast %2 : vector<1x128xf32> to vector<128x128xf32>
    %10 = arith.addf %8, %9 : vector<128x128xf32>
    %11 = arith.negf %10 : vector<128x128xf32>
    %12 = math.exp %11 : vector<128x128xf32>
    %cst_8 = arith.constant 1.000000e+00 : f32
    %13 = vector.broadcast %cst_8 : f32 to vector<128x128xf32>
    %14 = arith.addf %13, %12 : vector<128x128xf32>
    %15 = arith.divf %13, %14 : vector<128x128xf32>
    %16 = arith.mulf %10, %15 : vector<128x128xf32>
    %c0_9 = arith.constant 0 : index
    %c0_10 = arith.constant 0 : index
    %c0_11 = arith.constant 0 : index
    %c0_12 = arith.constant 0 : index
    %17 = vector.load %arg3[%c0_9, %c0_10, %c0_11, %c0_12] : memref<1x1x16x128xf32, #tpu.memory_space<vmem>>, vector<1x1x16x128xf32>
    %18 = vector.shape_cast %17 : vector<1x1x16x128xf32> to vector<16x128xf32>
    %19 = arith.truncf %18 : vector<16x128xf32> to vector<16x128xbf16>
    %cst_13 = arith.constant dense<0.000000e+00> : vector<16x128xf32>
    %20 = tpu.matmul %19, %0, %cst_13 {dimension_numbers = #tpu.dot_dimension_numbers<[1], [0], [0], [1], [0, 0, 1, 1], [], []>} : vector<16x128xbf16>, vector<128x128xbf16>, vector<16x128xf32> -> vector<16x128xf32>
    %21 = vector.broadcast %1 : vector<1x128xf32> to vector<16x128xf32>
    %22 = arith.mulf %20, %21 : vector<16x128xf32>
    %23 = vector.broadcast %2 : vector<1x128xf32> to vector<16x128xf32>
    %24 = arith.addf %22, %23 : vector<16x128xf32>
    %25 = arith.negf %24 : vector<16x128xf32>
    %26 = math.exp %25 : vector<16x128xf32>
    %cst_14 = arith.constant 1.000000e+00 : f32
    %27 = vector.broadcast %cst_14 : f32 to vector<16x128xf32>
    %28 = arith.addf %27, %26 : vector<16x128xf32>
    %29 = arith.divf %27, %28 : vector<16x128xf32>
    %30 = arith.mulf %24, %29 : vector<16x128xf32>
    %c0_15 = arith.constant 0 : index
    %c0_16 = arith.constant 0 : index
    %c0_17 = arith.constant 0 : index
    %c0_18 = arith.constant 0 : index
    %31 = vector.load %arg4[%c0_15, %c0_16, %c0_17, %c0_18] : memref<1x1x16x128xf32, #tpu.memory_space<vmem>>, vector<1x1x16x128xf32>
    %32 = vector.shape_cast %31 : vector<1x1x16x128xf32> to vector<16x128xf32>
    %33 = arith.truncf %32 : vector<16x128xf32> to vector<16x128xbf16>
    %cst_19 = arith.constant dense<0.000000e+00> : vector<16x128xf32>
    %34 = tpu.matmul %33, %0, %cst_19 {dimension_numbers = #tpu.dot_dimension_numbers<[1], [0], [0], [1], [0, 0, 1, 1], [], []>} : vector<16x128xbf16>, vector<128x128xbf16>, vector<16x128xf32> -> vector<16x128xf32>
    %35 = vector.broadcast %1 : vector<1x128xf32> to vector<16x128xf32>
    %36 = arith.mulf %34, %35 : vector<16x128xf32>
    %37 = vector.broadcast %2 : vector<1x128xf32> to vector<16x128xf32>
    %38 = arith.addf %36, %37 : vector<16x128xf32>
    %39 = arith.negf %38 : vector<16x128xf32>
    %40 = math.exp %39 : vector<16x128xf32>
    %cst_20 = arith.constant 1.000000e+00 : f32
    %41 = vector.broadcast %cst_20 : f32 to vector<16x128xf32>
    %42 = arith.addf %41, %40 : vector<16x128xf32>
    %43 = arith.divf %41, %42 : vector<16x128xf32>
    %44 = arith.mulf %38, %43 : vector<16x128xf32>
    %c0_i32 = arith.constant 0 : i32
    %45 = arith.cmpi sgt, %arg1, %c0_i32 : i32
    %46 = arith.extui %45 : i1 to i32
    %47 = arith.sitofp %46 : i32 to f32
    %48 = vector.broadcast %47 : f32 to vector<16x128xf32>
    %49 = arith.mulf %30, %48 : vector<16x128xf32>
    %c1_i32 = arith.constant 1 : i32
    %50 = arith.cmpi slt, %arg1, %c1_i32 : i32
    %51 = arith.extui %50 : i1 to i32
    %52 = arith.sitofp %51 : i32 to f32
    %53 = vector.broadcast %52 : f32 to vector<16x128xf32>
    %54 = arith.mulf %44, %53 : vector<16x128xf32>
    %c8 = arith.constant 8 : index
    %c0_21 = arith.constant 0 : index
    %55 = vector.load %arg14[%c8, %c0_21] : memref<176x128xf32, #tpu.memory_space<vmem>>, vector<16x128xf32>
    tpu.vector_store %arg14[%c8, %c0_21], %49 {strides = array<i32>} : memref<176x128xf32, #tpu.memory_space<vmem>>, vector<16x128xf32>,
    %c24 = arith.constant 24 : index
    %c0_22 = arith.constant 0 : index
    %56 = vector.load %arg14[%c24, %c0_22] : memref<176x128xf32, #tpu.memory_space<vmem>>, vector<128x128xf32>
    tpu.vector_store %arg14[%c24, %c0_22], %16 {strides = array<i32>} : memref<176x128xf32, #tpu.memory_space<vmem>>, vector<128x128xf32>,
    %c152 = arith.constant 152 : index
    %c0_23 = arith.constant 0 : index
    %57 = vector.load %arg14[%c152, %c0_23] : memref<176x128xf32, #tpu.memory_space<vmem>>, vector<16x128xf32>
    tpu.vector_store %arg14[%c152, %c0_23], %54 {strides = array<i32>} : memref<176x128xf32, #tpu.memory_space<vmem>>, vector<16x128xf32>,
    %c0_24 = arith.constant 0 : index
    %c0_25 = arith.constant 0 : index
    %58 = vector.load %arg5[%c0_24, %c0_25] : memref<128x1xf32, #tpu.memory_space<vmem>>, vector<128x1xf32>
    %cst_26 = arith.constant 5.000000e-01 : f32
    %59 = vector.broadcast %cst_26 : f32 to vector<128x1xf32>
    %60 = arith.cmpf ogt, %58, %59 : vector<128x1xf32>
    %c0_27 = arith.constant 0 : index
    %c0_28 = arith.constant 0 : index
    %61 = vector.load %arg6[%c0_27, %c0_28] : memref<128x1xf32, #tpu.memory_space<vmem>>, vector<128x1xf32>
    %cst_29 = arith.constant 5.000000e-01 : f32
    %62 = vector.broadcast %cst_29 : f32 to vector<128x1xf32>
    %63 = arith.cmpf ogt, %61, %62 : vector<128x1xf32>
    %cst_30 = arith.constant 0.000000e+00 : f32
    %64 = vector.broadcast %cst_30 : f32 to vector<128x128xf32>
    %c7 = arith.constant 7 : index
    %c0_31 = arith.constant 0 : index
    %65 = vector.load %arg14[%c7, %c0_31] : memref<176x128xf32, #tpu.memory_space<vmem>>, vector<128x128xf32>
    %cst_32 = arith.constant 0.000000e+00 : f32
    %66 = vector.broadcast %cst_32 : f32 to vector<128x128xf32>
    %67 = vector.shape_cast %60 : vector<128x1xi1> to vector<128x1xi1>
    %68 = vector.broadcast %67 : vector<128x1xi1> to vector<128x128xi1>
    %69 = arith.select %68, %66, %65 : vector<128x128xi1>, vector<128x128xf32>
    %70 = arith.truncf %69 : vector<128x128xf32> to vector<128x128xbf16>
    %c0_33 = arith.constant 0 : index
    %c0_34 = arith.constant 0 : index
    %c0_35 = arith.constant 0 : index
    %71 = vector.load %arg8[%c0_33, %c0_34, %c0_35] : memref<9x128x128xbf16, #tpu.memory_space<vmem>>, vector<1x128x128xbf16>
    %72 = vector.shape_cast %71 : vector<1x128x128xbf16> to vector<128x128xbf16>
    %cst_36 = arith.constant dense<0.000000e+00> : vector<128x128xf32>
    %73 = tpu.matmul %70, %72, %cst_36 {dimension_numbers = #tpu.dot_dimension_numbers<[1], [0], [0], [1], [0, 0, 1, 1], [], []>} : vector<128x128xbf16>, vector<128x128xbf16>, vector<128x128xf32> -> vector<128x128xf32>
    %74 = arith.addf %64, %73 : vector<128x128xf32>
    %c8_37 = arith.constant 8 : index
    %c0_38 = arith.constant 0 : index
    %75 = vector.load %arg14[%c8_37, %c0_38] : memref<176x128xf32, #tpu.memory_space<vmem>>, vector<128x128xf32>
    %76 = arith.truncf %75 : vector<128x128xf32> to vector<128x128xbf16>
    %c1 = arith.constant 1 : index
    %c0_39 = arith.constant 0 : index
    %c0_40 = arith.constant 0 : index
    %77 = vector.load %arg8[%c1, %c0_39, %c0_40] : memref<9x128x128xbf16, #tpu.memory_space<vmem>>, vector<1x128x128xbf16>
    %78 = vector.shape_cast %77 : vector<1x128x128xbf16> to vector<128x128xbf16>
    %cst_41 = arith.constant dense<0.000000e+00> : vector<128x128xf32>
    %79 = tpu.matmul %76, %78, %cst_41 {dimension_numbers = #tpu.dot_dimension_numbers<[1], [0], [0], [1], [0, 0, 1, 1], [], []>} : vector<128x128xbf16>, vector<128x128xbf16>, vector<128x128xf32> -> vector<128x128xf32>
    %80 = arith.addf %74, %79 : vector<128x128xf32>
    %c9 = arith.constant 9 : index
    %c0_42 = arith.constant 0 : index
    %81 = vector.load %arg14[%c9, %c0_42] : memref<176x128xf32, #tpu.memory_space<vmem>>, vector<128x128xf32>
    %cst_43 = arith.constant 0.000000e+00 : f32
    %82 = vector.broadcast %cst_43 : f32 to vector<128x128xf32>
    %83 = vector.shape_cast %63 : vector<128x1xi1> to vector<128x1xi1>
    %84 = vector.broadcast %83 : vector<128x1xi1> to vector<128x128xi1>
    %85 = arith.select %84, %82, %81 : vector<128x128xi1>, vector<128x128xf32>
    %86 = arith.truncf %85 : vector<128x128xf32> to vector<128x128xbf16>
    %c2 = arith.constant 2 : index
    %c0_44 = arith.constant 0 : index
    %c0_45 = arith.constant 0 : index
    %87 = vector.load %arg8[%c2, %c0_44, %c0_45] : memref<9x128x128xbf16, #tpu.memory_space<vmem>>, vector<1x128x128xbf16>
    %88 = vector.shape_cast %87 : vector<1x128x128xbf16> to vector<128x128xbf16>
    %cst_46 = arith.constant dense<0.000000e+00> : vector<128x128xf32>
    %89 = tpu.matmul %86, %88, %cst_46 {dimension_numbers = #tpu.dot_dimension_numbers<[1], [0], [0], [1], [0, 0, 1, 1], [], []>} : vector<128x128xbf16>, vector<128x128xbf16>, vector<128x128xf32> -> vector<128x128xf32>
    %90 = arith.addf %80, %89 : vector<128x128xf32>
    %c23 = arith.constant 23 : index
    %c0_47 = arith.constant 0 : index
    %91 = vector.load %arg14[%c23, %c0_47] : memref<176x128xf32, #tpu.memory_space<vmem>>, vector<128x128xf32>
    %cst_48 = arith.constant 0.000000e+00 : f32
    %92 = vector.broadcast %cst_48 : f32 to vector<128x128xf32>
    %93 = vector.shape_cast %60 : vector<128x1xi1> to vector<128x1xi1>
    %94 = vector.broadcast %93 : vector<128x1xi1> to vector<128x128xi1>
    %95 = arith.select %94, %92, %91 : vector<128x128xi1>, vector<128x128xf32>
    %96 = arith.truncf %95 : vector<128x128xf32> to vector<128x128xbf16>
    %c3 = arith.constant 3 : index
    %c0_49 = arith.constant 0 : index
    %c0_50 = arith.constant 0 : index
    %97 = vector.load %arg8[%c3, %c0_49, %c0_50] : memref<9x128x128xbf16, #tpu.memory_space<vmem>>, vector<1x128x128xbf16>
    %98 = vector.shape_cast %97 : vector<1x128x128xbf16> to vector<128x128xbf16>
    %cst_51 = arith.constant dense<0.000000e+00> : vector<128x128xf32>
    %99 = tpu.matmul %96, %98, %cst_51 {dimension_numbers = #tpu.dot_dimension_numbers<[1], [0], [0], [1], [0, 0, 1, 1], [], []>} : vector<128x128xbf16>, vector<128x128xbf16>, vector<128x128xf32> -> vector<128x128xf32>
    %100 = arith.addf %90, %99 : vector<128x128xf32>
    %c24_52 = arith.constant 24 : index
    %c0_53 = arith.constant 0 : index
    %101 = vector.load %arg14[%c24_52, %c0_53] : memref<176x128xf32, #tpu.memory_space<vmem>>, vector<128x128xf32>
    %102 = arith.truncf %101 : vector<128x128xf32> to vector<128x128xbf16>
    %c4 = arith.constant 4 : index
    %c0_54 = arith.constant 0 : index
    %c0_55 = arith.constant 0 : index
    %103 = vector.load %arg8[%c4, %c0_54, %c0_55] : memref<9x128x128xbf16, #tpu.memory_space<vmem>>, vector<1x128x128xbf16>
    %104 = vector.shape_cast %103 : vector<1x128x128xbf16> to vector<128x128xbf16>
    %cst_56 = arith.constant dense<0.000000e+00> : vector<128x128xf32>
    %105 = tpu.matmul %102, %104, %cst_56 {dimension_numbers = #tpu.dot_dimension_numbers<[1], [0], [0], [1], [0, 0, 1, 1], [], []>} : vector<128x128xbf16>, vector<128x128xbf16>, vector<128x128xf32> -> vector<128x128xf32>
    %106 = arith.addf %100, %105 : vector<128x128xf32>
    %c25 = arith.constant 25 : index
    %c0_57 = arith.constant 0 : index
    %107 = vector.load %arg14[%c25, %c0_57] : memref<176x128xf32, #tpu.memory_space<vmem>>, vector<128x128xf32>
    %cst_58 = arith.constant 0.000000e+00 : f32
    %108 = vector.broadcast %cst_58 : f32 to vector<128x128xf32>
    %109 = vector.shape_cast %63 : vector<128x1xi1> to vector<128x1xi1>
    %110 = vector.broadcast %109 : vector<128x1xi1> to vector<128x128xi1>
    %111 = arith.select %110, %108, %107 : vector<128x128xi1>, vector<128x128xf32>
    %112 = arith.truncf %111 : vector<128x128xf32> to vector<128x128xbf16>
    %c5 = arith.constant 5 : index
    %c0_59 = arith.constant 0 : index
    %c0_60 = arith.constant 0 : index
    %113 = vector.load %arg8[%c5, %c0_59, %c0_60] : memref<9x128x128xbf16, #tpu.memory_space<vmem>>, vector<1x128x128xbf16>
    %114 = vector.shape_cast %113 : vector<1x128x128xbf16> to vector<128x128xbf16>
    %cst_61 = arith.constant dense<0.000000e+00> : vector<128x128xf32>
    %115 = tpu.matmul %112, %114, %cst_61 {dimension_numbers = #tpu.dot_dimension_numbers<[1], [0], [0], [1], [0, 0, 1, 1], [], []>} : vector<128x128xbf16>, vector<128x128xbf16>, vector<128x128xf32> -> vector<128x128xf32>
    %116 = arith.addf %106, %115 : vector<128x128xf32>
    %c39 = arith.constant 39 : index
    %c0_62 = arith.constant 0 : index
    %117 = vector.load %arg14[%c39, %c0_62] : memref<176x128xf32, #tpu.memory_space<vmem>>, vector<128x128xf32>
    %cst_63 = arith.constant 0.000000e+00 : f32
    %118 = vector.broadcast %cst_63 : f32 to vector<128x128xf32>
    %119 = vector.shape_cast %60 : vector<128x1xi1> to vector<128x1xi1>
    %120 = vector.broadcast %119 : vector<128x1xi1> to vector<128x128xi1>
    %121 = arith.select %120, %118, %117 : vector<128x128xi1>, vector<128x128xf32>
    %122 = arith.truncf %121 : vector<128x128xf32> to vector<128x128xbf16>
    %c6 = arith.constant 6 : index
    %c0_64 = arith.constant 0 : index
    %c0_65 = arith.constant 0 : index
    %123 = vector.load %arg8[%c6, %c0_64, %c0_65] : memref<9x128x128xbf16, #tpu.memory_space<vmem>>, vector<1x128x128xbf16>
    %124 = vector.shape_cast %123 : vector<1x128x128xbf16> to vector<128x128xbf16>
    %cst_66 = arith.constant dense<0.000000e+00> : vector<128x128xf32>
    %125 = tpu.matmul %122, %124, %cst_66 {dimension_numbers = #tpu.dot_dimension_numbers<[1], [0], [0], [1], [0, 0, 1, 1], [], []>} : vector<128x128xbf16>, vector<128x128xbf16>, vector<128x128xf32> -> vector<128x128xf32>
    %126 = arith.addf %116, %125 : vector<128x128xf32>
    %c40 = arith.constant 40 : index
    %c0_67 = arith.constant 0 : index
    %127 = vector.load %arg14[%c40, %c0_67] : memref<176x128xf32, #tpu.memory_space<vmem>>, vector<128x128xf32>
    %128 = arith.truncf %127 : vector<128x128xf32> to vector<128x128xbf16>
    %c7_68 = arith.constant 7 : index
    %c0_69 = arith.constant 0 : index
    %c0_70 = arith.constant 0 : index
    %129 = vector.load %arg8[%c7_68, %c0_69, %c0_70] : memref<9x128x128xbf16, #tpu.memory_space<vmem>>, vector<1x128x128xbf16>
    %130 = vector.shape_cast %129 : vector<1x128x128xbf16> to vector<128x128xbf16>
    %cst_71 = arith.constant dense<0.000000e+00> : vector<128x128xf32>
    %131 = tpu.matmul %128, %130, %cst_71 {dimension_numbers = #tpu.dot_dimension_numbers<[1], [0], [0], [1], [0, 0, 1, 1], [], []>} : vector<128x128xbf16>, vector<128x128xbf16>, vector<128x128xf32> -> vector<128x128xf32>
    %132 = arith.addf %126, %131 : vector<128x128xf32>
    %c41 = arith.constant 41 : index
    %c0_72 = arith.constant 0 : index
    %133 = vector.load %arg14[%c41, %c0_72] : memref<176x128xf32, #tpu.memory_space<vmem>>, vector<128x128xf32>
    %cst_73 = arith.constant 0.000000e+00 : f32
    %134 = vector.broadcast %cst_73 : f32 to vector<128x128xf32>
    %135 = vector.shape_cast %63 : vector<128x1xi1> to vector<128x1xi1>
    %136 = vector.broadcast %135 : vector<128x1xi1> to vector<128x128xi1>
    %137 = arith.select %136, %134, %133 : vector<128x128xi1>, vector<128x128xf32>
    %138 = arith.truncf %137 : vector<128x128xf32> to vector<128x128xbf16>
    %c8_74 = arith.constant 8 : index
    %c0_75 = arith.constant 0 : index
    %c0_76 = arith.constant 0 : index
    %139 = vector.load %arg8[%c8_74, %c0_75, %c0_76] : memref<9x128x128xbf16, #tpu.memory_space<vmem>>, vector<1x128x128xbf16>
    %140 = vector.shape_cast %139 : vector<1x128x128xbf16> to vector<128x128xbf16>
    %cst_77 = arith.constant dense<0.000000e+00> : vector<128x128xf32>
    %141 = tpu.matmul %138, %140, %cst_77 {dimension_numbers = #tpu.dot_dimension_numbers<[1], [0], [0], [1], [0, 0, 1, 1], [], []>} : vector<128x128xbf16>, vector<128x128xbf16>, vector<128x128xf32> -> vector<128x128xf32>
    %142 = arith.addf %132, %141 : vector<128x128xf32>
    %c0_78 = arith.constant 0 : index
    %c0_79 = arith.constant 0 : index
    %143 = vector.load %arg11[%c0_78, %c0_79] : memref<1x128xf32, #tpu.memory_space<vmem>>, vector<1x128xf32>
    %144 = vector.broadcast %143 : vector<1x128xf32> to vector<128x128xf32>
    %145 = arith.mulf %142, %144 : vector<128x128xf32>
    %c0_80 = arith.constant 0 : index
    %c0_81 = arith.constant 0 : index
    %146 = vector.load %arg12[%c0_80, %c0_81] : memref<1x128xf32, #tpu.memory_space<vmem>>, vector<1x128xf32>
    %147 = vector.broadcast %146 : vector<1x128xf32> to vector<128x128xf32>
    %148 = arith.addf %145, %147 : vector<128x128xf32>
    %149 = arith.negf %148 : vector<128x128xf32>
    %150 = math.exp %149 : vector<128x128xf32>
    %cst_82 = arith.constant 1.000000e+00 : f32
    %151 = vector.broadcast %cst_82 : f32 to vector<128x128xf32>
    %152 = arith.addf %151, %150 : vector<128x128xf32>
    %153 = arith.divf %151, %152 : vector<128x128xf32>
    %154 = arith.mulf %148, %153 : vector<128x128xf32>
    %c0_83 = arith.constant 0 : index
    %c0_84 = arith.constant 0 : index
    %c0_85 = arith.constant 0 : index
    %155 = vector.load %arg2[%c0_83, %c0_84, %c0_85] : memref<1x128x128xf32, #tpu.memory_space<vmem>>, vector<1x128x128xf32>
    %156 = vector.shape_cast %155 : vector<1x128x128xf32> to vector<128x128xf32>
    %157 = arith.addf %154, %156 : vector<128x128xf32>
    %c0_86 = arith.constant 0 : index
    %c0_87 = arith.constant 0 : index
    %c0_88 = arith.constant 0 : index
    %158 = vector.load %arg13[%c0_86, %c0_87, %c0_88] : memref<1x128x128xf32, #tpu.memory_space<vmem>>, vector<1x128x128xf32>
    %159 = vector.shape_cast %158 : vector<1x128x128xf32> to vector<128x128xf32>
    %160 = vector.shape_cast %157 : vector<128x128xf32> to vector<1x128x128xf32>
    tpu.vector_store %arg13[%c0_86, %c0_87, %c0_88], %160 {strides = array<i32>} : memref<1x128x128xf32, #tpu.memory_space<vmem>>, vector<1x128x128xf32>,
    return
  }
  func.func @transform_0(%arg0: i32, %arg1: i32) -> (i32, i32, i32) {
    %c0_i32 = arith.constant 0 : i32
    %c0_i32_0 = arith.constant 0 : i32
    return %arg0, %arg1, %c0_i32 : i32, i32, i32
  }
  func.func @transform_1(%arg0: i32, %arg1: i32) -> (i32, i32, i32, i32) {
    %c8_i32 = arith.constant 8 : i32
    %0 = arith.muli %arg1, %c8_i32 : i32
    %c1_i32 = arith.constant 1 : i32
    %1 = arith.subi %0, %c1_i32 : i32
    %c0_i32 = arith.constant 0 : i32
    %2 = arith.maxsi %1, %c0_i32 : i32
    %c0_i32_0 = arith.constant 0 : i32
    %c0_i32_1 = arith.constant 0 : i32
    %c0_i32_2 = arith.constant 0 : i32
    return %arg0, %2, %c0_i32_0, %c0_i32_1 : i32, i32, i32, i32
  }
  func.func @transform_2(%arg0: i32, %arg1: i32) -> (i32, i32, i32, i32) {
    %c8_i32 = arith.constant 8 : i32
    %0 = arith.muli %arg1, %c8_i32 : i32
    %c8_i32_0 = arith.constant 8 : i32
    %1 = arith.addi %0, %c8_i32_0 : i32
    %c15_i32 = arith.constant 15 : i32
    %2 = arith.minsi %1, %c15_i32 : i32
    %c0_i32 = arith.constant 0 : i32
    %c0_i32_1 = arith.constant 0 : i32
    %c0_i32_2 = arith.constant 0 : i32
    return %arg0, %2, %c0_i32, %c0_i32_1 : i32, i32, i32, i32
  }
  func.func @transform_3(%arg0: i32, %arg1: i32) -> (i32, i32) {
    %c0_i32 = arith.constant 0 : i32
    %c0_i32_0 = arith.constant 0 : i32
    %c0_i32_1 = arith.constant 0 : i32
    return %c0_i32, %c0_i32_0 : i32, i32
  }
  func.func @transform_4(%arg0: i32, %arg1: i32) -> (i32, i32) {
    %c0_i32 = arith.constant 0 : i32
    %c0_i32_0 = arith.constant 0 : i32
    %c0_i32_1 = arith.constant 0 : i32
    return %c0_i32, %c0_i32_0 : i32, i32
  }
  func.func @transform_5(%arg0: i32, %arg1: i32) -> (i32, i32) {
    %c0_i32 = arith.constant 0 : i32
    %c0_i32_0 = arith.constant 0 : i32
    %c0_i32_1 = arith.constant 0 : i32
    return %c0_i32, %c0_i32_0 : i32, i32
  }
  func.func @transform_6(%arg0: i32, %arg1: i32) -> (i32, i32, i32) {
    %c0_i32 = arith.constant 0 : i32
    %c0_i32_0 = arith.constant 0 : i32
    %c0_i32_1 = arith.constant 0 : i32
    %c0_i32_2 = arith.constant 0 : i32
    return %c0_i32, %c0_i32_0, %c0_i32_1 : i32, i32, i32
  }
  func.func @transform_7(%arg0: i32, %arg1: i32) -> (i32, i32) {
    %c0_i32 = arith.constant 0 : i32
    %c0_i32_0 = arith.constant 0 : i32
    %c0_i32_1 = arith.constant 0 : i32
    return %c0_i32, %c0_i32_0 : i32, i32
  }
  func.func @transform_8(%arg0: i32, %arg1: i32) -> (i32, i32) {
    %c0_i32 = arith.constant 0 : i32
    %c0_i32_0 = arith.constant 0 : i32
    %c0_i32_1 = arith.constant 0 : i32
    return %c0_i32, %c0_i32_0 : i32, i32
  }
  func.func @transform_9(%arg0: i32, %arg1: i32) -> (i32, i32) {
    %c0_i32 = arith.constant 0 : i32
    %c0_i32_0 = arith.constant 0 : i32
    %c0_i32_1 = arith.constant 0 : i32
    return %c0_i32, %c0_i32_0 : i32, i32
  }
  func.func @transform_10(%arg0: i32, %arg1: i32) -> (i32, i32) {
    %c0_i32 = arith.constant 0 : i32
    %c0_i32_0 = arith.constant 0 : i32
    %c0_i32_1 = arith.constant 0 : i32
    return %c0_i32, %c0_i32_0 : i32, i32
  }
  func.func @transform_11(%arg0: i32, %arg1: i32) -> (i32, i32, i32) {
    %c0_i32 = arith.constant 0 : i32
    %c0_i32_0 = arith.constant 0 : i32
    return %arg0, %arg1, %c0_i32 : i32, i32, i32
  }
}

</mosaic_0001>

<llo_original>
// kernel: bottleneck_forward.1
$region0: #{bottleneck_forward.1}
  #allocation0 [shape = 'u32[]', space=smem, size = 0x4, offset = 0x4, fixed_abs, tag = 'smem constant byte address 0x4 - core index']
  #allocation1 [shape = 'u32[144,128]{1,0:T(1,128)}', space=vmem, size = 0x12000, scoped, tag = 'internal scratch']
  #allocation2 [shape = 'f32[176,128]{1,0:T(8,128)}', space=vmem, size = 0x16000, scoped, tag = 'scratch operand']
  %s0 = inlined_call_operand.vmem [shape: f32[2,256,128], index: 0, kind: input, shape index: {}, may-alias: {0,1,2}]
  %s1 = inlined_call_operand.vmem [shape: f32[2,16,16,128], index: 1, kind: input, shape index: {}, may-alias: {0,1,2}]
  %s2 = inlined_call_operand.vmem [shape: f32[2,16,16,128], index: 2, kind: input, shape index: {}, may-alias: {0,1,2}]
  %s3 = inlined_call_operand.vmem [shape: f32[128,1], index: 3, kind: input, shape index: {}]
  %s4 = inlined_call_operand.vmem [shape: f32[128,1], index: 4, kind: input, shape index: {}]
  %s5 = inlined_call_operand.vmem [shape: bf16[128,128], index: 5, kind: input, shape index: {}]
  %s6 = inlined_call_operand.vmem [shape: bf16[9,128,128], index: 6, kind: input, shape index: {}]
  %s7 = inlined_call_operand.vmem [shape: f32[1,128], index: 7, kind: input, shape index: {}]
  %s8 = inlined_call_operand.vmem [shape: f32[1,128], index: 8, kind: input, shape index: {}]
  %s9 = inlined_call_operand.vmem [shape: f32[1,128], index: 9, kind: input, shape index: {}]
  %s10 = inlined_call_operand.vmem [shape: f32[1,128], index: 10, kind: input, shape index: {}]
  %s11 = inlined_call_operand.vmem [shape: f32[2,256,128], index: 11, kind: output, shape index: {}]
  %s12 = sld [smem:[#allocation0]]
  $region77: #{bottleneck_forward.1} parent=0
    _
  %s14 = ssub.s32 1, %s12
  %s15 = scalar_select 0, %s14, %s12
  loop: start=0, step=1, limit=6
  $region2: #{bottleneck_forward.1} parent=0 // loop_pre_header
    _
  $region3: #{bottleneck_forward.1} parent=0 // loop_header
    %s17 = sphi 0, %s21
    %p18 = scmp.ge.s32.totalorder %s17, 6
    %s24 = sphi 0, %s36
    %s25 = sphi 0, %s32
    %s26 = sphi 0, %s24
    %s27 = sphi 0, %s25
    %s28 = sphi 0, %s26
    %s29 = sphi 0, %s27
    %s41 = sphi 0, %s43
    %s44 = sphi 0, %s41
    %s45 = sphi 0, %s44
    %s61 = sphi 0, %s45
    %s77 = sphi 0, %s79
    %s80 = sphi 0, %s77
    %s81 = sphi 0, %s80
    %s97 = sphi 0, %s81
    %s113 = sphi 0, %s115
    %s116 = sphi 0, %s113
    %s117 = sphi 0, %s116
    %s133 = sphi 0, %s117
    %s137 = sphi 0, %s137
    %s139 = sphi 0, %s137
    %s140 = sphi 0, %s139
    %s154 = sphi 0, %s140
    %s158 = sphi 0, %s158
    %s160 = sphi 0, %s158
    %s161 = sphi 0, %s160
    %s175 = sphi 0, %s161
    %s179 = sphi 0, %s179
    %s181 = sphi 0, %s179
    %s182 = sphi 0, %s181
    %s196 = sphi 0, %s182
    %s200 = sphi 0, %s200
    %s202 = sphi 0, %s200
    %s203 = sphi 0, %s202
    %s217 = sphi 0, %s203
    %s221 = sphi 0, %s221
    %s223 = sphi 0, %s221
    %s224 = sphi 0, %s223
    %s238 = sphi 0, %s224
    %s242 = sphi 0, %s242
    %s244 = sphi 0, %s242
    %s245 = sphi 0, %s244
    %s259 = sphi 0, %s245
    %s263 = sphi 0, %s263
    %s265 = sphi 0, %s263
    %s266 = sphi 0, %s265
    %s280 = sphi 0, %s266
    %s284 = sphi 0, %s284
    %s286 = sphi 0, %s284
    %s287 = sphi 0, %s286
    %s301 = sphi 0, %s287
    %s309 = sphi 0, %s311
    %s312 = sphi 0, %s309
    %s313 = sphi 0, %s312
    %s329 = sphi 0, %s313
  $region4: #{bottleneck_forward.1} parent=0 // loop_header_branch
    %20 = sbr.rel (%p18) target = $region8
  $region5: #{bottleneck_forward.1} parent=0 // loop_body
    %s22 = ssub.s32 %s17, 1
    %s23 = ssub.s32 %s17, 2
    %s30 = sadd.s32 1, %s25
    %p31 = scmp.ge.s32.totalorder %s30, 2
    %s32 = scalar_select %p31, 0, %s30
    %s33 = sadd.s32 1, %s24
    %s34 = scalar_select %p31, %s33, %s24
    %p35 = scmp.ge.s32.totalorder %s34, 2
    %s36 = scalar_select %p35, 0, %s34
    %s37 = ssub.s32 %s24, %s36
    %s38 = ssub.s32 %s25, %s32
    %s39 = sor.u32 %s37, %s38
    %p40 = scmp.eq.s32.totalorder %s39, 0
    %s42 = sadd.s32 %s41, 1
    %s43 = scalar_select %p40, %s41, %s42
    %p46 = pneg %p40
    %p47 = scmp.eq.s32.totalorder %s17, 3
    %p48 = por %p46, %p47
    %p49 = scmp.ne.s32.totalorder %s41, %s44
    %p50 = scmp.eq.s32.totalorder %s17, 0
    %p51 = por %p49, %p50
    %p52 = scmp.ne.s32.totalorder %s41, %s44
    %p53 = scmp.eq.s32.totalorder %s22, 3
    %p54 = por %p52, %p53
    %p55 = scmp.ne.s32.totalorder %s44, %s45
    %p56 = scmp.eq.s32.totalorder %s22, 0
    %p57 = por %p55, %p56
    %p58 = scmp.ne.s32.totalorder %s44, %s45
    %p59 = scmp.eq.s32.totalorder %s23, 3
    %p60 = por %p58, %p59
    %p62 = scmp.ne.s32.totalorder %s45, %s61
    %p63 = scmp.eq.s32.totalorder %s23, 0
    %p64 = por %p62, %p63
    %s65 = smul.u32 %s25, 8
    %s66 = ssub.s32 %s65, 1
    %p67 = scmp.gt.s32.totalorder %s66, 0
    %s68 = scalar_select %p67, %s66, 0
    %s69 = smul.u32 %s32, 8
    %s70 = ssub.s32 %s69, 1
    %p71 = scmp.gt.s32.totalorder %s70, 0
    %s72 = scalar_select %p71, %s70, 0
    %s73 = ssub.s32 %s24, %s36
    %s74 = ssub.s32 %s68, %s72
    %s75 = sor.u32 %s73, %s74
    %p76 = scmp.eq.s32.totalorder %s75, 0
    %s78 = sadd.s32 %s77, 1
    %s79 = scalar_select %p76, %s77, %s78
    %p82 = pneg %p76
    %p83 = scmp.eq.s32.totalorder %s17, 3
    %p84 = por %p82, %p83
    %p85 = scmp.ne.s32.totalorder %s77, %s80
    %p86 = scmp.eq.s32.totalorder %s17, 0
    %p87 = por %p85, %p86
    %p88 = scmp.ne.s32.totalorder %s77, %s80
    %p89 = scmp.eq.s32.totalorder %s22, 3
    %p90 = por %p88, %p89
    %p91 = scmp.ne.s32.totalorder %s80, %s81
    %p92 = scmp.eq.s32.totalorder %s22, 0
    %p93 = por %p91, %p92
    %p94 = scmp.ne.s32.totalorder %s80, %s81
    %p95 = scmp.eq.s32.totalorder %s23, 3
    %p96 = por %p94, %p95
    %p98 = scmp.ne.s32.totalorder %s81, %s97
    %p99 = scmp.eq.s32.totalorder %s23, 0
    %p100 = por %p98, %p99
    %s101 = smul.u32 %s25, 8
    %s102 = sadd.s32 %s101, 8
    %p103 = scmp.lt.s32.totalorder %s102, 15
    %s104 = scalar_select %p103, %s102, 15
    %s105 = smul.u32 %s32, 8
    %s106 = sadd.s32 %s105, 8
    %p107 = scmp.lt.s32.totalorder %s106, 15
    %s108 = scalar_select %p107, %s106, 15
    %s109 = ssub.s32 %s24, %s36
    %s110 = ssub.s32 %s104, %s108
    %s111 = sor.u32 %s109, %s110
    %p112 = scmp.eq.s32.totalorder %s111, 0
    %s114 = sadd.s32 %s113, 1
    %s115 = scalar_select %p112, %s113, %s114
    %p118 = pneg %p112
    %p119 = scmp.eq.s32.totalorder %s17, 3
    %p120 = por %p118, %p119
    %p121 = scmp.ne.s32.totalorder %s113, %s116
    %p122 = scmp.eq.s32.totalorder %s17, 0
    %p123 = por %p121, %p122
    %p124 = scmp.ne.s32.totalorder %s113, %s116
    %p125 = scmp.eq.s32.totalorder %s22, 3
    %p126 = por %p124, %p125
    %p127 = scmp.ne.s32.totalorder %s116, %s117
    %p128 = scmp.eq.s32.totalorder %s22, 0
    %p129 = por %p127, %p128
    %p130 = scmp.ne.s32.totalorder %s116, %s117
    %p131 = scmp.eq.s32.totalorder %s23, 3
    %p132 = por %p130, %p131
    %p134 = scmp.ne.s32.totalorder %s117, %s133
    %p135 = scmp.eq.s32.totalorder %s23, 0
    %p136 = por %p134, %p135
    %s138 = sadd.s32 %s137, 1
    %p141 = scmp.eq.s32.totalorder %s17, 3
    %p142 = scmp.ne.s32.totalorder %s137, %s139
    %p143 = scmp.eq.s32.totalorder %s17, 0
    %p144 = por %p142, %p143
    %p145 = scmp.ne.s32.totalorder %s137, %s139
    %p146 = scmp.eq.s32.totalorder %s22, 3
    %p147 = por %p145, %p146
    %p148 = scmp.ne.s32.totalorder %s139, %s140
    %p149 = scmp.eq.s32.totalorder %s22, 0
    %p150 = por %p148, %p149
    %p151 = scmp.ne.s32.totalorder %s139, %s140
    %p152 = scmp.eq.s32.totalorder %s23, 3
    %p153 = por %p151, %p152
    %p155 = scmp.ne.s32.totalorder %s140, %s154
    %p156 = scmp.eq.s32.totalorder %s23, 0
    %p157 = por %p155, %p156
    %s159 = sadd.s32 %s158, 1
    %p162 = scmp.eq.s32.totalorder %s17, 3
    %p163 = scmp.ne.s32.totalorder %s158, %s160
    %p164 = scmp.eq.s32.totalorder %s17, 0
    %p165 = por %p163, %p164
    %p166 = scmp.ne.s32.totalorder %s158, %s160
    %p167 = scmp.eq.s32.totalorder %s22, 3
    %p168 = por %p166, %p167
    %p169 = scmp.ne.s32.totalorder %s160, %s161
    %p170 = scmp.eq.s32.totalorder %s22, 0
    %p171 = por %p169, %p170
    %p172 = scmp.ne.s32.totalorder %s160, %s161
    %p173 = scmp.eq.s32.totalorder %s23, 3
    %p174 = por %p172, %p173
    %p176 = scmp.ne.s32.totalorder %s161, %s175
    %p177 = scmp.eq.s32.totalorder %s23, 0
    %p178 = por %p176, %p177
    %s180 = sadd.s32 %s179, 1
    %p183 = scmp.eq.s32.totalorder %s17, 3
    %p184 = scmp.ne.s32.totalorder %s179, %s181
    %p185 = scmp.eq.s32.totalorder %s17, 0
    %p186 = por %p184, %p185
    %p187 = scmp.ne.s32.totalorder %s179, %s181
    %p188 = scmp.eq.s32.totalorder %s22, 3
    %p189 = por %p187, %p188
    %p190 = scmp.ne.s32.totalorder %s181, %s182
    %p191 = scmp.eq.s32.totalorder %s22, 0
    %p192 = por %p190, %p191
    %p193 = scmp.ne.s32.totalorder %s181, %s182
    %p194 = scmp.eq.s32.totalorder %s23, 3
    %p195 = por %p193, %p194
    %p197 = scmp.ne.s32.totalorder %s182, %s196
    %p198 = scmp.eq.s32.totalorder %s23, 0
    %p199 = por %p197, %p198
    %s201 = sadd.s32 %s200, 1
    %p204 = scmp.eq.s32.totalorder %s17, 3
    %p205 = scmp.ne.s32.totalorder %s200, %s202
    %p206 = scmp.eq.s32.totalorder %s17, 0
    %p207 = por %p205, %p206
    %p208 = scmp.ne.s32.totalorder %s200, %s202
    %p209 = scmp.eq.s32.totalorder %s22, 3
    %p210 = por %p208, %p209
    %p211 = scmp.ne.s32.totalorder %s202, %s203
    %p212 = scmp.eq.s32.totalorder %s22, 0
    %p213 = por %p211, %p212
    %p214 = scmp.ne.s32.totalorder %s202, %s203
    %p215 = scmp.eq.s32.totalorder %s23, 3
    %p216 = por %p214, %p215
    %p218 = scmp.ne.s32.totalorder %s203, %s217
    %p219 = scmp.eq.s32.totalorder %s23, 0
    %p220 = por %p218, %p219
    %s222 = sadd.s32 %s221, 1
    %p225 = scmp.eq.s32.totalorder %s17, 3
    %p226 = scmp.ne.s32.totalorder %s221, %s223
    %p227 = scmp.eq.s32.totalorder %s17, 0
    %p228 = por %p226, %p227
    %p229 = scmp.ne.s32.totalorder %s221, %s223
    %p230 = scmp.eq.s32.totalorder %s22, 3
    %p231 = por %p229, %p230
    %p232 = scmp.ne.s32.totalorder %s223, %s224
    %p233 = scmp.eq.s32.totalorder %s22, 0
    %p234 = por %p232, %p233
    %p235 = scmp.ne.s32.totalorder %s223, %s224
    %p236 = scmp.eq.s32.totalorder %s23, 3
    %p237 = por %p235, %p236
    %p239 = scmp.ne.s32.totalorder %s224, %s238
    %p240 = scmp.eq.s32.totalorder %s23, 0
    %p241 = por %p239, %p240
    %s243 = sadd.s32 %s242, 1
    %p246 = scmp.eq.s32.totalorder %s17, 3
    %p247 = scmp.ne.s32.totalorder %s242, %s244
    %p248 = scmp.eq.s32.totalorder %s17, 0
    %p249 = por %p247, %p248
    %p250 = scmp.ne.s32.totalorder %s242, %s244
    %p251 = scmp.eq.s32.totalorder %s22, 3
    %p252 = por %p250, %p251
    %p253 = scmp.ne.s32.totalorder %s244, %s245
    %p254 = scmp.eq.s32.totalorder %s22, 0
    %p255 = por %p253, %p254
    %p256 = scmp.ne.s32.totalorder %s244, %s245
    %p257 = scmp.eq.s32.totalorder %s23, 3
    %p258 = por %p256, %p257
    %p260 = scmp.ne.s32.totalorder %s245, %s259
    %p261 = scmp.eq.s32.totalorder %s23, 0
    %p262 = por %p260, %p261
    %s264 = sadd.s32 %s263, 1
    %p267 = scmp.eq.s32.totalorder %s17, 3
    %p268 = scmp.ne.s32.totalorder %s263, %s265
    %p269 = scmp.eq.s32.totalorder %s17, 0
    %p270 = por %p268, %p269
    %p271 = scmp.ne.s32.totalorder %s263, %s265
    %p272 = scmp.eq.s32.totalorder %s22, 3
    %p273 = por %p271, %p272
    %p274 = scmp.ne.s32.totalorder %s265, %s266
    %p275 = scmp.eq.s32.totalorder %s22, 0
    %p276 = por %p274, %p275
    %p277 = scmp.ne.s32.totalorder %s265, %s266
    %p278 = scmp.eq.s32.totalorder %s23, 3
    %p279 = por %p277, %p278
    %p281 = scmp.ne.s32.totalorder %s266, %s280
    %p282 = scmp.eq.s32.totalorder %s23, 0
    %p283 = por %p281, %p282
    %s285 = sadd.s32 %s284, 1
    %p288 = scmp.eq.s32.totalorder %s17, 3
    %p289 = scmp.ne.s32.totalorder %s284, %s286
    %p290 = scmp.eq.s32.totalorder %s17, 0
    %p291 = por %p289, %p290
    %p292 = scmp.ne.s32.totalorder %s284, %s286
    %p293 = scmp.eq.s32.totalorder %s22, 3
    %p294 = por %p292, %p293
    %p295 = scmp.ne.s32.totalorder %s286, %s287
    %p296 = scmp.eq.s32.totalorder %s22, 0
    %p297 = por %p295, %p296
    %p298 = scmp.ne.s32.totalorder %s286, %s287
    %p299 = scmp.eq.s32.totalorder %s23, 3
    %p300 = por %p298, %p299
    %p302 = scmp.ne.s32.totalorder %s287, %s301
    %p303 = scmp.eq.s32.totalorder %s23, 0
    %p304 = por %p302, %p303
    %s305 = ssub.s32 %s24, %s36
    %s306 = ssub.s32 %s25, %s32
    %s307 = sor.u32 %s305, %s306
    %p308 = scmp.eq.s32.totalorder %s307, 0
    %s310 = sadd.s32 %s309, 1
    %s311 = scalar_select %p308, %s309, %s310
    %p314 = pneg %p308
    %p315 = scmp.eq.s32.totalorder %s17, 3
    %p316 = por %p314, %p315
    %p317 = scmp.ne.s32.totalorder %s309, %s312
    %p318 = scmp.eq.s32.totalorder %s17, 0
    %p319 = por %p317, %p318
    %p320 = scmp.ne.s32.totalorder %s309, %s312
    %p321 = scmp.eq.s32.totalorder %s22, 3
    %p322 = por %p320, %p321
    %p323 = scmp.ne.s32.totalorder %s312, %s313
    %p324 = scmp.eq.s32.totalorder %s22, 0
    %p325 = por %p323, %p324
    %p326 = scmp.ne.s32.totalorder %s312, %s313
    %p327 = scmp.eq.s32.totalorder %s23, 3
    %p328 = por %p326, %p327
    %p330 = scmp.ne.s32.totalorder %s313, %s329
    %p331 = scmp.eq.s32.totalorder %s23, 0
    %p332 = por %p330, %p331
    %p333 = scmp.le.s32.totalorder 1, %s17
    %p334 = scmp.lt.s32.totalorder %s17, 5
    %p335 = pnand %p333, %p334
    %p336 = pneg %p335
    // Predicated region
    $region9: #{bottleneck_forward.1} parent=5 // pred_check
      _
    $region10: #{bottleneck_forward.1} parent=5 // pred_check_branch
      %338 = sbr.rel (%p335) target = $region12
    $region11: #{bottleneck_forward.1} parent=5 // pred_region
      %s339 = ssub.s32 %s17, 1
      // Predicated region
      $region13: #{bottleneck_forward.1} parent=11 // pred_check
        %p340 = pneg %p150
      $region14: #{bottleneck_forward.1} parent=11 // pred_check_branch
        %342 = sbr.rel (%p340) target = $region16
      $region15: #{bottleneck_forward.1} parent=11 // pred_region
        _
      $region16: #{bottleneck_forward.1} parent=11 // pred_fallthru
        _
      // Predicated region
      $region17: #{bottleneck_forward.1} parent=11 // pred_check
        %p343 = pneg %p171
      $region18: #{bottleneck_forward.1} parent=11 // pred_check_branch
        %345 = sbr.rel (%p343) target = $region20
      $region19: #{bottleneck_forward.1} parent=11 // pred_region
        _
      $region20: #{bottleneck_forward.1} parent=11 // pred_fallthru
        _
      // Predicated region
      $region21: #{bottleneck_forward.1} parent=11 // pred_check
        %p346 = pneg %p192
      $region22: #{bottleneck_forward.1} parent=11 // pred_check_branch
        %348 = sbr.rel (%p346) target = $region24
      $region23: #{bottleneck_forward.1} parent=11 // pred_region
        _
      $region24: #{bottleneck_forward.1} parent=11 // pred_fallthru
        _
      // Predicated region
      $region25: #{bottleneck_forward.1} parent=11 // pred_check
        %p349 = pneg %p213
      $region26: #{bottleneck_forward.1} parent=11 // pred_check_branch
        %351 = sbr.rel (%p349) target = $region28
      $region27: #{bottleneck_forward.1} parent=11 // pred_region
        _
      $region28: #{bottleneck_forward.1} parent=11 // pred_fallthru
        _
      // Predicated region
      $region29: #{bottleneck_forward.1} parent=11 // pred_check
        %p352 = pneg %p234
      $region30: #{bottleneck_forward.1} parent=11 // pred_check_branch
        %354 = sbr.rel (%p352) target = $region32
      $region31: #{bottleneck_forward.1} parent=11 // pred_region
        _
      $region32: #{bottleneck_forward.1} parent=11 // pred_fallthru
        _
      // Predicated region
      $region33: #{bottleneck_forward.1} parent=11 // pred_check
        %p355 = pneg %p255
      $region34: #{bottleneck_forward.1} parent=11 // pred_check_branch
        %357 = sbr.rel (%p355) target = $region36
      $region35: #{bottleneck_forward.1} parent=11 // pred_region
        _
      $region36: #{bottleneck_forward.1} parent=11 // pred_fallthru
        _
      // Predicated region
      $region37: #{bottleneck_forward.1} parent=11 // pred_check
        %p358 = pneg %p276
      $region38: #{bottleneck_forward.1} parent=11 // pred_check_branch
        %360 = sbr.rel (%p358) target = $region40
      $region39: #{bottleneck_forward.1} parent=11 // pred_region
        _
      $region40: #{bottleneck_forward.1} parent=11 // pred_fallthru
        _
      // Predicated region
      $region41: #{bottleneck_forward.1} parent=11 // pred_check
        %p361 = pneg %p297
      $region42: #{bottleneck_forward.1} parent=11 // pred_check_branch
        %363 = sbr.rel (%p361) target = $region44
      $region43: #{bottleneck_forward.1} parent=11 // pred_region
        _
      $region44: #{bottleneck_forward.1} parent=11 // pred_fallthru
        _
    $region12: #{bottleneck_forward.1} parent=5 // pred_fallthru
      _
    %p364 = scmp.lt.s32.totalorder %s17, 4
    // Predicated region
    $region45: #{bottleneck_forward.1} parent=5 // pred_check
      %p365 = pneg %p364
    $region46: #{bottleneck_forward.1} parent=5 // pred_check_branch
      %367 = sbr.rel (%p365) target = $region48
    $region47: #{bottleneck_forward.1} parent=5 // pred_region
      // Predicated region
      $region49: #{bottleneck_forward.1} parent=47 // pred_check
        %p368 = pneg %p51
      $region50: #{bottleneck_forward.1} parent=47 // pred_check_branch
        %370 = sbr.rel (%p368) target = $region52
      $region51: #{bottleneck_forward.1} parent=47 // pred_region
        %s371 = smul.u32 16, %s25
        %p372 = scmp.lt.s32.totalorder %s24, 1
        %s373 = scalar_select %p372, %s24, 1
        %p374 = scmp.lt.s32.totalorder %s371, 31
        %s375 = scalar_select %p374, %s371, 31
        %s376 = smul.addr %s373, 32
        %s377 = sadd.s32 %s375, %s376
        %s378 = smul.addr %s377, 8
        %s379 = scalar_lea.vmem %s0, %s378
        %s380 = smul.u32 16, %s25
      $region52: #{bottleneck_forward.1} parent=47 // pred_fallthru
        _
      // Predicated region
      $region53: #{bottleneck_forward.1} parent=47 // pred_check
        %p381 = pneg %p87
      $region54: #{bottleneck_forward.1} parent=47 // pred_check_branch
        %383 = sbr.rel (%p381) target = $region56
      $region55: #{bottleneck_forward.1} parent=47 // pred_region
        %s384 = smul.u32 %s25, 8
        %s385 = ssub.s32 %s384, 1
        %p386 = scmp.gt.s32.totalorder %s385, 0
        %s387 = scalar_select %p386, %s385, 0
        %p388 = scmp.lt.s32.totalorder %s24, 1
        %s389 = scalar_select %p388, %s24, 1
        %p390 = scmp.lt.s32.totalorder %s387, 15
        %s391 = scalar_select %p390, %s387, 15
        %s392 = smul.addr %s391, 2
        %s393 = smul.addr %s389, 32
        %s394 = sadd.s32 %s392, %s393
        %s395 = smul.addr %s394, 8
        %s396 = scalar_lea.vmem %s1, %s395
        %s397 = smul.u32 %s25, 8
        %s398 = ssub.s32 %s397, 1
        %p399 = scmp.gt.s32.totalorder %s398, 0
        %s400 = scalar_select %p399, %s398, 0
      $region56: #{bottleneck_forward.1} parent=47 // pred_fallthru
        _
      // Predicated region
      $region57: #{bottleneck_forward.1} parent=47 // pred_check
        %p401 = pneg %p123
      $region58: #{bottleneck_forward.1} parent=47 // pred_check_branch
        %403 = sbr.rel (%p401) target = $region60
      $region59: #{bottleneck_forward.1} parent=47 // pred_region
        %s404 = smul.u32 %s25, 8
        %s405 = sadd.s32 %s404, 8
        %p406 = scmp.lt.s32.totalorder %s405, 15
        %s407 = scalar_select %p406, %s405, 15
        %p408 = scmp.lt.s32.totalorder %s24, 1
        %s409 = scalar_select %p408, %s24, 1
        %p410 = scmp.lt.s32.totalorder %s407, 15
        %s411 = scalar_select %p410, %s407, 15
        %s412 = smul.addr %s411, 2
        %s413 = smul.addr %s409, 32
        %s414 = sadd.s32 %s412, %s413
        %s415 = smul.addr %s414, 8
        %s416 = scalar_lea.vmem %s2, %s415
        %s417 = smul.u32 %s25, 8
        %s418 = sadd.s32 %s417, 8
        %p419 = scmp.lt.s32.totalorder %s418, 15
        %s420 = scalar_select %p419, %s418, 15
      $region60: #{bottleneck_forward.1} parent=47 // pred_fallthru
        _
    $region48: #{bottleneck_forward.1} parent=5 // pred_fallthru
      _
    %p421 = scmp.le.s32.totalorder 1, %s17
    %p422 = scmp.lt.s32.totalorder %s17, 5
    %p423 = pnand %p421, %p422
    %p424 = pneg %p423
    // Predicated region
    $region61: #{bottleneck_forward.1} parent=5 // pred_check
      _
    $region62: #{bottleneck_forward.1} parent=5 // pred_check_branch
      %426 = sbr.rel (%p423) target = $region64
    $region63: #{bottleneck_forward.1} parent=5 // pred_region
      %s427 = ssub.s32 %s17, 1
      %s428 = smul.u32 16, %s27
      %p429 = scmp.lt.s32.totalorder %s26, 1
      %s430 = scalar_select %p429, %s26, 1
      %p431 = scmp.lt.s32.totalorder %s428, 31
      %s432 = scalar_select %p431, %s428, 31
      %s433 = smul.addr %s430, 32
      %s434 = sadd.s32 %s432, %s433
      %s435 = smul.addr %s434, 8
      %s436 = scalar_lea.vmem %s0, %s435
      %p437 = pneg %p57
      %p438 = pneg %p54
      %s439 = smul.u32 %s27, 8
      %s440 = ssub.s32 %s439, 1
      %p441 = scmp.gt.s32.totalorder %s440, 0
      %s442 = scalar_select %p441, %s440, 0
      %p443 = scmp.lt.s32.totalorder %s26, 1
      %s444 = scalar_select %p443, %s26, 1
      %p445 = scmp.lt.s32.totalorder %s442, 15
      %s446 = scalar_select %p445, %s442, 15
      %s447 = smul.addr %s446, 2
      %s448 = smul.addr %s444, 32
      %s449 = sadd.s32 %s447, %s448
      %s450 = smul.addr %s449, 8
      %s451 = scalar_lea.vmem %s1, %s450
      %p452 = pneg %p93
      %p453 = pneg %p90
      %s454 = smul.u32 %s27, 8
      %s455 = sadd.s32 %s454, 8
      %p456 = scmp.lt.s32.totalorder %s455, 15
      %s457 = scalar_select %p456, %s455, 15
      %p458 = scmp.lt.s32.totalorder %s26, 1
      %s459 = scalar_select %p458, %s26, 1
      %p460 = scmp.lt.s32.totalorder %s457, 15
      %s461 = scalar_select %p460, %s457, 15
      %s462 = smul.addr %s461, 2
      %s463 = smul.addr %s459, 32
      %s464 = sadd.s32 %s462, %s463
      %s465 = smul.addr %s464, 8
      %s466 = scalar_lea.vmem %s2, %s465
      %p467 = pneg %p129
      %p468 = pneg %p126
      %p469 = pneg %p150
      %p470 = pneg %p147
      %p471 = pneg %p171
      %p472 = pneg %p168
      %p473 = pneg %p192
      %p474 = pneg %p189
      %p475 = pneg %p213
      %p476 = pneg %p210
      %p477 = pneg %p234
      %p478 = pneg %p231
      %p479 = pneg %p255
      %p480 = pneg %p252
      %p481 = pneg %p276
      %p482 = pneg %p273
      %p483 = pneg %p297
      %p484 = pneg %p294
      %p485 = pneg %p325
      %p486 = pneg %p322
      %s487 = smul.u32 16, %s27
      %p488 = scmp.lt.s32.totalorder %s26, 1
      %s489 = scalar_select %p488, %s26, 1
      %p490 = scmp.lt.s32.totalorder %s487, 31
      %s491 = scalar_select %p490, %s487, 31
      %s492 = smul.addr %s489, 32
      %s493 = sadd.s32 %s491, %s492
      %s494 = smul.addr %s493, 8
      %s495 = scalar_lea.vmem %s11, %s494
      %s496 = smul.u32 16, %s27
      %p497 = scmp.lt.s32.totalorder %s26, 1
      %s498 = scalar_select %p497, %s26, 1
      %p499 = scmp.lt.s32.totalorder %s496, 31
      %s500 = scalar_select %p499, %s496, 31
      %s501 = smul.addr %s498, 32
      %s502 = sadd.s32 %s500, %s501
      %s503 = smul.addr %s502, 8
      %s504 = scalar_lea.vmem %s0, %s503
      %s505 = smul.u32 16, %s27
      %s506 = smul.u32 %s27, 8
      %s507 = ssub.s32 %s506, 1
      %p508 = scmp.gt.s32.totalorder %s507, 0
      %s509 = scalar_select %p508, %s507, 0
      %p510 = scmp.lt.s32.totalorder %s26, 1
      %s511 = scalar_select %p510, %s26, 1
      %p512 = scmp.lt.s32.totalorder %s509, 15
      %s513 = scalar_select %p512, %s509, 15
      %s514 = smul.addr %s513, 2
      %s515 = smul.addr %s511, 32
      %s516 = sadd.s32 %s514, %s515
      %s517 = smul.addr %s516, 8
      %s518 = scalar_lea.vmem %s1, %s517
      %s519 = smul.u32 %s27, 8
      %s520 = ssub.s32 %s519, 1
      %p521 = scmp.gt.s32.totalorder %s520, 0
      %s522 = scalar_select %p521, %s520, 0
      %s523 = smul.u32 %s27, 8
      %s524 = sadd.s32 %s523, 8
      %p525 = scmp.lt.s32.totalorder %s524, 15
      %s526 = scalar_select %p525, %s524, 15
      %p527 = scmp.lt.s32.totalorder %s26, 1
      %s528 = scalar_select %p527, %s26, 1
      %p529 = scmp.lt.s32.totalorder %s526, 15
      %s530 = scalar_select %p529, %s526, 15
      %s531 = smul.addr %s530, 2
      %s532 = smul.addr %s528, 32
      %s533 = sadd.s32 %s531, %s532
      %s534 = smul.addr %s533, 8
      %s535 = scalar_lea.vmem %s2, %s534
      %s536 = smul.u32 %s27, 8
      %s537 = sadd.s32 %s536, 8
      %p538 = scmp.lt.s32.totalorder %s537, 15
      %s539 = scalar_select %p538, %s537, 15
      %s540 = smul.u32 16, %s27
      %p541 = scmp.lt.s32.totalorder %s26, 1
      %s542 = scalar_select %p541, %s26, 1
      %p543 = scmp.lt.s32.totalorder %s540, 31
      %s544 = scalar_select %p543, %s540, 31
      %s545 = smul.addr %s542, 32
      %s546 = sadd.s32 %s544, %s545
      %s547 = smul.addr %s546, 8
      %s548 = scalar_lea.vmem %s11, %s547
      %s549 = smul.u32 16, %s27
      %v551 = vld [vmem:[%s5] sm:$0xf]
      %v552 = vld [vmem:[%s5 + $0x4] sm:$0xf]
      %v553 = vld [vmem:[%s5 + $0x8] sm:$0xf]
      %v554 = vld [vmem:[%s5 + $0xc] sm:$0xf]
      %v555 = vld [vmem:[%s5 + $0x10] sm:$0xf]
      %v556 = vld [vmem:[%s5 + $0x14] sm:$0xf]
      %v557 = vld [vmem:[%s5 + $0x18] sm:$0xf]
      %v558 = vld [vmem:[%s5 + $0x1c] sm:$0xf]
      %v559 = vld [vmem:[%s5 + $0x20] sm:$0xf]
      %v560 = vld [vmem:[%s5 + $0x24] sm:$0xf]
      %v561 = vld [vmem:[%s5 + $0x28] sm:$0xf]
      %v562 = vld [vmem:[%s5 + $0x2c] sm:$0xf]
      %v563 = vld [vmem:[%s5 + $0x30] sm:$0xf]
      %v564 = vld [vmem:[%s5 + $0x34] sm:$0xf]
      %v565 = vld [vmem:[%s5 + $0x38] sm:$0xf]
      %v566 = vld [vmem:[%s5 + $0x3c] sm:$0xf]
      %v567 = vld [vmem:[%s7] sm:$0x1]
      %v568 = vld [vmem:[%s8] sm:$0x1]
      %v569 = vld [vmem:[%s504] sm:$0xff]
      %v570 = vld [vmem:[%s504 + $0x8] sm:$0xff]
      %v571 = vld [vmem:[%s504 + $0x10] sm:$0xff]
      %v572 = vld [vmem:[%s504 + $0x18] sm:$0xff]
      %v573 = vld [vmem:[%s504 + $0x20] sm:$0xff]
      %v574 = vld [vmem:[%s504 + $0x28] sm:$0xff]
      %v575 = vld [vmem:[%s504 + $0x30] sm:$0xff]
      %v576 = vld [vmem:[%s504 + $0x38] sm:$0xff]
      %v577 = vld [vmem:[%s504 + $0x40] sm:$0xff]
      %v578 = vld [vmem:[%s504 + $0x48] sm:$0xff]
      %v579 = vld [vmem:[%s504 + $0x50] sm:$0xff]
      %v580 = vld [vmem:[%s504 + $0x58] sm:$0xff]
      %v581 = vld [vmem:[%s504 + $0x60] sm:$0xff]
      %v582 = vld [vmem:[%s504 + $0x68] sm:$0xff]
      %v583 = vld [vmem:[%s504 + $0x70] sm:$0xff]
      %v584 = vld [vmem:[%s504 + $0x78] sm:$0xff]
      %v585 = vpack.c.bf16 %v570, %v569
      %v586 = vpack.c.bf16 %v572, %v571
      %v587 = vpack.c.bf16 %v574, %v573
      %v588 = vpack.c.bf16 %v576, %v575
      %v589 = vpack.c.bf16 %v578, %v577
      %v590 = vpack.c.bf16 %v580, %v579
      %v591 = vpack.c.bf16 %v582, %v581
      %v592 = vpack.c.bf16 %v584, %v583
      %v609 = vunpack.c.l.b16 %v551
      %v610 = vunpack.c.l.b16 %v552
      %v611 = vunpack.c.l.b16 %v553
      %v612 = vunpack.c.l.b16 %v554
      %v613 = vunpack.c.l.b16 %v555
      %v614 = vunpack.c.l.b16 %v556
      %v615 = vunpack.c.l.b16 %v557
      %v616 = vunpack.c.l.b16 %v558
      %v617 = vunpack.c.l.b16 %v559
      %v618 = vunpack.c.l.b16 %v560
      %v619 = vunpack.c.l.b16 %v561
      %v620 = vunpack.c.l.b16 %v562
      %v621 = vunpack.c.l.b16 %v563
      %v622 = vunpack.c.l.b16 %v564
      %v623 = vunpack.c.l.b16 %v565
      %v624 = vunpack.c.l.b16 %v566
      %v625 = vpack.c.b16 %v610, %v609
      %v626 = vpack.c.b16 %v612, %v611
      %v627 = vpack.c.b16 %v614, %v613
      %v628 = vpack.c.b16 %v616, %v615
      %v629 = vpack.c.b16 %v618, %v617
      %v630 = vpack.c.b16 %v620, %v619
      %v631 = vpack.c.b16 %v622, %v621
      %v632 = vpack.c.b16 %v624, %v623
      %641 = vmatprep.subr.bf16.mxu0 0
      %642 = vmatpush1.bf16.msra.mxu0 %v625
      %643 = vmatprep.subr.bf16.mxu0 0
      %644 = vmatpush1.bf16.msra.mxu0 %v626
      %645 = vmatprep.subr.bf16.mxu0 0
      %646 = vmatpush1.bf16.msra.mxu0 %v627
      %647 = vmatprep.subr.bf16.mxu0 0
      %648 = vmatpush1.bf16.msra.mxu0 %v628
      %649 = vmatprep.subr.bf16.mxu0 0
      %650 = vmatpush1.bf16.msra.mxu0 %v629
      %651 = vmatprep.subr.bf16.mxu0 0
      %652 = vmatpush1.bf16.msra.mxu0 %v630
      %653 = vmatprep.subr.bf16.mxu0 0
      %654 = vmatpush1.bf16.msra.mxu0 %v631
      %655 = vmatprep.subr.bf16.mxu0 0
      %656 = vmatpush1.bf16.msra.mxu0 %v632
      %657 = vmatprep.subr.bf16.mxu0 0
      %658 = vmatpush1.bf16.msra.mxu0 0
      %659 = vmatprep.subr.bf16.mxu0 0
      %660 = vmatpush1.bf16.msra.mxu0 0
      %661 = vmatprep.subr.bf16.mxu0 0
      %662 = vmatpush1.bf16.msra.mxu0 0
      %663 = vmatprep.subr.bf16.mxu0 0
      %664 = vmatpush1.bf16.msra.mxu0 0
      %665 = vmatprep.subr.bf16.mxu0 0
      %666 = vmatpush1.bf16.msra.mxu0 0
      %667 = vmatprep.subr.bf16.mxu0 0
      %668 = vmatpush1.bf16.msra.mxu0 0
      %669 = vmatprep.subr.bf16.mxu0 0
      %670 = vmatpush1.bf16.msra.mxu0 0
      %671 = vmatprep.subr.bf16.mxu0 0
      %672 = vmatpush1.bf16.msra.mxu0 0
      %673 = vmatprep.mubr.bf16.mxu0 0
      %674 = vmatmul.mubr.bf16.gmra.mrb[0].mxu0 %v585
      %v675 = vpop.f32.mrb[0].mxu0
      %v676 = vadd.f32 0.0, %v675
      %v677 = vpop.f32.mrb[0].mxu0
      %v678 = vpop.f32.mrb[0].mxu0
      %v679 = vadd.f32 0.0, %v678
      %v680 = vpop.f32.mrb[0].mxu0
      %681 = vmatprep.mubr.bf16.mxu0 0
      %682 = vmatmul.mubr.bf16.gmra.mrb[0].mxu0 %v586
      %v683 = vpop.f32.mrb[0].mxu0
      %v684 = vadd.f32 0.0, %v683
      %v685 = vpop.f32.mrb[0].mxu0
      %v686 = vpop.f32.mrb[0].mxu0
      %v687 = vadd.f32 0.0, %v686
      %v688 = vpop.f32.mrb[0].mxu0
      %689 = vmatprep.mubr.bf16.mxu0 0
      %690 = vmatmul.mubr.bf16.gmra.mrb[0].mxu0 %v587
      %v691 = vpop.f32.mrb[0].mxu0
      %v692 = vadd.f32 0.0, %v691
      %v693 = vpop.f32.mrb[0].mxu0
      %v694 = vpop.f32.mrb[0].mxu0
      %v695 = vadd.f32 0.0, %v694
      %v696 = vpop.f32.mrb[0].mxu0
      %697 = vmatprep.mubr.bf16.mxu0 0
      %698 = vmatmul.mubr.bf16.gmra.mrb[0].mxu0 %v588
      %v699 = vpop.f32.mrb[0].mxu0
      %v700 = vadd.f32 0.0, %v699
      %v701 = vpop.f32.mrb[0].mxu0
      %v702 = vpop.f32.mrb[0].mxu0
      %v703 = vadd.f32 0.0, %v702
      %v704 = vpop.f32.mrb[0].mxu0
      %705 = vmatprep.mubr.bf16.mxu0 0
      %706 = vmatmul.mubr.bf16.gmra.mrb[0].mxu0 %v589
      %v707 = vpop.f32.mrb[0].mxu0
      %v708 = vadd.f32 0.0, %v707
      %v709 = vpop.f32.mrb[0].mxu0
      %v710 = vpop.f32.mrb[0].mxu0
      %v711 = vadd.f32 0.0, %v710
      %v712 = vpop.f32.mrb[0].mxu0
      %713 = vmatprep.mubr.bf16.mxu0 0
      %714 = vmatmul.mubr.bf16.gmra.mrb[0].mxu0 %v590
      %v715 = vpop.f32.mrb[0].mxu0
      %v716 = vadd.f32 0.0, %v715
      %v717 = vpop.f32.mrb[0].mxu0
      %v718 = vpop.f32.mrb[0].mxu0
      %v719 = vadd.f32 0.0, %v718
      %v720 = vpop.f32.mrb[0].mxu0
      %721 = vmatprep.mubr.bf16.mxu0 0
      %722 = vmatmul.mubr.bf16.gmra.mrb[0].mxu0 %v591
      %v723 = vpop.f32.mrb[0].mxu0
      %v724 = vadd.f32 0.0, %v723
      %v725 = vpop.f32.mrb[0].mxu0
      %v726 = vpop.f32.mrb[0].mxu0
      %v727 = vadd.f32 0.0, %v726
      %v728 = vpop.f32.mrb[0].mxu0
      %729 = vmatprep.mubr.bf16.mxu0 0
      %730 = vmatmul.mubr.bf16.gmra.mrb[0].mxu0 %v592
      %v731 = vpop.f32.mrb[0].mxu0
      %v732 = vadd.f32 0.0, %v731
      %v733 = vpop.f32.mrb[0].mxu0
      %v734 = vpop.f32.mrb[0].mxu0
      %v735 = vadd.f32 0.0, %v734
      %v736 = vpop.f32.mrb[0].mxu0
      %737 = vdwg.mxu0
      %v739 = vlaneseq
      %v740 = vshrl.u32 %v739, 7
      %v741 = vsub.s32 0, %v740
      %v742 = vrot.slane %v567, %v741
      %v744 = vmul.f32 %v676, %v742
      %v745 = vmul.f32 %v679, %v742
      %v746 = vmul.f32 %v684, %v742
      %v747 = vmul.f32 %v687, %v742
      %v748 = vmul.f32 %v692, %v742
      %v749 = vmul.f32 %v695, %v742
      %v750 = vmul.f32 %v700, %v742
      %v751 = vmul.f32 %v703, %v742
      %v752 = vmul.f32 %v708, %v742
      %v753 = vmul.f32 %v711, %v742
      %v754 = vmul.f32 %v716, %v742
      %v755 = vmul.f32 %v719, %v742
      %v756 = vmul.f32 %v724, %v742
      %v757 = vmul.f32 %v727, %v742
      %v758 = vmul.f32 %v732, %v742
      %v759 = vmul.f32 %v735, %v742
      %v761 = vlaneseq
      %v762 = vshrl.u32 %v761, 7
      %v763 = vsub.s32 0, %v762
      %v764 = vrot.slane %v568, %v763
      %v766 = vadd.f32 %v744, %v764
      %v767 = vadd.f32 %v745, %v764
      %v768 = vadd.f32 %v746, %v764
      %v769 = vadd.f32 %v747, %v764
      %v770 = vadd.f32 %v748, %v764
      %v771 = vadd.f32 %v749, %v764
      %v772 = vadd.f32 %v750, %v764
      %v773 = vadd.f32 %v751, %v764
      %v774 = vadd.f32 %v752, %v764
      %v775 = vadd.f32 %v753, %v764
      %v776 = vadd.f32 %v754, %v764
      %v777 = vadd.f32 %v755, %v764
      %v778 = vadd.f32 %v756, %v764
      %v779 = vadd.f32 %v757, %v764
      %v780 = vadd.f32 %v758, %v764
      %v781 = vadd.f32 %v759, %v764
      %v782 = vxor.u32 %v766, 2147483648
      %v783 = vxor.u32 %v767, 2147483648
      %v784 = vxor.u32 %v768, 2147483648
      %v785 = vxor.u32 %v769, 2147483648
      %v786 = vxor.u32 %v770, 2147483648
      %v787 = vxor.u32 %v771, 2147483648
      %v788 = vxor.u32 %v772, 2147483648
      %v789 = vxor.u32 %v773, 2147483648
      %v790 = vxor.u32 %v774, 2147483648
      %v791 = vxor.u32 %v775, 2147483648
      %v792 = vxor.u32 %v776, 2147483648
      %v793 = vxor.u32 %v777, 2147483648
      %v794 = vxor.u32 %v778, 2147483648
      %v795 = vxor.u32 %v779, 2147483648
      %v796 = vxor.u32 %v780, 2147483648
      %v797 = vxor.u32 %v781, 2147483648
      %v798 = vmul.f32 %v782, 1.442695
      %v799 = vpow.pop %v798
      %v800 = vmul.f32 %v783, 1.442695
      %v801 = vpow.pop %v800
      %v802 = vmul.f32 %v784, 1.442695
      %v803 = vpow.pop %v802
      %v804 = vmul.f32 %v785, 1.442695
      %v805 = vpow.pop %v804
      %v806 = vmul.f32 %v786, 1.442695
      %v807 = vpow.pop %v806
      %v808 = vmul.f32 %v787, 1.442695
      %v809 = vpow.pop %v808
      %v810 = vmul.f32 %v788, 1.442695
      %v811 = vpow.pop %v810
      %v812 = vmul.f32 %v789, 1.442695
      %v813 = vpow.pop %v812
      %v814 = vmul.f32 %v790, 1.442695
      %v815 = vpow.pop %v814
      %v816 = vmul.f32 %v791, 1.442695
      %v817 = vpow.pop %v816
      %v818 = vmul.f32 %v792, 1.442695
      %v819 = vpow.pop %v818
      %v820 = vmul.f32 %v793, 1.442695
      %v821 = vpow.pop %v820
      %v822 = vmul.f32 %v794, 1.442695
      %v823 = vpow.pop %v822
      %v824 = vmul.f32 %v795, 1.442695
      %v825 = vpow.pop %v824
      %v826 = vmul.f32 %v796, 1.442695
      %v827 = vpow.pop %v826
      %v828 = vmul.f32 %v797, 1.442695
      %v829 = vpow.pop %v828
      %v830 = vadd.f32 %v799, 1.0
      %v831 = vadd.f32 %v801, 1.0
      %v832 = vadd.f32 %v803, 1.0
      %v833 = vadd.f32 %v805, 1.0
      %v834 = vadd.f32 %v807, 1.0
      %v835 = vadd.f32 %v809, 1.0
      %v836 = vadd.f32 %v811, 1.0
      %v837 = vadd.f32 %v813, 1.0
      %v838 = vadd.f32 %v815, 1.0
      %v839 = vadd.f32 %v817, 1.0
      %v840 = vadd.f32 %v819, 1.0
      %v841 = vadd.f32 %v821, 1.0
      %v842 = vadd.f32 %v823, 1.0
      %v843 = vadd.f32 %v825, 1.0
      %v844 = vadd.f32 %v827, 1.0
      %v845 = vadd.f32 %v829, 1.0
      %v846 = vrcp.pop %v830
      %v847 = vmul.f32 1.0, %v846
      %v848 = vrcp.pop %v831
      %v849 = vmul.f32 1.0, %v848
      %v850 = vrcp.pop %v832
      %v851 = vmul.f32 1.0, %v850
      %v852 = vrcp.pop %v833
      %v853 = vmul.f32 1.0, %v852
      %v854 = vrcp.pop %v834
      %v855 = vmul.f32 1.0, %v854
      %v856 = vrcp.pop %v835
      %v857 = vmul.f32 1.0, %v856
      %v858 = vrcp.pop %v836
      %v859 = vmul.f32 1.0, %v858
      %v860 = vrcp.pop %v837
      %v861 = vmul.f32 1.0, %v860
      %v862 = vrcp.pop %v838
      %v863 = vmul.f32 1.0, %v862
      %v864 = vrcp.pop %v839
      %v865 = vmul.f32 1.0, %v864
      %v866 = vrcp.pop %v840
      %v867 = vmul.f32 1.0, %v866
      %v868 = vrcp.pop %v841
      %v869 = vmul.f32 1.0, %v868
      %v870 = vrcp.pop %v842
      %v871 = vmul.f32 1.0, %v870
      %v872 = vrcp.pop %v843
      %v873 = vmul.f32 1.0, %v872
      %v874 = vrcp.pop %v844
      %v875 = vmul.f32 1.0, %v874
      %v876 = vrcp.pop %v845
      %v877 = vmul.f32 1.0, %v876
      %v878 = vmul.f32 %v766, %v847
      %v879 = vmul.f32 %v767, %v849
      %v880 = vmul.f32 %v768, %v851
      %v881 = vmul.f32 %v769, %v853
      %v882 = vmul.f32 %v770, %v855
      %v883 = vmul.f32 %v771, %v857
      %v884 = vmul.f32 %v772, %v859
      %v885 = vmul.f32 %v773, %v861
      %v886 = vmul.f32 %v774, %v863
      %v887 = vmul.f32 %v775, %v865
      %v888 = vmul.f32 %v776, %v867
      %v889 = vmul.f32 %v777, %v869
      %v890 = vmul.f32 %v778, %v871
      %v891 = vmul.f32 %v779, %v873
      %v892 = vmul.f32 %v780, %v875
      %v893 = vmul.f32 %v781, %v877
      %v894 = vld [vmem:[%s518] sm:$0xff]
      %v895 = vld [vmem:[%s518 + $0x8] sm:$0xff]
      %v896 = vpack.c.bf16 %v895, %v894
      %897 = vmatprep.subr.bf16.mxu0 0
      %898 = vmatpush1.bf16.msra.mxu0 %v625
      %899 = vmatprep.subr.bf16.mxu0 0
      %900 = vmatpush1.bf16.msra.mxu0 %v626
      %901 = vmatprep.subr.bf16.mxu0 0
      %902 = vmatpush1.bf16.msra.mxu0 %v627
      %903 = vmatprep.subr.bf16.mxu0 0
      %904 = vmatpush1.bf16.msra.mxu0 %v628
      %905 = vmatprep.subr.bf16.mxu0 0
      %906 = vmatpush1.bf16.msra.mxu0 %v629
      %907 = vmatprep.subr.bf16.mxu0 0
      %908 = vmatpush1.bf16.msra.mxu0 %v630
      %909 = vmatprep.subr.bf16.mxu0 0
      %910 = vmatpush1.bf16.msra.mxu0 %v631
      %911 = vmatprep.subr.bf16.mxu0 0
      %912 = vmatpush1.bf16.msra.mxu0 %v632
      %913 = vmatprep.subr.bf16.mxu0 0
      %914 = vmatpush1.bf16.msra.mxu0 0
      %915 = vmatprep.subr.bf16.mxu0 0
      %916 = vmatpush1.bf16.msra.mxu0 0
      %917 = vmatprep.subr.bf16.mxu0 0
      %918 = vmatpush1.bf16.msra.mxu0 0
      %919 = vmatprep.subr.bf16.mxu0 0
      %920 = vmatpush1.bf16.msra.mxu0 0
      %921 = vmatprep.subr.bf16.mxu0 0
      %922 = vmatpush1.bf16.msra.mxu0 0
      %923 = vmatprep.subr.bf16.mxu0 0
      %924 = vmatpush1.bf16.msra.mxu0 0
      %925 = vmatprep.subr.bf16.mxu0 0
      %926 = vmatpush1.bf16.msra.mxu0 0
      %927 = vmatprep.subr.bf16.mxu0 0
      %928 = vmatpush1.bf16.msra.mxu0 0
      %929 = vmatprep.mubr.bf16.mxu0 0
      %930 = vmatmul.mubr.bf16.gmra.mrb[0].mxu0 %v896
      %v931 = vpop.f32.mrb[0].mxu0
      %v932 = vadd.f32 0.0, %v931
      %v933 = vpop.f32.mrb[0].mxu0
      %v934 = vpop.f32.mrb[0].mxu0
      %v935 = vadd.f32 0.0, %v934
      %v936 = vpop.f32.mrb[0].mxu0
      %937 = vdwg.mxu0
      %v938 = vmul.f32 %v932, %v742
      %v939 = vmul.f32 %v935, %v742
      %v940 = vadd.f32 %v938, %v764
      %v941 = vadd.f32 %v939, %v764
      %v942 = vxor.u32 %v940, 2147483648
      %v943 = vxor.u32 %v941, 2147483648
      %v944 = vmul.f32 %v942, 1.442695
      %v945 = vpow.pop %v944
      %v946 = vmul.f32 %v943, 1.442695
      %v947 = vpow.pop %v946
      %v948 = vadd.f32 %v945, 1.0
      %v949 = vadd.f32 %v947, 1.0
      %v950 = vrcp.pop %v948
      %v951 = vmul.f32 1.0, %v950
      %v952 = vrcp.pop %v949
      %v953 = vmul.f32 1.0, %v952
      %v954 = vmul.f32 %v940, %v951
      %v955 = vmul.f32 %v941, %v953
      %v956 = vld [vmem:[%s535] sm:$0xff]
      %v957 = vld [vmem:[%s535 + $0x8] sm:$0xff]
      %v958 = vpack.c.bf16 %v957, %v956
      %959 = vmatprep.subr.bf16.mxu0 0
      %960 = vmatpush1.bf16.msra.mxu0 %v625
      %961 = vmatprep.subr.bf16.mxu0 0
      %962 = vmatpush1.bf16.msra.mxu0 %v626
      %963 = vmatprep.subr.bf16.mxu0 0
      %964 = vmatpush1.bf16.msra.mxu0 %v627
      %965 = vmatprep.subr.bf16.mxu0 0
      %966 = vmatpush1.bf16.msra.mxu0 %v628
      %967 = vmatprep.subr.bf16.mxu0 0
      %968 = vmatpush1.bf16.msra.mxu0 %v629
      %969 = vmatprep.subr.bf16.mxu0 0
      %970 = vmatpush1.bf16.msra.mxu0 %v630
      %971 = vmatprep.subr.bf16.mxu0 0
      %972 = vmatpush1.bf16.msra.mxu0 %v631
      %973 = vmatprep.subr.bf16.mxu0 0
      %974 = vmatpush1.bf16.msra.mxu0 %v632
      %975 = vmatprep.subr.bf16.mxu0 0
      %976 = vmatpush1.bf16.msra.mxu0 0
      %977 = vmatprep.subr.bf16.mxu0 0
      %978 = vmatpush1.bf16.msra.mxu0 0
      %979 = vmatprep.subr.bf16.mxu0 0
      %980 = vmatpush1.bf16.msra.mxu0 0
      %981 = vmatprep.subr.bf16.mxu0 0
      %982 = vmatpush1.bf16.msra.mxu0 0
      %983 = vmatprep.subr.bf16.mxu0 0
      %984 = vmatpush1.bf16.msra.mxu0 0
      %985 = vmatprep.subr.bf16.mxu0 0
      %986 = vmatpush1.bf16.msra.mxu0 0
      %987 = vmatprep.subr.bf16.mxu0 0
      %988 = vmatpush1.bf16.msra.mxu0 0
      %989 = vmatprep.subr.bf16.mxu0 0
      %990 = vmatpush1.bf16.msra.mxu0 0
      %991 = vmatprep.mubr.bf16.mxu0 0
      %992 = vmatmul.mubr.bf16.gmra.mrb[0].mxu0 %v958
      %v993 = vpop.f32.mrb[0].mxu0
      %v994 = vadd.f32 0.0, %v993
      %v995 = vpop.f32.mrb[0].mxu0
      %v996 = vpop.f32.mrb[0].mxu0
      %v997 = vadd.f32 0.0, %v996
      %v998 = vpop.f32.mrb[0].mxu0
      %999 = vdwg.mxu0
      %v1000 = vmul.f32 %v994, %v742
      %v1001 = vmul.f32 %v997, %v742
      %v1002 = vadd.f32 %v1000, %v764
      %v1003 = vadd.f32 %v1001, %v764
      %v1004 = vxor.u32 %v1002, 2147483648
      %v1005 = vxor.u32 %v1003, 2147483648
      %v1006 = vmul.f32 %v1004, 1.442695
      %v1007 = vpow.pop %v1006
      %v1008 = vmul.f32 %v1005, 1.442695
      %v1009 = vpow.pop %v1008
      %v1010 = vadd.f32 %v1007, 1.0
      %v1011 = vadd.f32 %v1009, 1.0
      %v1012 = vrcp.pop %v1010
      %v1013 = vmul.f32 1.0, %v1012
      %v1014 = vrcp.pop %v1011
      %v1015 = vmul.f32 1.0, %v1014
      %v1016 = vmul.f32 %v1002, %v1013
      %v1017 = vmul.f32 %v1003, %v1015
      %p1018 = scmp.gt.s32.totalorder %s27, 0
      %s1019 = scalar_select %p1018, 1, 0
      %s1020 = scvt.s32.f32 %s1019
      %v1021 = vstv %s1020
      %v1022 = vmul.f32 %v954, %v1021
      %v1023 = vmul.f32 %v955, %v1021
      %p1024 = scmp.lt.s32.totalorder %s27, 1
      %s1025 = scalar_select %p1024, 1, 0
      %s1026 = scvt.s32.f32 %s1025
      %v1027 = vstv %s1026
      %v1028 = vmul.f32 %v1016, %v1027
      %v1029 = vmul.f32 %v1017, %v1027
      %1030 = vst [vmem:[#allocation2 + $0x8] sm:$0xff] %v1022
      %1031 = vst [vmem:[#allocation2 + $0x10] sm:$0xff] %v1023
      %1032 = vst [vmem:[#allocation2 + $0x18] sm:$0xff] %v878
      %1033 = vst [vmem:[#allocation2 + $0x20] sm:$0xff] %v879
      %1034 = vst [vmem:[#allocation2 + $0x28] sm:$0xff] %v880
      %1035 = vst [vmem:[#allocation2 + $0x30] sm:$0xff] %v881
      %1036 = vst [vmem:[#allocation2 + $0x38] sm:$0xff] %v882
      %1037 = vst [vmem:[#allocation2 + $0x40] sm:$0xff] %v883
      %1038 = vst [vmem:[#allocation2 + $0x48] sm:$0xff] %v884
      %1039 = vst [vmem:[#allocation2 + $0x50] sm:$0xff] %v885
      %1040 = vst [vmem:[#allocation2 + $0x58] sm:$0xff] %v886
      %1041 = vst [vmem:[#allocation2 + $0x60] sm:$0xff] %v887
      %1042 = vst [vmem:[#allocation2 + $0x68] sm:$0xff] %v888
      %1043 = vst [vmem:[#allocation2 + $0x70] sm:$0xff] %v889
      %1044 = vst [vmem:[#allocation2 + $0x78] sm:$0xff] %v890
      %1045 = vst [vmem:[#allocation2 + $0x80] sm:$0xff] %v891
      %1046 = vst [vmem:[#allocation2 + $0x88] sm:$0xff] %v892
      %1047 = vst [vmem:[#allocation2 + $0x90] sm:$0xff] %v893
      %1048 = vst [vmem:[#allocation2 + $0x98] sm:$0xff] %v1028
      %1049 = vst [vmem:[#allocation2 + $0xa0] sm:$0xff] %v1029
      %v1050 = vld [vmem:[%s3] sm:$0xff]
      %v1051 = vld [vmem:[%s3 + $0x8] sm:$0xff]
      %v1052 = vld [vmem:[%s3 + $0x10] sm:$0xff]
      %v1053 = vld [vmem:[%s3 + $0x18] sm:$0xff]
      %v1054 = vld [vmem:[%s3 + $0x20] sm:$0xff]
      %v1055 = vld [vmem:[%s3 + $0x28] sm:$0xff]
      %v1056 = vld [vmem:[%s3 + $0x30] sm:$0xff]
      %v1057 = vld [vmem:[%s3 + $0x38] sm:$0xff]
      %v1058 = vld [vmem:[%s3 + $0x40] sm:$0xff]
      %v1059 = vld [vmem:[%s3 + $0x48] sm:$0xff]
      %v1060 = vld [vmem:[%s3 + $0x50] sm:$0xff]
      %v1061 = vld [vmem:[%s3 + $0x58] sm:$0xff]
      %v1062 = vld [vmem:[%s3 + $0x60] sm:$0xff]
      %v1063 = vld [vmem:[%s3 + $0x68] sm:$0xff]
      %v1064 = vld [vmem:[%s3 + $0x70] sm:$0xff]
      %v1065 = vld [vmem:[%s3 + $0x78] sm:$0xff]
      %vm1066 = vcmp.gt.f32.partialorder %v1050, 0.5
      %vm1067 = vcmp.gt.f32.partialorder %v1051, 0.5
      %vm1068 = vcmp.gt.f32.partialorder %v1052, 0.5
      %vm1069 = vcmp.gt.f32.partialorder %v1053, 0.5
      %vm1070 = vcmp.gt.f32.partialorder %v1054, 0.5
      %vm1071 = vcmp.gt.f32.partialorder %v1055, 0.5
      %vm1072 = vcmp.gt.f32.partialorder %v1056, 0.5
      %vm1073 = vcmp.gt.f32.partialorder %v1057, 0.5
      %vm1074 = vcmp.gt.f32.partialorder %v1058, 0.5
      %vm1075 = vcmp.gt.f32.partialorder %v1059, 0.5
      %vm1076 = vcmp.gt.f32.partialorder %v1060, 0.5
      %vm1077 = vcmp.gt.f32.partialorder %v1061, 0.5
      %vm1078 = vcmp.gt.f32.partialorder %v1062, 0.5
      %vm1079 = vcmp.gt.f32.partialorder %v1063, 0.5
      %vm1080 = vcmp.gt.f32.partialorder %v1064, 0.5
      %vm1081 = vcmp.gt.f32.partialorder %v1065, 0.5
      %v1082 = vld [vmem:[%s4] sm:$0xff]
      %v1083 = vld [vmem:[%s4 + $0x8] sm:$0xff]
      %v1084 = vld [vmem:[%s4 + $0x10] sm:$0xff]
      %v1085 = vld [vmem:[%s4 + $0x18] sm:$0xff]
      %v1086 = vld [vmem:[%s4 + $0x20] sm:$0xff]
      %v1087 = vld [vmem:[%s4 + $0x28] sm:$0xff]
      %v1088 = vld [vmem:[%s4 + $0x30] sm:$0xff]
      %v1089 = vld [vmem:[%s4 + $0x38] sm:$0xff]
      %v1090 = vld [vmem:[%s4 + $0x40] sm:$0xff]
      %v1091 = vld [vmem:[%s4 + $0x48] sm:$0xff]
      %v1092 = vld [vmem:[%s4 + $0x50] sm:$0xff]
      %v1093 = vld [vmem:[%s4 + $0x58] sm:$0xff]
      %v1094 = vld [vmem:[%s4 + $0x60] sm:$0xff]
      %v1095 = vld [vmem:[%s4 + $0x68] sm:$0xff]
      %v1096 = vld [vmem:[%s4 + $0x70] sm:$0xff]
      %v1097 = vld [vmem:[%s4 + $0x78] sm:$0xff]
      %vm1098 = vcmp.gt.f32.partialorder %v1082, 0.5
      %vm1099 = vcmp.gt.f32.partialorder %v1083, 0.5
      %vm1100 = vcmp.gt.f32.partialorder %v1084, 0.5
      %vm1101 = vcmp.gt.f32.partialorder %v1085, 0.5
      %vm1102 = vcmp.gt.f32.partialorder %v1086, 0.5
      %vm1103 = vcmp.gt.f32.partialorder %v1087, 0.5
      %vm1104 = vcmp.gt.f32.partialorder %v1088, 0.5
      %vm1105 = vcmp.gt.f32.partialorder %v1089, 0.5
      %vm1106 = vcmp.gt.f32.partialorder %v1090, 0.5
      %vm1107 = vcmp.gt.f32.partialorder %v1091, 0.5
      %vm1108 = vcmp.gt.f32.partialorder %v1092, 0.5
      %vm1109 = vcmp.gt.f32.partialorder %v1093, 0.5
      %vm1110 = vcmp.gt.f32.partialorder %v1094, 0.5
      %vm1111 = vcmp.gt.f32.partialorder %v1095, 0.5
      %vm1112 = vcmp.gt.f32.partialorder %v1096, 0.5
      %vm1113 = vcmp.gt.f32.partialorder %v1097, 0.5
      %v1114 = vld [vmem:[#allocation2 + $0x7] sm:$0xff]
      %v1115 = vld [vmem:[#allocation2 + $0xf] sm:$0xff]
      %v1116 = vld [vmem:[#allocation2 + $0x17] sm:$0xff]
      %v1117 = vld [vmem:[#allocation2 + $0x1f] sm:$0xff]
      %v1118 = vld [vmem:[#allocation2 + $0x27] sm:$0xff]
      %v1119 = vld [vmem:[#allocation2 + $0x2f] sm:$0xff]
      %v1120 = vld [vmem:[#allocation2 + $0x37] sm:$0xff]
      %v1121 = vld [vmem:[#allocation2 + $0x3f] sm:$0xff]
      %v1122 = vld [vmem:[#allocation2 + $0x47] sm:$0xff]
      %v1123 = vld [vmem:[#allocation2 + $0x4f] sm:$0xff]
      %v1124 = vld [vmem:[#allocation2 + $0x57] sm:$0xff]
      %v1125 = vld [vmem:[#allocation2 + $0x5f] sm:$0xff]
      %v1126 = vld [vmem:[#allocation2 + $0x67] sm:$0xff]
      %v1127 = vld [vmem:[#allocation2 + $0x6f] sm:$0xff]
      %v1128 = vld [vmem:[#allocation2 + $0x77] sm:$0xff]
      %v1129 = vld [vmem:[#allocation2 + $0x7f] sm:$0xff]
      %v1130 = vsel %vm1066, 1, 0
      %v1131 = vsel %vm1067, 1, 0
      %v1132 = vsel %vm1068, 1, 0
      %v1133 = vsel %vm1069, 1, 0
      %v1134 = vsel %vm1070, 1, 0
      %v1135 = vsel %vm1071, 1, 0
      %v1136 = vsel %vm1072, 1, 0
      %v1137 = vsel %vm1073, 1, 0
      %v1138 = vsel %vm1074, 1, 0
      %v1139 = vsel %vm1075, 1, 0
      %v1140 = vsel %vm1076, 1, 0
      %v1141 = vsel %vm1077, 1, 0
      %v1142 = vsel %vm1078, 1, 0
      %v1143 = vsel %vm1079, 1, 0
      %v1144 = vsel %vm1080, 1, 0
      %v1145 = vsel %vm1081, 1, 0
      %1146 = vset.pattern.permute.xlu0 0
      %1147 = vperm.xlu0 %1146, %v1130
      %v1148 = vpop.permute.xlu0 %1147
      %1149 = vset.pattern.permute.xlu0 0
      %1150 = vperm.xlu0 %1149, %v1131
      %v1151 = vpop.permute.xlu0 %1150
      %1152 = vset.pattern.permute.xlu0 0
      %1153 = vperm.xlu0 %1152, %v1132
      %v1154 = vpop.permute.xlu0 %1153
      %1155 = vset.pattern.permute.xlu0 0
      %1156 = vperm.xlu0 %1155, %v1133
      %v1157 = vpop.permute.xlu0 %1156
      %1158 = vset.pattern.permute.xlu0 0
      %1159 = vperm.xlu0 %1158, %v1134
      %v1160 = vpop.permute.xlu0 %1159
      %1161 = vset.pattern.permute.xlu0 0
      %1162 = vperm.xlu0 %1161, %v1135
      %v1163 = vpop.permute.xlu0 %1162
      %1164 = vset.pattern.permute.xlu0 0
      %1165 = vperm.xlu0 %1164, %v1136
      %v1166 = vpop.permute.xlu0 %1165
      %1167 = vset.pattern.permute.xlu0 0
      %1168 = vperm.xlu0 %1167, %v1137
      %v1169 = vpop.permute.xlu0 %1168
      %1170 = vset.pattern.permute.xlu0 0
      %1171 = vperm.xlu0 %1170, %v1138
      %v1172 = vpop.permute.xlu0 %1171
      %1173 = vset.pattern.permute.xlu0 0
      %1174 = vperm.xlu0 %1173, %v1139
      %v1175 = vpop.permute.xlu0 %1174
      %1176 = vset.pattern.permute.xlu0 0
      %1177 = vperm.xlu0 %1176, %v1140
      %v1178 = vpop.permute.xlu0 %1177
      %1179 = vset.pattern.permute.xlu0 0
      %1180 = vperm.xlu0 %1179, %v1141
      %v1181 = vpop.permute.xlu0 %1180
      %1182 = vset.pattern.permute.xlu0 0
      %1183 = vperm.xlu0 %1182, %v1142
      %v1184 = vpop.permute.xlu0 %1183
      %1185 = vset.pattern.permute.xlu0 0
      %1186 = vperm.xlu0 %1185, %v1143
      %v1187 = vpop.permute.xlu0 %1186
      %1188 = vset.pattern.permute.xlu0 0
      %1189 = vperm.xlu0 %1188, %v1144
      %v1190 = vpop.permute.xlu0 %1189
      %1191 = vset.pattern.permute.xlu0 0
      %1192 = vperm.xlu0 %1191, %v1145
      %v1193 = vpop.permute.xlu0 %1192
      %vm1194 = vcmp.eq.s32.totalorder %v1148, 1
      %vm1195 = vcmp.eq.s32.totalorder %v1151, 1
      %vm1196 = vcmp.eq.s32.totalorder %v1154, 1
      %vm1197 = vcmp.eq.s32.totalorder %v1157, 1
      %vm1198 = vcmp.eq.s32.totalorder %v1160, 1
      %vm1199 = vcmp.eq.s32.totalorder %v1163, 1
      %vm1200 = vcmp.eq.s32.totalorder %v1166, 1
      %vm1201 = vcmp.eq.s32.totalorder %v1169, 1
      %vm1202 = vcmp.eq.s32.totalorder %v1172, 1
      %vm1203 = vcmp.eq.s32.totalorder %v1175, 1
      %vm1204 = vcmp.eq.s32.totalorder %v1178, 1
      %vm1205 = vcmp.eq.s32.totalorder %v1181, 1
      %vm1206 = vcmp.eq.s32.totalorder %v1184, 1
      %vm1207 = vcmp.eq.s32.totalorder %v1187, 1
      %vm1208 = vcmp.eq.s32.totalorder %v1190, 1
      %vm1209 = vcmp.eq.s32.totalorder %v1193, 1
      %v1210 = vsel %vm1194, 0.0, %v1114
      %v1211 = vsel %vm1195, 0.0, %v1115
      %v1212 = vsel %vm1196, 0.0, %v1116
      %v1213 = vsel %vm1197, 0.0, %v1117
      %v1214 = vsel %vm1198, 0.0, %v1118
      %v1215 = vsel %vm1199, 0.0, %v1119
      %v1216 = vsel %vm1200, 0.0, %v1120
      %v1217 = vsel %vm1201, 0.0, %v1121
      %v1218 = vsel %vm1202, 0.0, %v1122
      %v1219 = vsel %vm1203, 0.0, %v1123
      %v1220 = vsel %vm1204, 0.0, %v1124
      %v1221 = vsel %vm1205, 0.0, %v1125
      %v1222 = vsel %vm1206, 0.0, %v1126
      %v1223 = vsel %vm1207, 0.0, %v1127
      %v1224 = vsel %vm1208, 0.0, %v1128
      %v1225 = vsel %vm1209, 0.0, %v1129
      %v1226 = vpack.c.bf16 %v1211, %v1210
      %v1227 = vpack.c.bf16 %v1213, %v1212
      %v1228 = vpack.c.bf16 %v1215, %v1214
      %v1229 = vpack.c.bf16 %v1217, %v1216
      %v1230 = vpack.c.bf16 %v1219, %v1218
      %v1231 = vpack.c.bf16 %v1221, %v1220
      %v1232 = vpack.c.bf16 %v1223, %v1222
      %v1233 = vpack.c.bf16 %v1225, %v1224
      %v1234 = vld [vmem:[%s6] sm:$0xf]
      %v1235 = vld [vmem:[%s6 + $0x4] sm:$0xf]
      %v1236 = vld [vmem:[%s6 + $0x8] sm:$0xf]
      %v1237 = vld [vmem:[%s6 + $0xc] sm:$0xf]
      %v1238 = vld [vmem:[%s6 + $0x10] sm:$0xf]
      %v1239 = vld [vmem:[%s6 + $0x14] sm:$0xf]
      %v1240 = vld [vmem:[%s6 + $0x18] sm:$0xf]
      %v1241 = vld [vmem:[%s6 + $0x1c] sm:$0xf]
      %v1242 = vld [vmem:[%s6 + $0x20] sm:$0xf]
      %v1243 = vld [vmem:[%s6 + $0x24] sm:$0xf]
      %v1244 = vld [vmem:[%s6 + $0x28] sm:$0xf]
      %v1245 = vld [vmem:[%s6 + $0x2c] sm:$0xf]
      %v1246 = vld [vmem:[%s6 + $0x30] sm:$0xf]
      %v1247 = vld [vmem:[%s6 + $0x34] sm:$0xf]
      %v1248 = vld [vmem:[%s6 + $0x38] sm:$0xf]
      %v1249 = vld [vmem:[%s6 + $0x3c] sm:$0xf]
      %v1250 = vld [vmem:[#allocation2 + $0x8] sm:$0xff]
      %v1251 = vld [vmem:[#allocation2 + $0x10] sm:$0xff]
      %v1252 = vld [vmem:[#allocation2 + $0x18] sm:$0xff]
      %v1253 = vld [vmem:[#allocation2 + $0x20] sm:$0xff]
      %v1254 = vld [vmem:[#allocation2 + $0x28] sm:$0xff]
      %v1255 = vld [vmem:[#allocation2 + $0x30] sm:$0xff]
      %v1256 = vld [vmem:[#allocation2 + $0x38] sm:$0xff]
      %v1257 = vld [vmem:[#allocation2 + $0x40] sm:$0xff]
      %v1258 = vld [vmem:[#allocation2 + $0x48] sm:$0xff]
      %v1259 = vld [vmem:[#allocation2 + $0x50] sm:$0xff]
      %v1260 = vld [vmem:[#allocation2 + $0x58] sm:$0xff]
      %v1261 = vld [vmem:[#allocation2 + $0x60] sm:$0xff]
      %v1262 = vld [vmem:[#allocation2 + $0x68] sm:$0xff]
      %v1263 = vld [vmem:[#allocation2 + $0x70] sm:$0xff]
      %v1264 = vld [vmem:[#allocation2 + $0x78] sm:$0xff]
      %v1265 = vld [vmem:[#allocation2 + $0x80] sm:$0xff]
      %v1266 = vpack.c.bf16 %v1251, %v1250
      %v1267 = vpack.c.bf16 %v1253, %v1252
      %v1268 = vpack.c.bf16 %v1255, %v1254
      %v1269 = vpack.c.bf16 %v1257, %v1256
      %v1270 = vpack.c.bf16 %v1259, %v1258
      %v1271 = vpack.c.bf16 %v1261, %v1260
      %v1272 = vpack.c.bf16 %v1263, %v1262
      %v1273 = vpack.c.bf16 %v1265, %v1264
      %s1274 = scalar_lea.vmem %s6, 64
      %v1275 = vld [vmem:[%s1274] sm:$0xf]
      %v1276 = vld [vmem:[%s1274 + $0x4] sm:$0xf]
      %v1277 = vld [vmem:[%s1274 + $0x8] sm:$0xf]
      %v1278 = vld [vmem:[%s1274 + $0xc] sm:$0xf]
      %v1279 = vld [vmem:[%s1274 + $0x10] sm:$0xf]
      %v1280 = vld [vmem:[%s1274 + $0x14] sm:$0xf]
      %v1281 = vld [vmem:[%s1274 + $0x18] sm:$0xf]
      %v1282 = vld [vmem:[%s1274 + $0x1c] sm:$0xf]
      %v1283 = vld [vmem:[%s1274 + $0x20] sm:$0xf]
      %v1284 = vld [vmem:[%s1274 + $0x24] sm:$0xf]
      %v1285 = vld [vmem:[%s1274 + $0x28] sm:$0xf]
      %v1286 = vld [vmem:[%s1274 + $0x2c] sm:$0xf]
      %v1287 = vld [vmem:[%s1274 + $0x30] sm:$0xf]
      %v1288 = vld [vmem:[%s1274 + $0x34] sm:$0xf]
      %v1289 = vld [vmem:[%s1274 + $0x38] sm:$0xf]
      %v1290 = vld [vmem:[%s1274 + $0x3c] sm:$0xf]
      %v1307 = vunpack.c.l.b16 %v1275
      %v1308 = vunpack.c.l.b16 %v1276
      %v1309 = vunpack.c.l.b16 %v1277
      %v1310 = vunpack.c.l.b16 %v1278
      %v1311 = vunpack.c.l.b16 %v1279
      %v1312 = vunpack.c.l.b16 %v1280
      %v1313 = vunpack.c.l.b16 %v1281
      %v1314 = vunpack.c.l.b16 %v1282
      %v1315 = vunpack.c.l.b16 %v1283
      %v1316 = vunpack.c.l.b16 %v1284
      %v1317 = vunpack.c.l.b16 %v1285
      %v1318 = vunpack.c.l.b16 %v1286
      %v1319 = vunpack.c.l.b16 %v1287
      %v1320 = vunpack.c.l.b16 %v1288
      %v1321 = vunpack.c.l.b16 %v1289
      %v1322 = vunpack.c.l.b16 %v1290
      %v1323 = vpack.c.b16 %v1308, %v1307
      %v1324 = vpack.c.b16 %v1310, %v1309
      %v1325 = vpack.c.b16 %v1312, %v1311
      %v1326 = vpack.c.b16 %v1314, %v1313
      %v1327 = vpack.c.b16 %v1316, %v1315
      %v1328 = vpack.c.b16 %v1318, %v1317
      %v1329 = vpack.c.b16 %v1320, %v1319
      %v1330 = vpack.c.b16 %v1322, %v1321
      %1339 = vmatprep.subr.bf16.mxu0 0
      %1340 = vmatpush1.bf16.msra.mxu0 %v1323
      %1341 = vmatprep.subr.bf16.mxu0 0
      %1342 = vmatpush1.bf16.msra.mxu0 %v1324
      %1343 = vmatprep.subr.bf16.mxu0 0
      %1344 = vmatpush1.bf16.msra.mxu0 %v1325
      %1345 = vmatprep.subr.bf16.mxu0 0
      %1346 = vmatpush1.bf16.msra.mxu0 %v1326
      %1347 = vmatprep.subr.bf16.mxu0 0
      %1348 = vmatpush1.bf16.msra.mxu0 %v1327
      %1349 = vmatprep.subr.bf16.mxu0 0
      %1350 = vmatpush1.bf16.msra.mxu0 %v1328
      %1351 = vmatprep.subr.bf16.mxu0 0
      %1352 = vmatpush1.bf16.msra.mxu0 %v1329
      %1353 = vmatprep.subr.bf16.mxu0 0
      %1354 = vmatpush1.bf16.msra.mxu0 %v1330
      %1355 = vmatprep.subr.bf16.mxu0 0
      %1356 = vmatpush1.bf16.msra.mxu0 0
      %1357 = vmatprep.subr.bf16.mxu0 0
      %1358 = vmatpush1.bf16.msra.mxu0 0
      %1359 = vmatprep.subr.bf16.mxu0 0
      %1360 = vmatpush1.bf16.msra.mxu0 0
      %1361 = vmatprep.subr.bf16.mxu0 0
      %1362 = vmatpush1.bf16.msra.mxu0 0
      %1363 = vmatprep.subr.bf16.mxu0 0
      %1364 = vmatpush1.bf16.msra.mxu0 0
      %1365 = vmatprep.subr.bf16.mxu0 0
      %1366 = vmatpush1.bf16.msra.mxu0 0
      %1367 = vmatprep.subr.bf16.mxu0 0
      %1368 = vmatpush1.bf16.msra.mxu0 0
      %1369 = vmatprep.subr.bf16.mxu0 0
      %1370 = vmatpush1.bf16.msra.mxu0 0
      %1371 = vmatprep.mubr.bf16.mxu0 0
      %1372 = vmatmul.mubr.bf16.gmra.mrb[0].mxu0 %v1266
      %v1373 = vpop.f32.mrb[0].mxu0
      %v1374 = vadd.f32 0.0, %v1373
      %v1375 = vpop.f32.mrb[0].mxu0
      %v1376 = vpop.f32.mrb[0].mxu0
      %v1377 = vadd.f32 0.0, %v1376
      %v1378 = vpop.f32.mrb[0].mxu0
      %1379 = vmatprep.mubr.bf16.mxu0 0
      %1380 = vmatmul.mubr.bf16.gmra.mrb[0].mxu0 %v1267
      %v1381 = vpop.f32.mrb[0].mxu0
      %v1382 = vadd.f32 0.0, %v1381
      %v1383 = vpop.f32.mrb[0].mxu0
      %v1384 = vpop.f32.mrb[0].mxu0
      %v1385 = vadd.f32 0.0, %v1384
      %v1386 = vpop.f32.mrb[0].mxu0
      %1387 = vmatprep.mubr.bf16.mxu0 0
      %1388 = vmatmul.mubr.bf16.gmra.mrb[0].mxu0 %v1268
      %v1389 = vpop.f32.mrb[0].mxu0
      %v1390 = vadd.f32 0.0, %v1389
      %v1391 = vpop.f32.mrb[0].mxu0
      %v1392 = vpop.f32.mrb[0].mxu0
      %v1393 = vadd.f32 0.0, %v1392
      %v1394 = vpop.f32.mrb[0].mxu0
      %1395 = vmatprep.mubr.bf16.mxu0 0
      %1396 = vmatmul.mubr.bf16.gmra.mrb[0].mxu0 %v1269
      %v1397 = vpop.f32.mrb[0].mxu0
      %v1398 = vadd.f32 0.0, %v1397
      %v1399 = vpop.f32.mrb[0].mxu0
      %v1400 = vpop.f32.mrb[0].mxu0
      %v1401 = vadd.f32 0.0, %v1400
      %v1402 = vpop.f32.mrb[0].mxu0
      %1403 = vmatprep.mubr.bf16.mxu0 0
      %1404 = vmatmul.mubr.bf16.gmra.mrb[0].mxu0 %v1270
      %v1405 = vpop.f32.mrb[0].mxu0
      %v1406 = vadd.f32 0.0, %v1405
      %v1407 = vpop.f32.mrb[0].mxu0
      %v1408 = vpop.f32.mrb[0].mxu0
      %v1409 = vadd.f32 0.0, %v1408
      %v1410 = vpop.f32.mrb[0].mxu0
      %1411 = vmatprep.mubr.bf16.mxu0 0
      %1412 = vmatmul.mubr.bf16.gmra.mrb[0].mxu0 %v1271
      %v1413 = vpop.f32.mrb[0].mxu0
      %v1414 = vadd.f32 0.0, %v1413
      %v1415 = vpop.f32.mrb[0].mxu0
      %v1416 = vpop.f32.mrb[0].mxu0
      %v1417 = vadd.f32 0.0, %v1416
      %v1418 = vpop.f32.mrb[0].mxu0
      %1419 = vmatprep.mubr.bf16.mxu0 0
      %1420 = vmatmul.mubr.bf16.gmra.mrb[0].mxu0 %v1272
      %v1421 = vpop.f32.mrb[0].mxu0
      %v1422 = vadd.f32 0.0, %v1421
      %v1423 = vpop.f32.mrb[0].mxu0
      %v1424 = vpop.f32.mrb[0].mxu0
      %v1425 = vadd.f32 0.0, %v1424
      %v1426 = vpop.f32.mrb[0].mxu0
      %1427 = vmatprep.mubr.bf16.mxu0 0
      %1428 = vmatmul.mubr.bf16.gmra.mrb[0].mxu0 %v1273
      %v1429 = vpop.f32.mrb[0].mxu0
      %v1430 = vadd.f32 0.0, %v1429
      %v1431 = vpop.f32.mrb[0].mxu0
      %v1432 = vpop.f32.mrb[0].mxu0
      %v1433 = vadd.f32 0.0, %v1432
      %v1434 = vpop.f32.mrb[0].mxu0
      %1435 = vdwg.mxu0
      %v1452 = vunpack.c.l.b16 %v1234
      %v1453 = vunpack.c.l.b16 %v1235
      %v1454 = vunpack.c.l.b16 %v1236
      %v1455 = vunpack.c.l.b16 %v1237
      %v1456 = vunpack.c.l.b16 %v1238
      %v1457 = vunpack.c.l.b16 %v1239
      %v1458 = vunpack.c.l.b16 %v1240
      %v1459 = vunpack.c.l.b16 %v1241
      %v1460 = vunpack.c.l.b16 %v1242
      %v1461 = vunpack.c.l.b16 %v1243
      %v1462 = vunpack.c.l.b16 %v1244
      %v1463 = vunpack.c.l.b16 %v1245
      %v1464 = vunpack.c.l.b16 %v1246
      %v1465 = vunpack.c.l.b16 %v1247
      %v1466 = vunpack.c.l.b16 %v1248
      %v1467 = vunpack.c.l.b16 %v1249
      %v1468 = vpack.c.b16 %v1453, %v1452
      %v1469 = vpack.c.b16 %v1455, %v1454
      %v1470 = vpack.c.b16 %v1457, %v1456
      %v1471 = vpack.c.b16 %v1459, %v1458
      %v1472 = vpack.c.b16 %v1461, %v1460
      %v1473 = vpack.c.b16 %v1463, %v1462
      %v1474 = vpack.c.b16 %v1465, %v1464
      %v1475 = vpack.c.b16 %v1467, %v1466
      %1484 = vmatprep.subr.bf16.mxu0 0
      %1485 = vmatpush1.bf16.msra.mxu0 %v1468
      %1486 = vmatprep.subr.bf16.mxu0 0
      %1487 = vmatpush1.bf16.msra.mxu0 %v1469
      %1488 = vmatprep.subr.bf16.mxu0 0
      %1489 = vmatpush1.bf16.msra.mxu0 %v1470
      %1490 = vmatprep.subr.bf16.mxu0 0
      %1491 = vmatpush1.bf16.msra.mxu0 %v1471
      %1492 = vmatprep.subr.bf16.mxu0 0
      %1493 = vmatpush1.bf16.msra.mxu0 %v1472
      %1494 = vmatprep.subr.bf16.mxu0 0
      %1495 = vmatpush1.bf16.msra.mxu0 %v1473
      %1496 = vmatprep.subr.bf16.mxu0 0
      %1497 = vmatpush1.bf16.msra.mxu0 %v1474
      %1498 = vmatprep.subr.bf16.mxu0 0
      %1499 = vmatpush1.bf16.msra.mxu0 %v1475
      %1500 = vmatprep.subr.bf16.mxu0 0
      %1501 = vmatpush1.bf16.msra.mxu0 0
      %1502 = vmatprep.subr.bf16.mxu0 0
      %1503 = vmatpush1.bf16.msra.mxu0 0
      %1504 = vmatprep.subr.bf16.mxu0 0
      %1505 = vmatpush1.bf16.msra.mxu0 0
      %1506 = vmatprep.subr.bf16.mxu0 0
      %1507 = vmatpush1.bf16.msra.mxu0 0
      %1508 = vmatprep.subr.bf16.mxu0 0
      %1509 = vmatpush1.bf16.msra.mxu0 0
      %1510 = vmatprep.subr.bf16.mxu0 0
      %1511 = vmatpush1.bf16.msra.mxu0 0
      %1512 = vmatprep.subr.bf16.mxu0 0
      %1513 = vmatpush1.bf16.msra.mxu0 0
      %1514 = vmatprep.subr.bf16.mxu0 0
      %1515 = vmatpush1.bf16.msra.mxu0 0
      %1516 = vmatprep.mubr.bf16.mxu0 0
      %1517 = vmatmul.mubr.bf16.gmra.mrb[0].mxu0 %v1226
      %v1518 = vpop.f32.mrb[0].mxu0
      %v1519 = vadd.f32 %v1374, %v1518
      %v1520 = vpop.f32.mrb[0].mxu0
      %v1521 = vpop.f32.mrb[0].mxu0
      %v1522 = vadd.f32 %v1377, %v1521
      %v1523 = vpop.f32.mrb[0].mxu0
      %1524 = vmatprep.mubr.bf16.mxu0 0
      %1525 = vmatmul.mubr.bf16.gmra.mrb[0].mxu0 %v1227
      %v1526 = vpop.f32.mrb[0].mxu0
      %v1527 = vadd.f32 %v1382, %v1526
      %v1528 = vpop.f32.mrb[0].mxu0
      %v1529 = vpop.f32.mrb[0].mxu0
      %v1530 = vadd.f32 %v1385, %v1529
      %v1531 = vpop.f32.mrb[0].mxu0
      %1532 = vmatprep.mubr.bf16.mxu0 0
      %1533 = vmatmul.mubr.bf16.gmra.mrb[0].mxu0 %v1228
      %v1534 = vpop.f32.mrb[0].mxu0
      %v1535 = vadd.f32 %v1390, %v1534
      %v1536 = vpop.f32.mrb[0].mxu0
      %v1537 = vpop.f32.mrb[0].mxu0
      %v1538 = vadd.f32 %v1393, %v1537
      %v1539 = vpop.f32.mrb[0].mxu0
      %1540 = vmatprep.mubr.bf16.mxu0 0
      %1541 = vmatmul.mubr.bf16.gmra.mrb[0].mxu0 %v1229
      %v1542 = vpop.f32.mrb[0].mxu0
      %v1543 = vadd.f32 %v1398, %v1542
      %v1544 = vpop.f32.mrb[0].mxu0
      %v1545 = vpop.f32.mrb[0].mxu0
      %v1546 = vadd.f32 %v1401, %v1545
      %v1547 = vpop.f32.mrb[0].mxu0
      %1548 = vmatprep.mubr.bf16.mxu0 0
      %1549 = vmatmul.mubr.bf16.gmra.mrb[0].mxu0 %v1230
      %v1550 = vpop.f32.mrb[0].mxu0
      %v1551 = vadd.f32 %v1406, %v1550
      %v1552 = vpop.f32.mrb[0].mxu0
      %v1553 = vpop.f32.mrb[0].mxu0
      %v1554 = vadd.f32 %v1409, %v1553
      %v1555 = vpop.f32.mrb[0].mxu0
      %1556 = vmatprep.mubr.bf16.mxu0 0
      %1557 = vmatmul.mubr.bf16.gmra.mrb[0].mxu0 %v1231
      %v1558 = vpop.f32.mrb[0].mxu0
      %v1559 = vadd.f32 %v1414, %v1558
      %v1560 = vpop.f32.mrb[0].mxu0
      %v1561 = vpop.f32.mrb[0].mxu0
      %v1562 = vadd.f32 %v1417, %v1561
      %v1563 = vpop.f32.mrb[0].mxu0
      %1564 = vmatprep.mubr.bf16.mxu0 0
      %1565 = vmatmul.mubr.bf16.gmra.mrb[0].mxu0 %v1232
      %v1566 = vpop.f32.mrb[0].mxu0
      %v1567 = vadd.f32 %v1422, %v1566
      %v1568 = vpop.f32.mrb[0].mxu0
      %v1569 = vpop.f32.mrb[0].mxu0
      %v1570 = vadd.f32 %v1425, %v1569
      %v1571 = vpop.f32.mrb[0].mxu0
      %1572 = vmatprep.mubr.bf16.mxu0 0
      %1573 = vmatmul.mubr.bf16.gmra.mrb[0].mxu0 %v1233
      %v1574 = vpop.f32.mrb[0].mxu0
      %v1575 = vadd.f32 %v1430, %v1574
      %v1576 = vpop.f32.mrb[0].mxu0
      %v1577 = vpop.f32.mrb[0].mxu0
      %v1578 = vadd.f32 %v1433, %v1577
      %v1579 = vpop.f32.mrb[0].mxu0
      %1580 = vdwg.mxu0
      %v1581 = vld [vmem:[#allocation2 + $0x9] sm:$0xff]
      %v1582 = vld [vmem:[#allocation2 + $0x11] sm:$0xff]
      %v1583 = vld [vmem:[#allocation2 + $0x19] sm:$0xff]
      %v1584 = vld [vmem:[#allocation2 + $0x21] sm:$0xff]
      %v1585 = vld [vmem:[#allocation2 + $0x29] sm:$0xff]
      %v1586 = vld [vmem:[#allocation2 + $0x31] sm:$0xff]
      %v1587 = vld [vmem:[#allocation2 + $0x39] sm:$0xff]
      %v1588 = vld [vmem:[#allocation2 + $0x41] sm:$0xff]
      %v1589 = vld [vmem:[#allocation2 + $0x49] sm:$0xff]
      %v1590 = vld [vmem:[#allocation2 + $0x51] sm:$0xff]
      %v1591 = vld [vmem:[#allocation2 + $0x59] sm:$0xff]
      %v1592 = vld [vmem:[#allocation2 + $0x61] sm:$0xff]
      %v1593 = vld [vmem:[#allocation2 + $0x69] sm:$0xff]
      %v1594 = vld [vmem:[#allocation2 + $0x71] sm:$0xff]
      %v1595 = vld [vmem:[#allocation2 + $0x79] sm:$0xff]
      %v1596 = vld [vmem:[#allocation2 + $0x81] sm:$0xff]
      %v1597 = vsel %vm1098, 1, 0
      %v1598 = vsel %vm1099, 1, 0
      %v1599 = vsel %vm1100, 1, 0
      %v1600 = vsel %vm1101, 1, 0
      %v1601 = vsel %vm1102, 1, 0
      %v1602 = vsel %vm1103, 1, 0
      %v1603 = vsel %vm1104, 1, 0
      %v1604 = vsel %vm1105, 1, 0
      %v1605 = vsel %vm1106, 1, 0
      %v1606 = vsel %vm1107, 1, 0
      %v1607 = vsel %vm1108, 1, 0
      %v1608 = vsel %vm1109, 1, 0
      %v1609 = vsel %vm1110, 1, 0
      %v1610 = vsel %vm1111, 1, 0
      %v1611 = vsel %vm1112, 1, 0
      %v1612 = vsel %vm1113, 1, 0
      %1613 = vset.pattern.permute.xlu0 0
      %1614 = vperm.xlu0 %1613, %v1597
      %v1615 = vpop.permute.xlu0 %1614
      %1616 = vset.pattern.permute.xlu0 0
      %1617 = vperm.xlu0 %1616, %v1598
      %v1618 = vpop.permute.xlu0 %1617
      %1619 = vset.pattern.permute.xlu0 0
      %1620 = vperm.xlu0 %1619, %v1599
      %v1621 = vpop.permute.xlu0 %1620
      %1622 = vset.pattern.permute.xlu0 0
      %1623 = vperm.xlu0 %1622, %v1600
      %v1624 = vpop.permute.xlu0 %1623
      %1625 = vset.pattern.permute.xlu0 0
      %1626 = vperm.xlu0 %1625, %v1601
      %v1627 = vpop.permute.xlu0 %1626
      %1628 = vset.pattern.permute.xlu0 0
      %1629 = vperm.xlu0 %1628, %v1602
      %v1630 = vpop.permute.xlu0 %1629
      %1631 = vset.pattern.permute.xlu0 0
      %1632 = vperm.xlu0 %1631, %v1603
      %v1633 = vpop.permute.xlu0 %1632
      %1634 = vset.pattern.permute.xlu0 0
      %1635 = vperm.xlu0 %1634, %v1604
      %v1636 = vpop.permute.xlu0 %1635
      %1637 = vset.pattern.permute.xlu0 0
      %1638 = vperm.xlu0 %1637, %v1605
      %v1639 = vpop.permute.xlu0 %1638
      %1640 = vset.pattern.permute.xlu0 0
      %1641 = vperm.xlu0 %1640, %v1606
      %v1642 = vpop.permute.xlu0 %1641
      %1643 = vset.pattern.permute.xlu0 0
      %1644 = vperm.xlu0 %1643, %v1607
      %v1645 = vpop.permute.xlu0 %1644
      %1646 = vset.pattern.permute.xlu0 0
      %1647 = vperm.xlu0 %1646, %v1608
      %v1648 = vpop.permute.xlu0 %1647
      %1649 = vset.pattern.permute.xlu0 0
      %1650 = vperm.xlu0 %1649, %v1609
      %v1651 = vpop.permute.xlu0 %1650
      %1652 = vset.pattern.permute.xlu0 0
      %1653 = vperm.xlu0 %1652, %v1610
      %v1654 = vpop.permute.xlu0 %1653
      %1655 = vset.pattern.permute.xlu0 0
      %1656 = vperm.xlu0 %1655, %v1611
      %v1657 = vpop.permute.xlu0 %1656
      %1658 = vset.pattern.permute.xlu0 0
      %1659 = vperm.xlu0 %1658, %v1612
      %v1660 = vpop.permute.xlu0 %1659
      %vm1661 = vcmp.eq.s32.totalorder %v1615, 1
      %vm1662 = vcmp.eq.s32.totalorder %v1618, 1
      %vm1663 = vcmp.eq.s32.totalorder %v1621, 1
      %vm1664 = vcmp.eq.s32.totalorder %v1624, 1
      %vm1665 = vcmp.eq.s32.totalorder %v1627, 1
      %vm1666 = vcmp.eq.s32.totalorder %v1630, 1
      %vm1667 = vcmp.eq.s32.totalorder %v1633, 1
      %vm1668 = vcmp.eq.s32.totalorder %v1636, 1
      %vm1669 = vcmp.eq.s32.totalorder %v1639, 1
      %vm1670 = vcmp.eq.s32.totalorder %v1642, 1
      %vm1671 = vcmp.eq.s32.totalorder %v1645, 1
      %vm1672 = vcmp.eq.s32.totalorder %v1648, 1
      %vm1673 = vcmp.eq.s32.totalorder %v1651, 1
      %vm1674 = vcmp.eq.s32.totalorder %v1654, 1
      %vm1675 = vcmp.eq.s32.totalorder %v1657, 1
      %vm1676 = vcmp.eq.s32.totalorder %v1660, 1
      %v1677 = vsel %vm1661, 0.0, %v1581
      %v1678 = vsel %vm1662, 0.0, %v1582
      %v1679 = vsel %vm1663, 0.0, %v1583
      %v1680 = vsel %vm1664, 0.0, %v1584
      %v1681 = vsel %vm1665, 0.0, %v1585
      %v1682 = vsel %vm1666, 0.0, %v1586
      %v1683 = vsel %vm1667, 0.0, %v1587
      %v1684 = vsel %vm1668, 0.0, %v1588
      %v1685 = vsel %vm1669, 0.0, %v1589
      %v1686 = vsel %vm1670, 0.0, %v1590
      %v1687 = vsel %vm1671, 0.0, %v1591
      %v1688 = vsel %vm1672, 0.0, %v1592
      %v1689 = vsel %vm1673, 0.0, %v1593
      %v1690 = vsel %vm1674, 0.0, %v1594
      %v1691 = vsel %vm1675, 0.0, %v1595
      %v1692 = vsel %vm1676, 0.0, %v1596
      %v1693 = vpack.c.bf16 %v1678, %v1677
      %v1694 = vpack.c.bf16 %v1680, %v1679
      %v1695 = vpack.c.bf16 %v1682, %v1681
      %v1696 = vpack.c.bf16 %v1684, %v1683
      %v1697 = vpack.c.bf16 %v1686, %v1685
      %v1698 = vpack.c.bf16 %v1688, %v1687
      %v1699 = vpack.c.bf16 %v1690, %v1689
      %v1700 = vpack.c.bf16 %v1692, %v1691
      %s1701 = scalar_lea.vmem %s6, 128
      %v1702 = vld [vmem:[%s1701] sm:$0xf]
      %v1703 = vld [vmem:[%s1701 + $0x4] sm:$0xf]
      %v1704 = vld [vmem:[%s1701 + $0x8] sm:$0xf]
      %v1705 = vld [vmem:[%s1701 + $0xc] sm:$0xf]
      %v1706 = vld [vmem:[%s1701 + $0x10] sm:$0xf]
      %v1707 = vld [vmem:[%s1701 + $0x14] sm:$0xf]
      %v1708 = vld [vmem:[%s1701 + $0x18] sm:$0xf]
      %v1709 = vld [vmem:[%s1701 + $0x1c] sm:$0xf]
      %v1710 = vld [vmem:[%s1701 + $0x20] sm:$0xf]
      %v1711 = vld [vmem:[%s1701 + $0x24] sm:$0xf]
      %v1712 = vld [vmem:[%s1701 + $0x28] sm:$0xf]
      %v1713 = vld [vmem:[%s1701 + $0x2c] sm:$0xf]
      %v1714 = vld [vmem:[%s1701 + $0x30] sm:$0xf]
      %v1715 = vld [vmem:[%s1701 + $0x34] sm:$0xf]
      %v1716 = vld [vmem:[%s1701 + $0x38] sm:$0xf]
      %v1717 = vld [vmem:[%s1701 + $0x3c] sm:$0xf]
      %v1734 = vunpack.c.l.b16 %v1702
      %v1735 = vunpack.c.l.b16 %v1703
      %v1736 = vunpack.c.l.b16 %v1704
      %v1737 = vunpack.c.l.b16 %v1705
      %v1738 = vunpack.c.l.b16 %v1706
      %v1739 = vunpack.c.l.b16 %v1707
      %v1740 = vunpack.c.l.b16 %v1708
      %v1741 = vunpack.c.l.b16 %v1709
      %v1742 = vunpack.c.l.b16 %v1710
      %v1743 = vunpack.c.l.b16 %v1711
      %v1744 = vunpack.c.l.b16 %v1712
      %v1745 = vunpack.c.l.b16 %v1713
      %v1746 = vunpack.c.l.b16 %v1714
      %v1747 = vunpack.c.l.b16 %v1715
      %v1748 = vunpack.c.l.b16 %v1716
      %v1749 = vunpack.c.l.b16 %v1717
      %v1750 = vpack.c.b16 %v1735, %v1734
      %v1751 = vpack.c.b16 %v1737, %v1736
      %v1752 = vpack.c.b16 %v1739, %v1738
      %v1753 = vpack.c.b16 %v1741, %v1740
      %v1754 = vpack.c.b16 %v1743, %v1742
      %v1755 = vpack.c.b16 %v1745, %v1744
      %v1756 = vpack.c.b16 %v1747, %v1746
      %v1757 = vpack.c.b16 %v1749, %v1748
      %1766 = vmatprep.subr.bf16.mxu0 0
      %1767 = vmatpush1.bf16.msra.mxu0 %v1750
      %1768 = vmatprep.subr.bf16.mxu0 0
      %1769 = vmatpush1.bf16.msra.mxu0 %v1751
      %1770 = vmatprep.subr.bf16.mxu0 0
      %1771 = vmatpush1.bf16.msra.mxu0 %v1752
      %1772 = vmatprep.subr.bf16.mxu0 0
      %1773 = vmatpush1.bf16.msra.mxu0 %v1753
      %1774 = vmatprep.subr.bf16.mxu0 0
      %1775 = vmatpush1.bf16.msra.mxu0 %v1754
      %1776 = vmatprep.subr.bf16.mxu0 0
      %1777 = vmatpush1.bf16.msra.mxu0 %v1755
      %1778 = vmatprep.subr.bf16.mxu0 0
      %1779 = vmatpush1.bf16.msra.mxu0 %v1756
      %1780 = vmatprep.subr.bf16.mxu0 0
      %1781 = vmatpush1.bf16.msra.mxu0 %v1757
      %1782 = vmatprep.subr.bf16.mxu0 0
      %1783 = vmatpush1.bf16.msra.mxu0 0
      %1784 = vmatprep.subr.bf16.mxu0 0
      %1785 = vmatpush1.bf16.msra.mxu0 0
      %1786 = vmatprep.subr.bf16.mxu0 0
      %1787 = vmatpush1.bf16.msra.mxu0 0
      %1788 = vmatprep.subr.bf16.mxu0 0
      %1789 = vmatpush1.bf16.msra.mxu0 0
      %1790 = vmatprep.subr.bf16.mxu0 0
      %1791 = vmatpush1.bf16.msra.mxu0 0
      %1792 = vmatprep.subr.bf16.mxu0 0
      %1793 = vmatpush1.bf16.msra.mxu0 0
      %1794 = vmatprep.subr.bf16.mxu0 0
      %1795 = vmatpush1.bf16.msra.mxu0 0
      %1796 = vmatprep.subr.bf16.mxu0 0
      %1797 = vmatpush1.bf16.msra.mxu0 0
      %1798 = vmatprep.mubr.bf16.mxu0 0
      %1799 = vmatmul.mubr.bf16.gmra.mrb[0].mxu0 %v1693
      %v1800 = vpop.f32.mrb[0].mxu0
      %v1801 = vadd.f32 0.0, %v1800
      %v1802 = vpop.f32.mrb[0].mxu0
      %v1803 = vpop.f32.mrb[0].mxu0
      %v1804 = vadd.f32 0.0, %v1803
      %v1805 = vpop.f32.mrb[0].mxu0
      %1806 = vmatprep.mubr.bf16.mxu0 0
      %1807 = vmatmul.mubr.bf16.gmra.mrb[0].mxu0 %v1694
      %v1808 = vpop.f32.mrb[0].mxu0
      %v1809 = vadd.f32 0.0, %v1808
      %v1810 = vpop.f32.mrb[0].mxu0
      %v1811 = vpop.f32.mrb[0].mxu0
      %v1812 = vadd.f32 0.0, %v1811
      %v1813 = vpop.f32.mrb[0].mxu0
      %1814 = vmatprep.mubr.bf16.mxu0 0
      %1815 = vmatmul.mubr.bf16.gmra.mrb[0].mxu0 %v1695
      %v1816 = vpop.f32.mrb[0].mxu0
      %v1817 = vadd.f32 0.0, %v1816
      %v1818 = vpop.f32.mrb[0].mxu0
      %v1819 = vpop.f32.mrb[0].mxu0
      %v1820 = vadd.f32 0.0, %v1819
      %v1821 = vpop.f32.mrb[0].mxu0
      %1822 = vmatprep.mubr.bf16.mxu0 0
      %1823 = vmatmul.mubr.bf16.gmra.mrb[0].mxu0 %v1696
      %v1824 = vpop.f32.mrb[0].mxu0
      %v1825 = vadd.f32 0.0, %v1824
      %v1826 = vpop.f32.mrb[0].mxu0
      %v1827 = vpop.f32.mrb[0].mxu0
      %v1828 = vadd.f32 0.0, %v1827
      %v1829 = vpop.f32.mrb[0].mxu0
      %1830 = vmatprep.mubr.bf16.mxu0 0
      %1831 = vmatmul.mubr.bf16.gmra.mrb[0].mxu0 %v1697
      %v1832 = vpop.f32.mrb[0].mxu0
      %v1833 = vadd.f32 0.0, %v1832
      %v1834 = vpop.f32.mrb[0].mxu0
      %v1835 = vpop.f32.mrb[0].mxu0
      %v1836 = vadd.f32 0.0, %v1835
      %v1837 = vpop.f32.mrb[0].mxu0
      %1838 = vmatprep.mubr.bf16.mxu0 0
      %1839 = vmatmul.mubr.bf16.gmra.mrb[0].mxu0 %v1698
      %v1840 = vpop.f32.mrb[0].mxu0
      %v1841 = vadd.f32 0.0, %v1840
      %v1842 = vpop.f32.mrb[0].mxu0
      %v1843 = vpop.f32.mrb[0].mxu0
      %v1844 = vadd.f32 0.0, %v1843
      %v1845 = vpop.f32.mrb[0].mxu0
      %1846 = vmatprep.mubr.bf16.mxu0 0
      %1847 = vmatmul.mubr.bf16.gmra.mrb[0].mxu0 %v1699
      %v1848 = vpop.f32.mrb[0].mxu0
      %v1849 = vadd.f32 0.0, %v1848
      %v1850 = vpop.f32.mrb[0].mxu0
      %v1851 = vpop.f32.mrb[0].mxu0
      %v1852 = vadd.f32 0.0, %v1851
      %v1853 = vpop.f32.mrb[0].mxu0
      %1854 = vmatprep.mubr.bf16.mxu0 0
      %1855 = vmatmul.mubr.bf16.gmra.mrb[0].mxu0 %v1700
      %v1856 = vpop.f32.mrb[0].mxu0
      %v1857 = vadd.f32 0.0, %v1856
      %v1858 = vpop.f32.mrb[0].mxu0
      %v1859 = vpop.f32.mrb[0].mxu0
      %v1860 = vadd.f32 0.0, %v1859
      %v1861 = vpop.f32.mrb[0].mxu0
      %1862 = vdwg.mxu0
      %v1863 = vadd.f32 %v1519, %v1801
      %v1864 = vadd.f32 %v1522, %v1804
      %v1865 = vadd.f32 %v1527, %v1809
      %v1866 = vadd.f32 %v1530, %v1812
      %v1867 = vadd.f32 %v1535, %v1817
      %v1868 = vadd.f32 %v1538, %v1820
      %v1869 = vadd.f32 %v1543, %v1825
      %v1870 = vadd.f32 %v1546, %v1828
      %v1871 = vadd.f32 %v1551, %v1833
      %v1872 = vadd.f32 %v1554, %v1836
      %v1873 = vadd.f32 %v1559, %v1841
      %v1874 = vadd.f32 %v1562, %v1844
      %v1875 = vadd.f32 %v1567, %v1849
      %v1876 = vadd.f32 %v1570, %v1852
      %v1877 = vadd.f32 %v1575, %v1857
      %v1878 = vadd.f32 %v1578, %v1860
      %v1879 = vld [vmem:[#allocation2 + $0x17] sm:$0xff]
      %v1880 = vld [vmem:[#allocation2 + $0x1f] sm:$0xff]
      %v1881 = vld [vmem:[#allocation2 + $0x27] sm:$0xff]
      %v1882 = vld [vmem:[#allocation2 + $0x2f] sm:$0xff]
      %v1883 = vld [vmem:[#allocation2 + $0x37] sm:$0xff]
      %v1884 = vld [vmem:[#allocation2 + $0x3f] sm:$0xff]
      %v1885 = vld [vmem:[#allocation2 + $0x47] sm:$0xff]
      %v1886 = vld [vmem:[#allocation2 + $0x4f] sm:$0xff]
      %v1887 = vld [vmem:[#allocation2 + $0x57] sm:$0xff]
      %v1888 = vld [vmem:[#allocation2 + $0x5f] sm:$0xff]
      %v1889 = vld [vmem:[#allocation2 + $0x67] sm:$0xff]
      %v1890 = vld [vmem:[#allocation2 + $0x6f] sm:$0xff]
      %v1891 = vld [vmem:[#allocation2 + $0x77] sm:$0xff]
      %v1892 = vld [vmem:[#allocation2 + $0x7f] sm:$0xff]
      %v1893 = vld [vmem:[#allocation2 + $0x87] sm:$0xff]
      %v1894 = vld [vmem:[#allocation2 + $0x8f] sm:$0xff]
      %v1895 = vsel %vm1194, 0.0, %v1879
      %v1896 = vsel %vm1195, 0.0, %v1880
      %v1897 = vsel %vm1196, 0.0, %v1881
      %v1898 = vsel %vm1197, 0.0, %v1882
      %v1899 = vsel %vm1198, 0.0, %v1883
      %v1900 = vsel %vm1199, 0.0, %v1884
      %v1901 = vsel %vm1200, 0.0, %v1885
      %v1902 = vsel %vm1201, 0.0, %v1886
      %v1903 = vsel %vm1202, 0.0, %v1887
      %v1904 = vsel %vm1203, 0.0, %v1888
      %v1905 = vsel %vm1204, 0.0, %v1889
      %v1906 = vsel %vm1205, 0.0, %v1890
      %v1907 = vsel %vm1206, 0.0, %v1891
      %v1908 = vsel %vm1207, 0.0, %v1892
      %v1909 = vsel %vm1208, 0.0, %v1893
      %v1910 = vsel %vm1209, 0.0, %v1894
      %v1911 = vpack.c.bf16 %v1896, %v1895
      %v1912 = vpack.c.bf16 %v1898, %v1897
      %v1913 = vpack.c.bf16 %v1900, %v1899
      %v1914 = vpack.c.bf16 %v1902, %v1901
      %v1915 = vpack.c.bf16 %v1904, %v1903
      %v1916 = vpack.c.bf16 %v1906, %v1905
      %v1917 = vpack.c.bf16 %v1908, %v1907
      %v1918 = vpack.c.bf16 %v1910, %v1909
      %s1919 = scalar_lea.vmem %s6, 192
      %v1920 = vld [vmem:[%s1919] sm:$0xf]
      %v1921 = vld [vmem:[%s1919 + $0x4] sm:$0xf]
      %v1922 = vld [vmem:[%s1919 + $0x8] sm:$0xf]
      %v1923 = vld [vmem:[%s1919 + $0xc] sm:$0xf]
      %v1924 = vld [vmem:[%s1919 + $0x10] sm:$0xf]
      %v1925 = vld [vmem:[%s1919 + $0x14] sm:$0xf]
      %v1926 = vld [vmem:[%s1919 + $0x18] sm:$0xf]
      %v1927 = vld [vmem:[%s1919 + $0x1c] sm:$0xf]
      %v1928 = vld [vmem:[%s1919 + $0x20] sm:$0xf]
      %v1929 = vld [vmem:[%s1919 + $0x24] sm:$0xf]
      %v1930 = vld [vmem:[%s1919 + $0x28] sm:$0xf]
      %v1931 = vld [vmem:[%s1919 + $0x2c] sm:$0xf]
      %v1932 = vld [vmem:[%s1919 + $0x30] sm:$0xf]
      %v1933 = vld [vmem:[%s1919 + $0x34] sm:$0xf]
      %v1934 = vld [vmem:[%s1919 + $0x38] sm:$0xf]
      %v1935 = vld [vmem:[%s1919 + $0x3c] sm:$0xf]
      %v1952 = vunpack.c.l.b16 %v1920
      %v1953 = vunpack.c.l.b16 %v1921
      %v1954 = vunpack.c.l.b16 %v1922
      %v1955 = vunpack.c.l.b16 %v1923
      %v1956 = vunpack.c.l.b16 %v1924
      %v1957 = vunpack.c.l.b16 %v1925
      %v1958 = vunpack.c.l.b16 %v1926
      %v1959 = vunpack.c.l.b16 %v1927
      %v1960 = vunpack.c.l.b16 %v1928
      %v1961 = vunpack.c.l.b16 %v1929
      %v1962 = vunpack.c.l.b16 %v1930
      %v1963 = vunpack.c.l.b16 %v1931
      %v1964 = vunpack.c.l.b16 %v1932
      %v1965 = vunpack.c.l.b16 %v1933
      %v1966 = vunpack.c.l.b16 %v1934
      %v1967 = vunpack.c.l.b16 %v1935
      %v1968 = vpack.c.b16 %v1953, %v1952
      %v1969 = vpack.c.b16 %v1955, %v1954
      %v1970 = vpack.c.b16 %v1957, %v1956
      %v1971 = vpack.c.b16 %v1959, %v1958
      %v1972 = vpack.c.b16 %v1961, %v1960
      %v1973 = vpack.c.b16 %v1963, %v1962
      %v1974 = vpack.c.b16 %v1965, %v1964
      %v1975 = vpack.c.b16 %v1967, %v1966
      %1984 = vmatprep.subr.bf16.mxu0 0
      %1985 = vmatpush1.bf16.msra.mxu0 %v1968
      %1986 = vmatprep.subr.bf16.mxu0 0
      %1987 = vmatpush1.bf16.msra.mxu0 %v1969
      %1988 = vmatprep.subr.bf16.mxu0 0
      %1989 = vmatpush1.bf16.msra.mxu0 %v1970
      %1990 = vmatprep.subr.bf16.mxu0 0
      %1991 = vmatpush1.bf16.msra.mxu0 %v1971
      %1992 = vmatprep.subr.bf16.mxu0 0
      %1993 = vmatpush1.bf16.msra.mxu0 %v1972
      %1994 = vmatprep.subr.bf16.mxu0 0
      %1995 = vmatpush1.bf16.msra.mxu0 %v1973
      %1996 = vmatprep.subr.bf16.mxu0 0
      %1997 = vmatpush1.bf16.msra.mxu0 %v1974
      %1998 = vmatprep.subr.bf16.mxu0 0
      %1999 = vmatpush1.bf16.msra.mxu0 %v1975
      %2000 = vmatprep.subr.bf16.mxu0 0
      %2001 = vmatpush1.bf16.msra.mxu0 0
      %2002 = vmatprep.subr.bf16.mxu0 0
      %2003 = vmatpush1.bf16.msra.mxu0 0
      %2004 = vmatprep.subr.bf16.mxu0 0
      %2005 = vmatpush1.bf16.msra.mxu0 0
      %2006 = vmatprep.subr.bf16.mxu0 0
      %2007 = vmatpush1.bf16.msra.mxu0 0
      %2008 = vmatprep.subr.bf16.mxu0 0
      %2009 = vmatpush1.bf16.msra.mxu0 0
      %2010 = vmatprep.subr.bf16.mxu0 0
      %2011 = vmatpush1.bf16.msra.mxu0 0
      %2012 = vmatprep.subr.bf16.mxu0 0
      %2013 = vmatpush1.bf16.msra.mxu0 0
      %2014 = vmatprep.subr.bf16.mxu0 0
      %2015 = vmatpush1.bf16.msra.mxu0 0
      %2016 = vmatprep.mubr.bf16.mxu0 0
      %2017 = vmatmul.mubr.bf16.gmra.mrb[0].mxu0 %v1911
      %v2018 = vpop.f32.mrb[0].mxu0
      %v2019 = vadd.f32 0.0, %v2018
      %v2020 = vpop.f32.mrb[0].mxu0
      %v2021 = vpop.f32.mrb[0].mxu0
      %v2022 = vadd.f32 0.0, %v2021
      %v2023 = vpop.f32.mrb[0].mxu0
      %2024 = vmatprep.mubr.bf16.mxu0 0
      %2025 = vmatmul.mubr.bf16.gmra.mrb[0].mxu0 %v1912
      %v2026 = vpop.f32.mrb[0].mxu0
      %v2027 = vadd.f32 0.0, %v2026
      %v2028 = vpop.f32.mrb[0].mxu0
      %v2029 = vpop.f32.mrb[0].mxu0
      %v2030 = vadd.f32 0.0, %v2029
      %v2031 = vpop.f32.mrb[0].mxu0
      %2032 = vmatprep.mubr.bf16.mxu0 0
      %2033 = vmatmul.mubr.bf16.gmra.mrb[0].mxu0 %v1913
      %v2034 = vpop.f32.mrb[0].mxu0
      %v2035 = vadd.f32 0.0, %v2034
      %v2036 = vpop.f32.mrb[0].mxu0
      %v2037 = vpop.f32.mrb[0].mxu0
      %v2038 = vadd.f32 0.0, %v2037
      %v2039 = vpop.f32.mrb[0].mxu0
      %2040 = vmatprep.mubr.bf16.mxu0 0
      %2041 = vmatmul.mubr.bf16.gmra.mrb[0].mxu0 %v1914
      %v2042 = vpop.f32.mrb[0].mxu0
      %v2043 = vadd.f32 0.0, %v2042
      %v2044 = vpop.f32.mrb[0].mxu0
      %v2045 = vpop.f32.mrb[0].mxu0
      %v2046 = vadd.f32 0.0, %v2045
      %v2047 = vpop.f32.mrb[0].mxu0
      %2048 = vmatprep.mubr.bf16.mxu0 0
      %2049 = vmatmul.mubr.bf16.gmra.mrb[0].mxu0 %v1915
      %v2050 = vpop.f32.mrb[0].mxu0
      %v2051 = vadd.f32 0.0, %v2050
      %v2052 = vpop.f32.mrb[0].mxu0
      %v2053 = vpop.f32.mrb[0].mxu0
      %v2054 = vadd.f32 0.0, %v2053
      %v2055 = vpop.f32.mrb[0].mxu0
      %2056 = vmatprep.mubr.bf16.mxu0 0
      %2057 = vmatmul.mubr.bf16.gmra.mrb[0].mxu0 %v1916
      %v2058 = vpop.f32.mrb[0].mxu0
      %v2059 = vadd.f32 0.0, %v2058
      %v2060 = vpop.f32.mrb[0].mxu0
      %v2061 = vpop.f32.mrb[0].mxu0
      %v2062 = vadd.f32 0.0, %v2061
      %v2063 = vpop.f32.mrb[0].mxu0
      %2064 = vmatprep.mubr.bf16.mxu0 0
      %2065 = vmatmul.mubr.bf16.gmra.mrb[0].mxu0 %v1917
      %v2066 = vpop.f32.mrb[0].mxu0
      %v2067 = vadd.f32 0.0, %v2066
      %v2068 = vpop.f32.mrb[0].mxu0
      %v2069 = vpop.f32.mrb[0].mxu0
      %v2070 = vadd.f32 0.0, %v2069
      %v2071 = vpop.f32.mrb[0].mxu0
      %2072 = vmatprep.mubr.bf16.mxu0 0
      %2073 = vmatmul.mubr.bf16.gmra.mrb[0].mxu0 %v1918
      %v2074 = vpop.f32.mrb[0].mxu0
      %v2075 = vadd.f32 0.0, %v2074
      %v2076 = vpop.f32.mrb[0].mxu0
      %v2077 = vpop.f32.mrb[0].mxu0
      %v2078 = vadd.f32 0.0, %v2077
      %v2079 = vpop.f32.mrb[0].mxu0
      %2080 = vdwg.mxu0
      %v2081 = vadd.f32 %v1863, %v2019
      %v2082 = vadd.f32 %v1864, %v2022
      %v2083 = vadd.f32 %v1865, %v2027
      %v2084 = vadd.f32 %v1866, %v2030
      %v2085 = vadd.f32 %v1867, %v2035
      %v2086 = vadd.f32 %v1868, %v2038
      %v2087 = vadd.f32 %v1869, %v2043
      %v2088 = vadd.f32 %v1870, %v2046
      %v2089 = vadd.f32 %v1871, %v2051
      %v2090 = vadd.f32 %v1872, %v2054
      %v2091 = vadd.f32 %v1873, %v2059
      %v2092 = vadd.f32 %v1874, %v2062
      %v2093 = vadd.f32 %v1875, %v2067
      %v2094 = vadd.f32 %v1876, %v2070
      %v2095 = vadd.f32 %v1877, %v2075
      %v2096 = vadd.f32 %v1878, %v2078
      %v2097 = vld [vmem:[#allocation2 + $0x18] sm:$0xff]
      %v2098 = vld [vmem:[#allocation2 + $0x20] sm:$0xff]
      %v2099 = vld [vmem:[#allocation2 + $0x28] sm:$0xff]
      %v2100 = vld [vmem:[#allocation2 + $0x30] sm:$0xff]
      %v2101 = vld [vmem:[#allocation2 + $0x38] sm:$0xff]
      %v2102 = vld [vmem:[#allocation2 + $0x40] sm:$0xff]
      %v2103 = vld [vmem:[#allocation2 + $0x48] sm:$0xff]
      %v2104 = vld [vmem:[#allocation2 + $0x50] sm:$0xff]
      %v2105 = vld [vmem:[#allocation2 + $0x58] sm:$0xff]
      %v2106 = vld [vmem:[#allocation2 + $0x60] sm:$0xff]
      %v2107 = vld [vmem:[#allocation2 + $0x68] sm:$0xff]
      %v2108 = vld [vmem:[#allocation2 + $0x70] sm:$0xff]
      %v2109 = vld [vmem:[#allocation2 + $0x78] sm:$0xff]
      %v2110 = vld [vmem:[#allocation2 + $0x80] sm:$0xff]
      %v2111 = vld [vmem:[#allocation2 + $0x88] sm:$0xff]
      %v2112 = vld [vmem:[#allocation2 + $0x90] sm:$0xff]
      %v2113 = vpack.c.bf16 %v2098, %v2097
      %v2114 = vpack.c.bf16 %v2100, %v2099
      %v2115 = vpack.c.bf16 %v2102, %v2101
      %v2116 = vpack.c.bf16 %v2104, %v2103
      %v2117 = vpack.c.bf16 %v2106, %v2105
      %v2118 = vpack.c.bf16 %v2108, %v2107
      %v2119 = vpack.c.bf16 %v2110, %v2109
      %v2120 = vpack.c.bf16 %v2112, %v2111
      %s2121 = scalar_lea.vmem %s6, 256
      %v2122 = vld [vmem:[%s2121] sm:$0xf]
      %v2123 = vld [vmem:[%s2121 + $0x4] sm:$0xf]
      %v2124 = vld [vmem:[%s2121 + $0x8] sm:$0xf]
      %v2125 = vld [vmem:[%s2121 + $0xc] sm:$0xf]
      %v2126 = vld [vmem:[%s2121 + $0x10] sm:$0xf]
      %v2127 = vld [vmem:[%s2121 + $0x14] sm:$0xf]
      %v2128 = vld [vmem:[%s2121 + $0x18] sm:$0xf]
      %v2129 = vld [vmem:[%s2121 + $0x1c] sm:$0xf]
      %v2130 = vld [vmem:[%s2121 + $0x20] sm:$0xf]
      %v2131 = vld [vmem:[%s2121 + $0x24] sm:$0xf]
      %v2132 = vld [vmem:[%s2121 + $0x28] sm:$0xf]
      %v2133 = vld [vmem:[%s2121 + $0x2c] sm:$0xf]
      %v2134 = vld [vmem:[%s2121 + $0x30] sm:$0xf]
      %v2135 = vld [vmem:[%s2121 + $0x34] sm:$0xf]
      %v2136 = vld [vmem:[%s2121 + $0x38] sm:$0xf]
      %v2137 = vld [vmem:[%s2121 + $0x3c] sm:$0xf]
      %v2154 = vunpack.c.l.b16 %v2122
      %v2155 = vunpack.c.l.b16 %v2123
      %v2156 = vunpack.c.l.b16 %v2124
      %v2157 = vunpack.c.l.b16 %v2125
      %v2158 = vunpack.c.l.b16 %v2126
      %v2159 = vunpack.c.l.b16 %v2127
      %v2160 = vunpack.c.l.b16 %v2128
      %v2161 = vunpack.c.l.b16 %v2129
      %v2162 = vunpack.c.l.b16 %v2130
      %v2163 = vunpack.c.l.b16 %v2131
      %v2164 = vunpack.c.l.b16 %v2132
      %v2165 = vunpack.c.l.b16 %v2133
      %v2166 = vunpack.c.l.b16 %v2134
      %v2167 = vunpack.c.l.b16 %v2135
      %v2168 = vunpack.c.l.b16 %v2136
      %v2169 = vunpack.c.l.b16 %v2137
      %v2170 = vpack.c.b16 %v2155, %v2154
      %v2171 = vpack.c.b16 %v2157, %v2156
      %v2172 = vpack.c.b16 %v2159, %v2158
      %v2173 = vpack.c.b16 %v2161, %v2160
      %v2174 = vpack.c.b16 %v2163, %v2162
      %v2175 = vpack.c.b16 %v2165, %v2164
      %v2176 = vpack.c.b16 %v2167, %v2166
      %v2177 = vpack.c.b16 %v2169, %v2168
      %2186 = vmatprep.subr.bf16.mxu0 0
      %2187 = vmatpush1.bf16.msra.mxu0 %v2170
      %2188 = vmatprep.subr.bf16.mxu0 0
      %2189 = vmatpush1.bf16.msra.mxu0 %v2171
      %2190 = vmatprep.subr.bf16.mxu0 0
      %2191 = vmatpush1.bf16.msra.mxu0 %v2172
      %2192 = vmatprep.subr.bf16.mxu0 0
      %2193 = vmatpush1.bf16.msra.mxu0 %v2173
      %2194 = vmatprep.subr.bf16.mxu0 0
      %2195 = vmatpush1.bf16.msra.mxu0 %v2174
      %2196 = vmatprep.subr.bf16.mxu0 0
      %2197 = vmatpush1.bf16.msra.mxu0 %v2175
      %2198 = vmatprep.subr.bf16.mxu0 0
      %2199 = vmatpush1.bf16.msra.mxu0 %v2176
      %2200 = vmatprep.subr.bf16.mxu0 0
      %2201 = vmatpush1.bf16.msra.mxu0 %v2177
      %2202 = vmatprep.subr.bf16.mxu0 0
      %2203 = vmatpush1.bf16.msra.mxu0 0
      %2204 = vmatprep.subr.bf16.mxu0 0
      %2205 = vmatpush1.bf16.msra.mxu0 0
      %2206 = vmatprep.subr.bf16.mxu0 0
      %2207 = vmatpush1.bf16.msra.mxu0 0
      %2208 = vmatprep.subr.bf16.mxu0 0
      %2209 = vmatpush1.bf16.msra.mxu0 0
      %2210 = vmatprep.subr.bf16.mxu0 0
      %2211 = vmatpush1.bf16.msra.mxu0 0
      %2212 = vmatprep.subr.bf16.mxu0 0
      %2213 = vmatpush1.bf16.msra.mxu0 0
      %2214 = vmatprep.subr.bf16.mxu0 0
      %2215 = vmatpush1.bf16.msra.mxu0 0
      %2216 = vmatprep.subr.bf16.mxu0 0
      %2217 = vmatpush1.bf16.msra.mxu0 0
      %2218 = vmatprep.mubr.bf16.mxu0 0
      %2219 = vmatmul.mubr.bf16.gmra.mrb[0].mxu0 %v2113
      %v2220 = vpop.f32.mrb[0].mxu0
      %v2221 = vadd.f32 0.0, %v2220
      %v2222 = vpop.f32.mrb[0].mxu0
      %v2223 = vpop.f32.mrb[0].mxu0
      %v2224 = vadd.f32 0.0, %v2223
      %v2225 = vpop.f32.mrb[0].mxu0
      %2226 = vmatprep.mubr.bf16.mxu0 0
      %2227 = vmatmul.mubr.bf16.gmra.mrb[0].mxu0 %v2114
      %v2228 = vpop.f32.mrb[0].mxu0
      %v2229 = vadd.f32 0.0, %v2228
      %v2230 = vpop.f32.mrb[0].mxu0
      %v2231 = vpop.f32.mrb[0].mxu0
      %v2232 = vadd.f32 0.0, %v2231
      %v2233 = vpop.f32.mrb[0].mxu0
      %2234 = vmatprep.mubr.bf16.mxu0 0
      %2235 = vmatmul.mubr.bf16.gmra.mrb[0].mxu0 %v2115
      %v2236 = vpop.f32.mrb[0].mxu0
      %v2237 = vadd.f32 0.0, %v2236
      %v2238 = vpop.f32.mrb[0].mxu0
      %v2239 = vpop.f32.mrb[0].mxu0
      %v2240 = vadd.f32 0.0, %v2239
      %v2241 = vpop.f32.mrb[0].mxu0
      %2242 = vmatprep.mubr.bf16.mxu0 0
      %2243 = vmatmul.mubr.bf16.gmra.mrb[0].mxu0 %v2116
      %v2244 = vpop.f32.mrb[0].mxu0
      %v2245 = vadd.f32 0.0, %v2244
      %v2246 = vpop.f32.mrb[0].mxu0
      %v2247 = vpop.f32.mrb[0].mxu0
      %v2248 = vadd.f32 0.0, %v2247
      %v2249 = vpop.f32.mrb[0].mxu0
      %2250 = vmatprep.mubr.bf16.mxu0 0
      %2251 = vmatmul.mubr.bf16.gmra.mrb[0].mxu0 %v2117
      %v2252 = vpop.f32.mrb[0].mxu0
      %v2253 = vadd.f32 0.0, %v2252
      %v2254 = vpop.f32.mrb[0].mxu0
      %v2255 = vpop.f32.mrb[0].mxu0
      %v2256 = vadd.f32 0.0, %v2255
      %v2257 = vpop.f32.mrb[0].mxu0
      %2258 = vmatprep.mubr.bf16.mxu0 0
      %2259 = vmatmul.mubr.bf16.gmra.mrb[0].mxu0 %v2118
      %v2260 = vpop.f32.mrb[0].mxu0
      %v2261 = vadd.f32 0.0, %v2260
      %v2262 = vpop.f32.mrb[0].mxu0
      %v2263 = vpop.f32.mrb[0].mxu0
      %v2264 = vadd.f32 0.0, %v2263
      %v2265 = vpop.f32.mrb[0].mxu0
      %2266 = vmatprep.mubr.bf16.mxu0 0
      %2267 = vmatmul.mubr.bf16.gmra.mrb[0].mxu0 %v2119
      %v2268 = vpop.f32.mrb[0].mxu0
      %v2269 = vadd.f32 0.0, %v2268
      %v2270 = vpop.f32.mrb[0].mxu0
      %v2271 = vpop.f32.mrb[0].mxu0
      %v2272 = vadd.f32 0.0, %v2271
      %v2273 = vpop.f32.mrb[0].mxu0
      %2274 = vmatprep.mubr.bf16.mxu0 0
      %2275 = vmatmul.mubr.bf16.gmra.mrb[0].mxu0 %v2120
      %v2276 = vpop.f32.mrb[0].mxu0
      %v2277 = vadd.f32 0.0, %v2276
      %v2278 = vpop.f32.mrb[0].mxu0
      %v2279 = vpop.f32.mrb[0].mxu0
      %v2280 = vadd.f32 0.0, %v2279
      %v2281 = vpop.f32.mrb[0].mxu0
      %2282 = vdwg.mxu0
      %v2283 = vadd.f32 %v2081, %v2221
      %v2284 = vadd.f32 %v2082, %v2224
      %v2285 = vadd.f32 %v2083, %v2229
      %v2286 = vadd.f32 %v2084, %v2232
      %v2287 = vadd.f32 %v2085, %v2237
      %v2288 = vadd.f32 %v2086, %v2240
      %v2289 = vadd.f32 %v2087, %v2245
      %v2290 = vadd.f32 %v2088, %v2248
      %v2291 = vadd.f32 %v2089, %v2253
      %v2292 = vadd.f32 %v2090, %v2256
      %v2293 = vadd.f32 %v2091, %v2261
      %v2294 = vadd.f32 %v2092, %v2264
      %v2295 = vadd.f32 %v2093, %v2269
      %v2296 = vadd.f32 %v2094, %v2272
      %v2297 = vadd.f32 %v2095, %v2277
      %v2298 = vadd.f32 %v2096, %v2280
      %v2299 = vld [vmem:[#allocation2 + $0x19] sm:$0xff]
      %v2300 = vld [vmem:[#allocation2 + $0x21] sm:$0xff]
      %v2301 = vld [vmem:[#allocation2 + $0x29] sm:$0xff]
      %v2302 = vld [vmem:[#allocation2 + $0x31] sm:$0xff]
      %v2303 = vld [vmem:[#allocation2 + $0x39] sm:$0xff]
      %v2304 = vld [vmem:[#allocation2 + $0x41] sm:$0xff]
      %v2305 = vld [vmem:[#allocation2 + $0x49] sm:$0xff]
      %v2306 = vld [vmem:[#allocation2 + $0x51] sm:$0xff]
      %v2307 = vld [vmem:[#allocation2 + $0x59] sm:$0xff]
      %v2308 = vld [vmem:[#allocation2 + $0x61] sm:$0xff]
      %v2309 = vld [vmem:[#allocation2 + $0x69] sm:$0xff]
      %v2310 = vld [vmem:[#allocation2 + $0x71] sm:$0xff]
      %v2311 = vld [vmem:[#allocation2 + $0x79] sm:$0xff]
      %v2312 = vld [vmem:[#allocation2 + $0x81] sm:$0xff]
      %v2313 = vld [vmem:[#allocation2 + $0x89] sm:$0xff]
      %v2314 = vld [vmem:[#allocation2 + $0x91] sm:$0xff]
      %v2315 = vsel %vm1661, 0.0, %v2299
      %v2316 = vsel %vm1662, 0.0, %v2300
      %v2317 = vsel %vm1663, 0.0, %v2301
      %v2318 = vsel %vm1664, 0.0, %v2302
      %v2319 = vsel %vm1665, 0.0, %v2303
      %v2320 = vsel %vm1666, 0.0, %v2304
      %v2321 = vsel %vm1667, 0.0, %v2305
      %v2322 = vsel %vm1668, 0.0, %v2306
      %v2323 = vsel %vm1669, 0.0, %v2307
      %v2324 = vsel %vm1670, 0.0, %v2308
      %v2325 = vsel %vm1671, 0.0, %v2309
      %v2326 = vsel %vm1672, 0.0, %v2310
      %v2327 = vsel %vm1673, 0.0, %v2311
      %v2328 = vsel %vm1674, 0.0, %v2312
      %v2329 = vsel %vm1675, 0.0, %v2313
      %v2330 = vsel %vm1676, 0.0, %v2314
      %v2331 = vpack.c.bf16 %v2316, %v2315
      %v2332 = vpack.c.bf16 %v2318, %v2317
      %v2333 = vpack.c.bf16 %v2320, %v2319
      %v2334 = vpack.c.bf16 %v2322, %v2321
      %v2335 = vpack.c.bf16 %v2324, %v2323
      %v2336 = vpack.c.bf16 %v2326, %v2325
      %v2337 = vpack.c.bf16 %v2328, %v2327
      %v2338 = vpack.c.bf16 %v2330, %v2329
      %s2339 = scalar_lea.vmem %s6, 320
      %v2340 = vld [vmem:[%s2339] sm:$0xf]
      %v2341 = vld [vmem:[%s2339 + $0x4] sm:$0xf]
      %v2342 = vld [vmem:[%s2339 + $0x8] sm:$0xf]
      %v2343 = vld [vmem:[%s2339 + $0xc] sm:$0xf]
      %v2344 = vld [vmem:[%s2339 + $0x10] sm:$0xf]
      %v2345 = vld [vmem:[%s2339 + $0x14] sm:$0xf]
      %v2346 = vld [vmem:[%s2339 + $0x18] sm:$0xf]
      %v2347 = vld [vmem:[%s2339 + $0x1c] sm:$0xf]
      %v2348 = vld [vmem:[%s2339 + $0x20] sm:$0xf]
      %v2349 = vld [vmem:[%s2339 + $0x24] sm:$0xf]
      %v2350 = vld [vmem:[%s2339 + $0x28] sm:$0xf]
      %v2351 = vld [vmem:[%s2339 + $0x2c] sm:$0xf]
      %v2352 = vld [vmem:[%s2339 + $0x30] sm:$0xf]
      %v2353 = vld [vmem:[%s2339 + $0x34] sm:$0xf]
      %v2354 = vld [vmem:[%s2339 + $0x38] sm:$0xf]
      %v2355 = vld [vmem:[%s2339 + $0x3c] sm:$0xf]
      %v2372 = vunpack.c.l.b16 %v2340
      %v2373 = vunpack.c.l.b16 %v2341
      %v2374 = vunpack.c.l.b16 %v2342
      %v2375 = vunpack.c.l.b16 %v2343
      %v2376 = vunpack.c.l.b16 %v2344
      %v2377 = vunpack.c.l.b16 %v2345
      %v2378 = vunpack.c.l.b16 %v2346
      %v2379 = vunpack.c.l.b16 %v2347
      %v2380 = vunpack.c.l.b16 %v2348
      %v2381 = vunpack.c.l.b16 %v2349
      %v2382 = vunpack.c.l.b16 %v2350
      %v2383 = vunpack.c.l.b16 %v2351
      %v2384 = vunpack.c.l.b16 %v2352
      %v2385 = vunpack.c.l.b16 %v2353
      %v2386 = vunpack.c.l.b16 %v2354
      %v2387 = vunpack.c.l.b16 %v2355
      %v2388 = vpack.c.b16 %v2373, %v2372
      %v2389 = vpack.c.b16 %v2375, %v2374
      %v2390 = vpack.c.b16 %v2377, %v2376
      %v2391 = vpack.c.b16 %v2379, %v2378
      %v2392 = vpack.c.b16 %v2381, %v2380
      %v2393 = vpack.c.b16 %v2383, %v2382
      %v2394 = vpack.c.b16 %v2385, %v2384
      %v2395 = vpack.c.b16 %v2387, %v2386
      %2404 = vmatprep.subr.bf16.mxu0 0
      %2405 = vmatpush1.bf16.msra.mxu0 %v2388
      %2406 = vmatprep.subr.bf16.mxu0 0
      %2407 = vmatpush1.bf16.msra.mxu0 %v2389
      %2408 = vmatprep.subr.bf16.mxu0 0
      %2409 = vmatpush1.bf16.msra.mxu0 %v2390
      %2410 = vmatprep.subr.bf16.mxu0 0
      %2411 = vmatpush1.bf16.msra.mxu0 %v2391
      %2412 = vmatprep.subr.bf16.mxu0 0
      %2413 = vmatpush1.bf16.msra.mxu0 %v2392
      %2414 = vmatprep.subr.bf16.mxu0 0
      %2415 = vmatpush1.bf16.msra.mxu0 %v2393
      %2416 = vmatprep.subr.bf16.mxu0 0
      %2417 = vmatpush1.bf16.msra.mxu0 %v2394
      %2418 = vmatprep.subr.bf16.mxu0 0
      %2419 = vmatpush1.bf16.msra.mxu0 %v2395
      %2420 = vmatprep.subr.bf16.mxu0 0
      %2421 = vmatpush1.bf16.msra.mxu0 0
      %2422 = vmatprep.subr.bf16.mxu0 0
      %2423 = vmatpush1.bf16.msra.mxu0 0
      %2424 = vmatprep.subr.bf16.mxu0 0
      %2425 = vmatpush1.bf16.msra.mxu0 0
      %2426 = vmatprep.subr.bf16.mxu0 0
      %2427 = vmatpush1.bf16.msra.mxu0 0
      %2428 = vmatprep.subr.bf16.mxu0 0
      %2429 = vmatpush1.bf16.msra.mxu0 0
      %2430 = vmatprep.subr.bf16.mxu0 0
      %2431 = vmatpush1.bf16.msra.mxu0 0
      %2432 = vmatprep.subr.bf16.mxu0 0
      %2433 = vmatpush1.bf16.msra.mxu0 0
      %2434 = vmatprep.subr.bf16.mxu0 0
      %2435 = vmatpush1.bf16.msra.mxu0 0
      %2436 = vmatprep.mubr.bf16.mxu0 0
      %2437 = vmatmul.mubr.bf16.gmra.mrb[0].mxu0 %v2331
      %v2438 = vpop.f32.mrb[0].mxu0
      %v2439 = vadd.f32 0.0, %v2438
      %v2440 = vpop.f32.mrb[0].mxu0
      %v2441 = vpop.f32.mrb[0].mxu0
      %v2442 = vadd.f32 0.0, %v2441
      %v2443 = vpop.f32.mrb[0].mxu0
      %2444 = vmatprep.mubr.bf16.mxu0 0
      %2445 = vmatmul.mubr.bf16.gmra.mrb[0].mxu0 %v2332
      %v2446 = vpop.f32.mrb[0].mxu0
      %v2447 = vadd.f32 0.0, %v2446
      %v2448 = vpop.f32.mrb[0].mxu0
      %v2449 = vpop.f32.mrb[0].mxu0
      %v2450 = vadd.f32 0.0, %v2449
      %v2451 = vpop.f32.mrb[0].mxu0
      %2452 = vmatprep.mubr.bf16.mxu0 0
      %2453 = vmatmul.mubr.bf16.gmra.mrb[0].mxu0 %v2333
      %v2454 = vpop.f32.mrb[0].mxu0
      %v2455 = vadd.f32 0.0, %v2454
      %v2456 = vpop.f32.mrb[0].mxu0
      %v2457 = vpop.f32.mrb[0].mxu0
      %v2458 = vadd.f32 0.0, %v2457
      %v2459 = vpop.f32.mrb[0].mxu0
      %2460 = vmatprep.mubr.bf16.mxu0 0
      %2461 = vmatmul.mubr.bf16.gmra.mrb[0].mxu0 %v2334
      %v2462 = vpop.f32.mrb[0].mxu0
      %v2463 = vadd.f32 0.0, %v2462
      %v2464 = vpop.f32.mrb[0].mxu0
      %v2465 = vpop.f32.mrb[0].mxu0
      %v2466 = vadd.f32 0.0, %v2465
      %v2467 = vpop.f32.mrb[0].mxu0
      %2468 = vmatprep.mubr.bf16.mxu0 0
      %2469 = vmatmul.mubr.bf16.gmra.mrb[0].mxu0 %v2335
      %v2470 = vpop.f32.mrb[0].mxu0
      %v2471 = vadd.f32 0.0, %v2470
      %v2472 = vpop.f32.mrb[0].mxu0
      %v2473 = vpop.f32.mrb[0].mxu0
      %v2474 = vadd.f32 0.0, %v2473
      %v2475 = vpop.f32.mrb[0].mxu0
      %2476 = vmatprep.mubr.bf16.mxu0 0
      %2477 = vmatmul.mubr.bf16.gmra.mrb[0].mxu0 %v2336
      %v2478 = vpop.f32.mrb[0].mxu0
      %v2479 = vadd.f32 0.0, %v2478
      %v2480 = vpop.f32.mrb[0].mxu0
      %v2481 = vpop.f32.mrb[0].mxu0
      %v2482 = vadd.f32 0.0, %v2481
      %v2483 = vpop.f32.mrb[0].mxu0
      %2484 = vmatprep.mubr.bf16.mxu0 0
      %2485 = vmatmul.mubr.bf16.gmra.mrb[0].mxu0 %v2337
      %v2486 = vpop.f32.mrb[0].mxu0
      %v2487 = vadd.f32 0.0, %v2486
      %v2488 = vpop.f32.mrb[0].mxu0
      %v2489 = vpop.f32.mrb[0].mxu0
      %v2490 = vadd.f32 0.0, %v2489
      %v2491 = vpop.f32.mrb[0].mxu0
      %2492 = vmatprep.mubr.bf16.mxu0 0
      %2493 = vmatmul.mubr.bf16.gmra.mrb[0].mxu0 %v2338
      %v2494 = vpop.f32.mrb[0].mxu0
      %v2495 = vadd.f32 0.0, %v2494
      %v2496 = vpop.f32.mrb[0].mxu0
      %v2497 = vpop.f32.mrb[0].mxu0
      %v2498 = vadd.f32 0.0, %v2497
      %v2499 = vpop.f32.mrb[0].mxu0
      %2500 = vdwg.mxu0
      %v2501 = vadd.f32 %v2283, %v2439
      %v2502 = vadd.f32 %v2284, %v2442
      %v2503 = vadd.f32 %v2285, %v2447
      %v2504 = vadd.f32 %v2286, %v2450
      %v2505 = vadd.f32 %v2287, %v2455
      %v2506 = vadd.f32 %v2288, %v2458
      %v2507 = vadd.f32 %v2289, %v2463
      %v2508 = vadd.f32 %v2290, %v2466
      %v2509 = vadd.f32 %v2291, %v2471
      %v2510 = vadd.f32 %v2292, %v2474
      %v2511 = vadd.f32 %v2293, %v2479
      %v2512 = vadd.f32 %v2294, %v2482
      %v2513 = vadd.f32 %v2295, %v2487
      %v2514 = vadd.f32 %v2296, %v2490
      %v2515 = vadd.f32 %v2297, %v2495
      %v2516 = vadd.f32 %v2298, %v2498
      %v2517 = vld [vmem:[#allocation2 + $0x27] sm:$0xff]
      %v2518 = vld [vmem:[#allocation2 + $0x2f] sm:$0xff]
      %v2519 = vld [vmem:[#allocation2 + $0x37] sm:$0xff]
      %v2520 = vld [vmem:[#allocation2 + $0x3f] sm:$0xff]
      %v2521 = vld [vmem:[#allocation2 + $0x47] sm:$0xff]
      %v2522 = vld [vmem:[#allocation2 + $0x4f] sm:$0xff]
      %v2523 = vld [vmem:[#allocation2 + $0x57] sm:$0xff]
      %v2524 = vld [vmem:[#allocation2 + $0x5f] sm:$0xff]
      %v2525 = vld [vmem:[#allocation2 + $0x67] sm:$0xff]
      %v2526 = vld [vmem:[#allocation2 + $0x6f] sm:$0xff]
      %v2527 = vld [vmem:[#allocation2 + $0x77] sm:$0xff]
      %v2528 = vld [vmem:[#allocation2 + $0x7f] sm:$0xff]
      %v2529 = vld [vmem:[#allocation2 + $0x87] sm:$0xff]
      %v2530 = vld [vmem:[#allocation2 + $0x8f] sm:$0xff]
      %v2531 = vld [vmem:[#allocation2 + $0x97] sm:$0xff]
      %v2532 = vld [vmem:[#allocation2 + $0x9f] sm:$0xff]
      %v2533 = vsel %vm1194, 0.0, %v2517
      %v2534 = vsel %vm1195, 0.0, %v2518
      %v2535 = vsel %vm1196, 0.0, %v2519
      %v2536 = vsel %vm1197, 0.0, %v2520
      %v2537 = vsel %vm1198, 0.0, %v2521
      %v2538 = vsel %vm1199, 0.0, %v2522
      %v2539 = vsel %vm1200, 0.0, %v2523
      %v2540 = vsel %vm1201, 0.0, %v2524
      %v2541 = vsel %vm1202, 0.0, %v2525
      %v2542 = vsel %vm1203, 0.0, %v2526
      %v2543 = vsel %vm1204, 0.0, %v2527
      %v2544 = vsel %vm1205, 0.0, %v2528
      %v2545 = vsel %vm1206, 0.0, %v2529
      %v2546 = vsel %vm1207, 0.0, %v2530
      %v2547 = vsel %vm1208, 0.0, %v2531
      %v2548 = vsel %vm1209, 0.0, %v2532
      %v2549 = vpack.c.bf16 %v2534, %v2533
      %v2550 = vpack.c.bf16 %v2536, %v2535
      %v2551 = vpack.c.bf16 %v2538, %v2537
      %v2552 = vpack.c.bf16 %v2540, %v2539
      %v2553 = vpack.c.bf16 %v2542, %v2541
      %v2554 = vpack.c.bf16 %v2544, %v2543
      %v2555 = vpack.c.bf16 %v2546, %v2545
      %v2556 = vpack.c.bf16 %v2548, %v2547
      %s2557 = scalar_lea.vmem %s6, 384
      %v2558 = vld [vmem:[%s2557] sm:$0xf]
      %v2559 = vld [vmem:[%s2557 + $0x4] sm:$0xf]
      %v2560 = vld [vmem:[%s2557 + $0x8] sm:$0xf]
      %v2561 = vld [vmem:[%s2557 + $0xc] sm:$0xf]
      %v2562 = vld [vmem:[%s2557 + $0x10] sm:$0xf]
      %v2563 = vld [vmem:[%s2557 + $0x14] sm:$0xf]
      %v2564 = vld [vmem:[%s2557 + $0x18] sm:$0xf]
      %v2565 = vld [vmem:[%s2557 + $0x1c] sm:$0xf]
      %v2566 = vld [vmem:[%s2557 + $0x20] sm:$0xf]
      %v2567 = vld [vmem:[%s2557 + $0x24] sm:$0xf]
      %v2568 = vld [vmem:[%s2557 + $0x28] sm:$0xf]
      %v2569 = vld [vmem:[%s2557 + $0x2c] sm:$0xf]
      %v2570 = vld [vmem:[%s2557 + $0x30] sm:$0xf]
      %v2571 = vld [vmem:[%s2557 + $0x34] sm:$0xf]
      %v2572 = vld [vmem:[%s2557 + $0x38] sm:$0xf]
      %v2573 = vld [vmem:[%s2557 + $0x3c] sm:$0xf]
      %v2590 = vunpack.c.l.b16 %v2558
      %v2591 = vunpack.c.l.b16 %v2559
      %v2592 = vunpack.c.l.b16 %v2560
      %v2593 = vunpack.c.l.b16 %v2561
      %v2594 = vunpack.c.l.b16 %v2562
      %v2595 = vunpack.c.l.b16 %v2563
      %v2596 = vunpack.c.l.b16 %v2564
      %v2597 = vunpack.c.l.b16 %v2565
      %v2598 = vunpack.c.l.b16 %v2566
      %v2599 = vunpack.c.l.b16 %v2567
      %v2600 = vunpack.c.l.b16 %v2568
      %v2601 = vunpack.c.l.b16 %v2569
      %v2602 = vunpack.c.l.b16 %v2570
      %v2603 = vunpack.c.l.b16 %v2571
      %v2604 = vunpack.c.l.b16 %v2572
      %v2605 = vunpack.c.l.b16 %v2573
      %v2606 = vpack.c.b16 %v2591, %v2590
      %v2607 = vpack.c.b16 %v2593, %v2592
      %v2608 = vpack.c.b16 %v2595, %v2594
      %v2609 = vpack.c.b16 %v2597, %v2596
      %v2610 = vpack.c.b16 %v2599, %v2598
      %v2611 = vpack.c.b16 %v2601, %v2600
      %v2612 = vpack.c.b16 %v2603, %v2602
      %v2613 = vpack.c.b16 %v2605, %v2604
      %2622 = vmatprep.subr.bf16.mxu0 0
      %2623 = vmatpush1.bf16.msra.mxu0 %v2606
      %2624 = vmatprep.subr.bf16.mxu0 0
      %2625 = vmatpush1.bf16.msra.mxu0 %v2607
      %2626 = vmatprep.subr.bf16.mxu0 0
      %2627 = vmatpush1.bf16.msra.mxu0 %v2608
      %2628 = vmatprep.subr.bf16.mxu0 0
      %2629 = vmatpush1.bf16.msra.mxu0 %v2609
      %2630 = vmatprep.subr.bf16.mxu0 0
      %2631 = vmatpush1.bf16.msra.mxu0 %v2610
      %2632 = vmatprep.subr.bf16.mxu0 0
      %2633 = vmatpush1.bf16.msra.mxu0 %v2611
      %2634 = vmatprep.subr.bf16.mxu0 0
      %2635 = vmatpush1.bf16.msra.mxu0 %v2612
      %2636 = vmatprep.subr.bf16.mxu0 0
      %2637 = vmatpush1.bf16.msra.mxu0 %v2613
      %2638 = vmatprep.subr.bf16.mxu0 0
      %2639 = vmatpush1.bf16.msra.mxu0 0
      %2640 = vmatprep.subr.bf16.mxu0 0
      %2641 = vmatpush1.bf16.msra.mxu0 0
      %2642 = vmatprep.subr.bf16.mxu0 0
      %2643 = vmatpush1.bf16.msra.mxu0 0
      %2644 = vmatprep.subr.bf16.mxu0 0
      %2645 = vmatpush1.bf16.msra.mxu0 0
      %2646 = vmatprep.subr.bf16.mxu0 0
      %2647 = vmatpush1.bf16.msra.mxu0 0
      %2648 = vmatprep.subr.bf16.mxu0 0
      %2649 = vmatpush1.bf16.msra.mxu0 0
      %2650 = vmatprep.subr.bf16.mxu0 0
      %2651 = vmatpush1.bf16.msra.mxu0 0
      %2652 = vmatprep.subr.bf16.mxu0 0
      %2653 = vmatpush1.bf16.msra.mxu0 0
      %2654 = vmatprep.mubr.bf16.mxu0 0
      %2655 = vmatmul.mubr.bf16.gmra.mrb[0].mxu0 %v2549
      %v2656 = vpop.f32.mrb[0].mxu0
      %v2657 = vadd.f32 0.0, %v2656
      %v2658 = vpop.f32.mrb[0].mxu0
      %v2659 = vpop.f32.mrb[0].mxu0
      %v2660 = vadd.f32 0.0, %v2659
      %v2661 = vpop.f32.mrb[0].mxu0
      %2662 = vmatprep.mubr.bf16.mxu0 0
      %2663 = vmatmul.mubr.bf16.gmra.mrb[0].mxu0 %v2550
      %v2664 = vpop.f32.mrb[0].mxu0
      %v2665 = vadd.f32 0.0, %v2664
      %v2666 = vpop.f32.mrb[0].mxu0
      %v2667 = vpop.f32.mrb[0].mxu0
      %v2668 = vadd.f32 0.0, %v2667
      %v2669 = vpop.f32.mrb[0].mxu0
      %2670 = vmatprep.mubr.bf16.mxu0 0
      %2671 = vmatmul.mubr.bf16.gmra.mrb[0].mxu0 %v2551
      %v2672 = vpop.f32.mrb[0].mxu0
      %v2673 = vadd.f32 0.0, %v2672
      %v2674 = vpop.f32.mrb[0].mxu0
      %v2675 = vpop.f32.mrb[0].mxu0
      %v2676 = vadd.f32 0.0, %v2675
      %v2677 = vpop.f32.mrb[0].mxu0
      %2678 = vmatprep.mubr.bf16.mxu0 0
      %2679 = vmatmul.mubr.bf16.gmra.mrb[0].mxu0 %v2552
      %v2680 = vpop.f32.mrb[0].mxu0
      %v2681 = vadd.f32 0.0, %v2680
      %v2682 = vpop.f32.mrb[0].mxu0
      %v2683 = vpop.f32.mrb[0].mxu0
      %v2684 = vadd.f32 0.0, %v2683
      %v2685 = vpop.f32.mrb[0].mxu0
      %2686 = vmatprep.mubr.bf16.mxu0 0
      %2687 = vmatmul.mubr.bf16.gmra.mrb[0].mxu0 %v2553
      %v2688 = vpop.f32.mrb[0].mxu0
      %v2689 = vadd.f32 0.0, %v2688
      %v2690 = vpop.f32.mrb[0].mxu0
      %v2691 = vpop.f32.mrb[0].mxu0
      %v2692 = vadd.f32 0.0, %v2691
      %v2693 = vpop.f32.mrb[0].mxu0
      %2694 = vmatprep.mubr.bf16.mxu0 0
      %2695 = vmatmul.mubr.bf16.gmra.mrb[0].mxu0 %v2554
      %v2696 = vpop.f32.mrb[0].mxu0
      %v2697 = vadd.f32 0.0, %v2696
      %v2698 = vpop.f32.mrb[0].mxu0
      %v2699 = vpop.f32.mrb[0].mxu0
      %v2700 = vadd.f32 0.0, %v2699
      %v2701 = vpop.f32.mrb[0].mxu0
      %2702 = vmatprep.mubr.bf16.mxu0 0
      %2703 = vmatmul.mubr.bf16.gmra.mrb[0].mxu0 %v2555
      %v2704 = vpop.f32.mrb[0].mxu0
      %v2705 = vadd.f32 0.0, %v2704
      %v2706 = vpop.f32.mrb[0].mxu0
      %v2707 = vpop.f32.mrb[0].mxu0
      %v2708 = vadd.f32 0.0, %v2707
      %v2709 = vpop.f32.mrb[0].mxu0
      %2710 = vmatprep.mubr.bf16.mxu0 0
      %2711 = vmatmul.mubr.bf16.gmra.mrb[0].mxu0 %v2556
      %v2712 = vpop.f32.mrb[0].mxu0
      %v2713 = vadd.f32 0.0, %v2712
      %v2714 = vpop.f32.mrb[0].mxu0
      %v2715 = vpop.f32.mrb[0].mxu0
      %v2716 = vadd.f32 0.0, %v2715
      %v2717 = vpop.f32.mrb[0].mxu0
      %2718 = vdwg.mxu0
      %v2719 = vadd.f32 %v2501, %v2657
      %v2720 = vadd.f32 %v2502, %v2660
      %v2721 = vadd.f32 %v2503, %v2665
      %v2722 = vadd.f32 %v2504, %v2668
      %v2723 = vadd.f32 %v2505, %v2673
      %v2724 = vadd.f32 %v2506, %v2676
      %v2725 = vadd.f32 %v2507, %v2681
      %v2726 = vadd.f32 %v2508, %v2684
      %v2727 = vadd.f32 %v2509, %v2689
      %v2728 = vadd.f32 %v2510, %v2692
      %v2729 = vadd.f32 %v2511, %v2697
      %v2730 = vadd.f32 %v2512, %v2700
      %v2731 = vadd.f32 %v2513, %v2705
      %v2732 = vadd.f32 %v2514, %v2708
      %v2733 = vadd.f32 %v2515, %v2713
      %v2734 = vadd.f32 %v2516, %v2716
      %v2735 = vld [vmem:[#allocation2 + $0x28] sm:$0xff]
      %v2736 = vld [vmem:[#allocation2 + $0x30] sm:$0xff]
      %v2737 = vld [vmem:[#allocation2 + $0x38] sm:$0xff]
      %v2738 = vld [vmem:[#allocation2 + $0x40] sm:$0xff]
      %v2739 = vld [vmem:[#allocation2 + $0x48] sm:$0xff]
      %v2740 = vld [vmem:[#allocation2 + $0x50] sm:$0xff]
      %v2741 = vld [vmem:[#allocation2 + $0x58] sm:$0xff]
      %v2742 = vld [vmem:[#allocation2 + $0x60] sm:$0xff]
      %v2743 = vld [vmem:[#allocation2 + $0x68] sm:$0xff]
      %v2744 = vld [vmem:[#allocation2 + $0x70] sm:$0xff]
      %v2745 = vld [vmem:[#allocation2 + $0x78] sm:$0xff]
      %v2746 = vld [vmem:[#allocation2 + $0x80] sm:$0xff]
      %v2747 = vld [vmem:[#allocation2 + $0x88] sm:$0xff]
      %v2748 = vld [vmem:[#allocation2 + $0x90] sm:$0xff]
      %v2749 = vld [vmem:[#allocation2 + $0x98] sm:$0xff]
      %v2750 = vld [vmem:[#allocation2 + $0xa0] sm:$0xff]
      %v2751 = vpack.c.bf16 %v2736, %v2735
      %v2752 = vpack.c.bf16 %v2738, %v2737
      %v2753 = vpack.c.bf16 %v2740, %v2739
      %v2754 = vpack.c.bf16 %v2742, %v2741
      %v2755 = vpack.c.bf16 %v2744, %v2743
      %v2756 = vpack.c.bf16 %v2746, %v2745
      %v2757 = vpack.c.bf16 %v2748, %v2747
      %v2758 = vpack.c.bf16 %v2750, %v2749
      %s2759 = scalar_lea.vmem %s6, 448
      %v2760 = vld [vmem:[%s2759] sm:$0xf]
      %v2761 = vld [vmem:[%s2759 + $0x4] sm:$0xf]
      %v2762 = vld [vmem:[%s2759 + $0x8] sm:$0xf]
      %v2763 = vld [vmem:[%s2759 + $0xc] sm:$0xf]
      %v2764 = vld [vmem:[%s2759 + $0x10] sm:$0xf]
      %v2765 = vld [vmem:[%s2759 + $0x14] sm:$0xf]
      %v2766 = vld [vmem:[%s2759 + $0x18] sm:$0xf]
      %v2767 = vld [vmem:[%s2759 + $0x1c] sm:$0xf]
      %v2768 = vld [vmem:[%s2759 + $0x20] sm:$0xf]
      %v2769 = vld [vmem:[%s2759 + $0x24] sm:$0xf]
      %v2770 = vld [vmem:[%s2759 + $0x28] sm:$0xf]
      %v2771 = vld [vmem:[%s2759 + $0x2c] sm:$0xf]
      %v2772 = vld [vmem:[%s2759 + $0x30] sm:$0xf]
      %v2773 = vld [vmem:[%s2759 + $0x34] sm:$0xf]
      %v2774 = vld [vmem:[%s2759 + $0x38] sm:$0xf]
      %v2775 = vld [vmem:[%s2759 + $0x3c] sm:$0xf]
      %v2792 = vunpack.c.l.b16 %v2760
      %v2793 = vunpack.c.l.b16 %v2761
      %v2794 = vunpack.c.l.b16 %v2762
      %v2795 = vunpack.c.l.b16 %v2763
      %v2796 = vunpack.c.l.b16 %v2764
      %v2797 = vunpack.c.l.b16 %v2765
      %v2798 = vunpack.c.l.b16 %v2766
      %v2799 = vunpack.c.l.b16 %v2767
      %v2800 = vunpack.c.l.b16 %v2768
      %v2801 = vunpack.c.l.b16 %v2769
      %v2802 = vunpack.c.l.b16 %v2770
      %v2803 = vunpack.c.l.b16 %v2771
      %v2804 = vunpack.c.l.b16 %v2772
      %v2805 = vunpack.c.l.b16 %v2773
      %v2806 = vunpack.c.l.b16 %v2774
      %v2807 = vunpack.c.l.b16 %v2775
      %v2808 = vpack.c.b16 %v2793, %v2792
      %v2809 = vpack.c.b16 %v2795, %v2794
      %v2810 = vpack.c.b16 %v2797, %v2796
      %v2811 = vpack.c.b16 %v2799, %v2798
      %v2812 = vpack.c.b16 %v2801, %v2800
      %v2813 = vpack.c.b16 %v2803, %v2802
      %v2814 = vpack.c.b16 %v2805, %v2804
      %v2815 = vpack.c.b16 %v2807, %v2806
      %2824 = vmatprep.subr.bf16.mxu0 0
      %2825 = vmatpush1.bf16.msra.mxu0 %v2808
      %2826 = vmatprep.subr.bf16.mxu0 0
      %2827 = vmatpush1.bf16.msra.mxu0 %v2809
      %2828 = vmatprep.subr.bf16.mxu0 0
      %2829 = vmatpush1.bf16.msra.mxu0 %v2810
      %2830 = vmatprep.subr.bf16.mxu0 0
      %2831 = vmatpush1.bf16.msra.mxu0 %v2811
      %2832 = vmatprep.subr.bf16.mxu0 0
      %2833 = vmatpush1.bf16.msra.mxu0 %v2812
      %2834 = vmatprep.subr.bf16.mxu0 0
      %2835 = vmatpush1.bf16.msra.mxu0 %v2813
      %2836 = vmatprep.subr.bf16.mxu0 0
      %2837 = vmatpush1.bf16.msra.mxu0 %v2814
      %2838 = vmatprep.subr.bf16.mxu0 0
      %2839 = vmatpush1.bf16.msra.mxu0 %v2815
      %2840 = vmatprep.subr.bf16.mxu0 0
      %2841 = vmatpush1.bf16.msra.mxu0 0
      %2842 = vmatprep.subr.bf16.mxu0 0
      %2843 = vmatpush1.bf16.msra.mxu0 0
      %2844 = vmatprep.subr.bf16.mxu0 0
      %2845 = vmatpush1.bf16.msra.mxu0 0
      %2846 = vmatprep.subr.bf16.mxu0 0
      %2847 = vmatpush1.bf16.msra.mxu0 0
      %2848 = vmatprep.subr.bf16.mxu0 0
      %2849 = vmatpush1.bf16.msra.mxu0 0
      %2850 = vmatprep.subr.bf16.mxu0 0
      %2851 = vmatpush1.bf16.msra.mxu0 0
      %2852 = vmatprep.subr.bf16.mxu0 0
      %2853 = vmatpush1.bf16.msra.mxu0 0
      %2854 = vmatprep.subr.bf16.mxu0 0
      %2855 = vmatpush1.bf16.msra.mxu0 0
      %2856 = vmatprep.mubr.bf16.mxu0 0
      %2857 = vmatmul.mubr.bf16.gmra.mrb[0].mxu0 %v2751
      %v2858 = vpop.f32.mrb[0].mxu0
      %v2859 = vadd.f32 0.0, %v2858
      %v2860 = vpop.f32.mrb[0].mxu0
      %v2861 = vpop.f32.mrb[0].mxu0
      %v2862 = vadd.f32 0.0, %v2861
      %v2863 = vpop.f32.mrb[0].mxu0
      %2864 = vmatprep.mubr.bf16.mxu0 0
      %2865 = vmatmul.mubr.bf16.gmra.mrb[0].mxu0 %v2752
      %v2866 = vpop.f32.mrb[0].mxu0
      %v2867 = vadd.f32 0.0, %v2866
      %v2868 = vpop.f32.mrb[0].mxu0
      %v2869 = vpop.f32.mrb[0].mxu0
      %v2870 = vadd.f32 0.0, %v2869
      %v2871 = vpop.f32.mrb[0].mxu0
      %2872 = vmatprep.mubr.bf16.mxu0 0
      %2873 = vmatmul.mubr.bf16.gmra.mrb[0].mxu0 %v2753
      %v2874 = vpop.f32.mrb[0].mxu0
      %v2875 = vadd.f32 0.0, %v2874
      %v2876 = vpop.f32.mrb[0].mxu0
      %v2877 = vpop.f32.mrb[0].mxu0
      %v2878 = vadd.f32 0.0, %v2877
      %v2879 = vpop.f32.mrb[0].mxu0
      %2880 = vmatprep.mubr.bf16.mxu0 0
      %2881 = vmatmul.mubr.bf16.gmra.mrb[0].mxu0 %v2754
      %v2882 = vpop.f32.mrb[0].mxu0
      %v2883 = vadd.f32 0.0, %v2882
      %v2884 = vpop.f32.mrb[0].mxu0
      %v2885 = vpop.f32.mrb[0].mxu0
      %v2886 = vadd.f32 0.0, %v2885
      %v2887 = vpop.f32.mrb[0].mxu0
      %2888 = vmatprep.mubr.bf16.mxu0 0
      %2889 = vmatmul.mubr.bf16.gmra.mrb[0].mxu0 %v2755
      %v2890 = vpop.f32.mrb[0].mxu0
      %v2891 = vadd.f32 0.0, %v2890
      %v2892 = vpop.f32.mrb[0].mxu0
      %v2893 = vpop.f32.mrb[0].mxu0
      %v2894 = vadd.f32 0.0, %v2893
      %v2895 = vpop.f32.mrb[0].mxu0
      %2896 = vmatprep.mubr.bf16.mxu0 0
      %2897 = vmatmul.mubr.bf16.gmra.mrb[0].mxu0 %v2756
      %v2898 = vpop.f32.mrb[0].mxu0
      %v2899 = vadd.f32 0.0, %v2898
      %v2900 = vpop.f32.mrb[0].mxu0
      %v2901 = vpop.f32.mrb[0].mxu0
      %v2902 = vadd.f32 0.0, %v2901
      %v2903 = vpop.f32.mrb[0].mxu0
      %2904 = vmatprep.mubr.bf16.mxu0 0
      %2905 = vmatmul.mubr.bf16.gmra.mrb[0].mxu0 %v2757
      %v2906 = vpop.f32.mrb[0].mxu0
      %v2907 = vadd.f32 0.0, %v2906
      %v2908 = vpop.f32.mrb[0].mxu0
      %v2909 = vpop.f32.mrb[0].mxu0
      %v2910 = vadd.f32 0.0, %v2909
      %v2911 = vpop.f32.mrb[0].mxu0
      %2912 = vmatprep.mubr.bf16.mxu0 0
      %2913 = vmatmul.mubr.bf16.gmra.mrb[0].mxu0 %v2758
      %v2914 = vpop.f32.mrb[0].mxu0
      %v2915 = vadd.f32 0.0, %v2914
      %v2916 = vpop.f32.mrb[0].mxu0
      %v2917 = vpop.f32.mrb[0].mxu0
      %v2918 = vadd.f32 0.0, %v2917
      %v2919 = vpop.f32.mrb[0].mxu0
      %2920 = vdwg.mxu0
      %v2921 = vadd.f32 %v2719, %v2859
      %v2922 = vadd.f32 %v2720, %v2862
      %v2923 = vadd.f32 %v2721, %v2867
      %v2924 = vadd.f32 %v2722, %v2870
      %v2925 = vadd.f32 %v2723, %v2875
      %v2926 = vadd.f32 %v2724, %v2878
      %v2927 = vadd.f32 %v2725, %v2883
      %v2928 = vadd.f32 %v2726, %v2886
      %v2929 = vadd.f32 %v2727, %v2891
      %v2930 = vadd.f32 %v2728, %v2894
      %v2931 = vadd.f32 %v2729, %v2899
      %v2932 = vadd.f32 %v2730, %v2902
      %v2933 = vadd.f32 %v2731, %v2907
      %v2934 = vadd.f32 %v2732, %v2910
      %v2935 = vadd.f32 %v2733, %v2915
      %v2936 = vadd.f32 %v2734, %v2918
      %v2937 = vld [vmem:[#allocation2 + $0x29] sm:$0xff]
      %v2938 = vld [vmem:[#allocation2 + $0x31] sm:$0xff]
      %v2939 = vld [vmem:[#allocation2 + $0x39] sm:$0xff]
      %v2940 = vld [vmem:[#allocation2 + $0x41] sm:$0xff]
      %v2941 = vld [vmem:[#allocation2 + $0x49] sm:$0xff]
      %v2942 = vld [vmem:[#allocation2 + $0x51] sm:$0xff]
      %v2943 = vld [vmem:[#allocation2 + $0x59] sm:$0xff]
      %v2944 = vld [vmem:[#allocation2 + $0x61] sm:$0xff]
      %v2945 = vld [vmem:[#allocation2 + $0x69] sm:$0xff]
      %v2946 = vld [vmem:[#allocation2 + $0x71] sm:$0xff]
      %v2947 = vld [vmem:[#allocation2 + $0x79] sm:$0xff]
      %v2948 = vld [vmem:[#allocation2 + $0x81] sm:$0xff]
      %v2949 = vld [vmem:[#allocation2 + $0x89] sm:$0xff]
      %v2950 = vld [vmem:[#allocation2 + $0x91] sm:$0xff]
      %v2951 = vld [vmem:[#allocation2 + $0x99] sm:$0xff]
      %v2952 = vld [vmem:[#allocation2 + $0xa1] sm:$0xff]
      %v2953 = vsel %vm1661, 0.0, %v2937
      %v2954 = vsel %vm1662, 0.0, %v2938
      %v2955 = vsel %vm1663, 0.0, %v2939
      %v2956 = vsel %vm1664, 0.0, %v2940
      %v2957 = vsel %vm1665, 0.0, %v2941
      %v2958 = vsel %vm1666, 0.0, %v2942
      %v2959 = vsel %vm1667, 0.0, %v2943
      %v2960 = vsel %vm1668, 0.0, %v2944
      %v2961 = vsel %vm1669, 0.0, %v2945
      %v2962 = vsel %vm1670, 0.0, %v2946
      %v2963 = vsel %vm1671, 0.0, %v2947
      %v2964 = vsel %vm1672, 0.0, %v2948
      %v2965 = vsel %vm1673, 0.0, %v2949
      %v2966 = vsel %vm1674, 0.0, %v2950
      %v2967 = vsel %vm1675, 0.0, %v2951
      %v2968 = vsel %vm1676, 0.0, %v2952
      %v2969 = vpack.c.bf16 %v2954, %v2953
      %v2970 = vpack.c.bf16 %v2956, %v2955
      %v2971 = vpack.c.bf16 %v2958, %v2957
      %v2972 = vpack.c.bf16 %v2960, %v2959
      %v2973 = vpack.c.bf16 %v2962, %v2961
      %v2974 = vpack.c.bf16 %v2964, %v2963
      %v2975 = vpack.c.bf16 %v2966, %v2965
      %v2976 = vpack.c.bf16 %v2968, %v2967
      %s2977 = scalar_lea.vmem %s6, 512
      %v2978 = vld [vmem:[%s2977] sm:$0xf]
      %v2979 = vld [vmem:[%s2977 + $0x4] sm:$0xf]
      %v2980 = vld [vmem:[%s2977 + $0x8] sm:$0xf]
      %v2981 = vld [vmem:[%s2977 + $0xc] sm:$0xf]
      %v2982 = vld [vmem:[%s2977 + $0x10] sm:$0xf]
      %v2983 = vld [vmem:[%s2977 + $0x14] sm:$0xf]
      %v2984 = vld [vmem:[%s2977 + $0x18] sm:$0xf]
      %v2985 = vld [vmem:[%s2977 + $0x1c] sm:$0xf]
      %v2986 = vld [vmem:[%s2977 + $0x20] sm:$0xf]
      %v2987 = vld [vmem:[%s2977 + $0x24] sm:$0xf]
      %v2988 = vld [vmem:[%s2977 + $0x28] sm:$0xf]
      %v2989 = vld [vmem:[%s2977 + $0x2c] sm:$0xf]
      %v2990 = vld [vmem:[%s2977 + $0x30] sm:$0xf]
      %v2991 = vld [vmem:[%s2977 + $0x34] sm:$0xf]
      %v2992 = vld [vmem:[%s2977 + $0x38] sm:$0xf]
      %v2993 = vld [vmem:[%s2977 + $0x3c] sm:$0xf]
      %v3010 = vunpack.c.l.b16 %v2978
      %v3011 = vunpack.c.l.b16 %v2979
      %v3012 = vunpack.c.l.b16 %v2980
      %v3013 = vunpack.c.l.b16 %v2981
      %v3014 = vunpack.c.l.b16 %v2982
      %v3015 = vunpack.c.l.b16 %v2983
      %v3016 = vunpack.c.l.b16 %v2984
      %v3017 = vunpack.c.l.b16 %v2985
      %v3018 = vunpack.c.l.b16 %v2986
      %v3019 = vunpack.c.l.b16 %v2987
      %v3020 = vunpack.c.l.b16 %v2988
      %v3021 = vunpack.c.l.b16 %v2989
      %v3022 = vunpack.c.l.b16 %v2990
      %v3023 = vunpack.c.l.b16 %v2991
      %v3024 = vunpack.c.l.b16 %v2992
      %v3025 = vunpack.c.l.b16 %v2993
      %v3026 = vpack.c.b16 %v3011, %v3010
      %v3027 = vpack.c.b16 %v3013, %v3012
      %v3028 = vpack.c.b16 %v3015, %v3014
      %v3029 = vpack.c.b16 %v3017, %v3016
      %v3030 = vpack.c.b16 %v3019, %v3018
      %v3031 = vpack.c.b16 %v3021, %v3020
      %v3032 = vpack.c.b16 %v3023, %v3022
      %v3033 = vpack.c.b16 %v3025, %v3024
      %3042 = vmatprep.subr.bf16.mxu0 0
      %3043 = vmatpush1.bf16.msra.mxu0 %v3026
      %3044 = vmatprep.subr.bf16.mxu0 0
      %3045 = vmatpush1.bf16.msra.mxu0 %v3027
      %3046 = vmatprep.subr.bf16.mxu0 0
      %3047 = vmatpush1.bf16.msra.mxu0 %v3028
      %3048 = vmatprep.subr.bf16.mxu0 0
      %3049 = vmatpush1.bf16.msra.mxu0 %v3029
      %3050 = vmatprep.subr.bf16.mxu0 0
      %3051 = vmatpush1.bf16.msra.mxu0 %v3030
      %3052 = vmatprep.subr.bf16.mxu0 0
      %3053 = vmatpush1.bf16.msra.mxu0 %v3031
      %3054 = vmatprep.subr.bf16.mxu0 0
      %3055 = vmatpush1.bf16.msra.mxu0 %v3032
      %3056 = vmatprep.subr.bf16.mxu0 0
      %3057 = vmatpush1.bf16.msra.mxu0 %v3033
      %3058 = vmatprep.subr.bf16.mxu0 0
      %3059 = vmatpush1.bf16.msra.mxu0 0
      %3060 = vmatprep.subr.bf16.mxu0 0
      %3061 = vmatpush1.bf16.msra.mxu0 0
      %3062 = vmatprep.subr.bf16.mxu0 0
      %3063 = vmatpush1.bf16.msra.mxu0 0
      %3064 = vmatprep.subr.bf16.mxu0 0
      %3065 = vmatpush1.bf16.msra.mxu0 0
      %3066 = vmatprep.subr.bf16.mxu0 0
      %3067 = vmatpush1.bf16.msra.mxu0 0
      %3068 = vmatprep.subr.bf16.mxu0 0
      %3069 = vmatpush1.bf16.msra.mxu0 0
      %3070 = vmatprep.subr.bf16.mxu0 0
      %3071 = vmatpush1.bf16.msra.mxu0 0
      %3072 = vmatprep.subr.bf16.mxu0 0
      %3073 = vmatpush1.bf16.msra.mxu0 0
      %3074 = vmatprep.mubr.bf16.mxu0 0
      %3075 = vmatmul.mubr.bf16.gmra.mrb[0].mxu0 %v2969
      %v3076 = vpop.f32.mrb[0].mxu0
      %v3077 = vadd.f32 0.0, %v3076
      %v3078 = vpop.f32.mrb[0].mxu0
      %v3079 = vpop.f32.mrb[0].mxu0
      %v3080 = vadd.f32 0.0, %v3079
      %v3081 = vpop.f32.mrb[0].mxu0
      %3082 = vmatprep.mubr.bf16.mxu0 0
      %3083 = vmatmul.mubr.bf16.gmra.mrb[0].mxu0 %v2970
      %v3084 = vpop.f32.mrb[0].mxu0
      %v3085 = vadd.f32 0.0, %v3084
      %v3086 = vpop.f32.mrb[0].mxu0
      %v3087 = vpop.f32.mrb[0].mxu0
      %v3088 = vadd.f32 0.0, %v3087
      %v3089 = vpop.f32.mrb[0].mxu0
      %3090 = vmatprep.mubr.bf16.mxu0 0
      %3091 = vmatmul.mubr.bf16.gmra.mrb[0].mxu0 %v2971
      %v3092 = vpop.f32.mrb[0].mxu0
      %v3093 = vadd.f32 0.0, %v3092
      %v3094 = vpop.f32.mrb[0].mxu0
      %v3095 = vpop.f32.mrb[0].mxu0
      %v3096 = vadd.f32 0.0, %v3095
      %v3097 = vpop.f32.mrb[0].mxu0
      %3098 = vmatprep.mubr.bf16.mxu0 0
      %3099 = vmatmul.mubr.bf16.gmra.mrb[0].mxu0 %v2972
      %v3100 = vpop.f32.mrb[0].mxu0
      %v3101 = vadd.f32 0.0, %v3100
      %v3102 = vpop.f32.mrb[0].mxu0
      %v3103 = vpop.f32.mrb[0].mxu0
      %v3104 = vadd.f32 0.0, %v3103
      %v3105 = vpop.f32.mrb[0].mxu0
      %3106 = vmatprep.mubr.bf16.mxu0 0
      %3107 = vmatmul.mubr.bf16.gmra.mrb[0].mxu0 %v2973
      %v3108 = vpop.f32.mrb[0].mxu0
      %v3109 = vadd.f32 0.0, %v3108
      %v3110 = vpop.f32.mrb[0].mxu0
      %v3111 = vpop.f32.mrb[0].mxu0
      %v3112 = vadd.f32 0.0, %v3111
      %v3113 = vpop.f32.mrb[0].mxu0
      %3114 = vmatprep.mubr.bf16.mxu0 0
      %3115 = vmatmul.mubr.bf16.gmra.mrb[0].mxu0 %v2974
      %v3116 = vpop.f32.mrb[0].mxu0
      %v3117 = vadd.f32 0.0, %v3116
      %v3118 = vpop.f32.mrb[0].mxu0
      %v3119 = vpop.f32.mrb[0].mxu0
      %v3120 = vadd.f32 0.0, %v3119
      %v3121 = vpop.f32.mrb[0].mxu0
      %3122 = vmatprep.mubr.bf16.mxu0 0
      %3123 = vmatmul.mubr.bf16.gmra.mrb[0].mxu0 %v2975
      %v3124 = vpop.f32.mrb[0].mxu0
      %v3125 = vadd.f32 0.0, %v3124
      %v3126 = vpop.f32.mrb[0].mxu0
      %v3127 = vpop.f32.mrb[0].mxu0
      %v3128 = vadd.f32 0.0, %v3127
      %v3129 = vpop.f32.mrb[0].mxu0
      %3130 = vmatprep.mubr.bf16.mxu0 0
      %3131 = vmatmul.mubr.bf16.gmra.mrb[0].mxu0 %v2976
      %v3132 = vpop.f32.mrb[0].mxu0
      %v3133 = vadd.f32 0.0, %v3132
      %v3134 = vpop.f32.mrb[0].mxu0
      %v3135 = vpop.f32.mrb[0].mxu0
      %v3136 = vadd.f32 0.0, %v3135
      %v3137 = vpop.f32.mrb[0].mxu0
      %3138 = vdwg.mxu0
      %v3139 = vadd.f32 %v2921, %v3077
      %v3140 = vadd.f32 %v2922, %v3080
      %v3141 = vadd.f32 %v2923, %v3085
      %v3142 = vadd.f32 %v2924, %v3088
      %v3143 = vadd.f32 %v2925, %v3093
      %v3144 = vadd.f32 %v2926, %v3096
      %v3145 = vadd.f32 %v2927, %v3101
      %v3146 = vadd.f32 %v2928, %v3104
      %v3147 = vadd.f32 %v2929, %v3109
      %v3148 = vadd.f32 %v2930, %v3112
      %v3149 = vadd.f32 %v2931, %v3117
      %v3150 = vadd.f32 %v2932, %v3120
      %v3151 = vadd.f32 %v2933, %v3125
      %v3152 = vadd.f32 %v2934, %v3128
      %v3153 = vadd.f32 %v2935, %v3133
      %v3154 = vadd.f32 %v2936, %v3136
      %v3155 = vld [vmem:[%s9] sm:$0x1]
      %v3157 = vlaneseq
      %v3158 = vshrl.u32 %v3157, 7
      %v3159 = vsub.s32 0, %v3158
      %v3160 = vrot.slane %v3155, %v3159
      %v3162 = vmul.f32 %v3139, %v3160
      %v3163 = vmul.f32 %v3140, %v3160
      %v3164 = vmul.f32 %v3141, %v3160
      %v3165 = vmul.f32 %v3142, %v3160
      %v3166 = vmul.f32 %v3143, %v3160
      %v3167 = vmul.f32 %v3144, %v3160
      %v3168 = vmul.f32 %v3145, %v3160
      %v3169 = vmul.f32 %v3146, %v3160
      %v3170 = vmul.f32 %v3147, %v3160
      %v3171 = vmul.f32 %v3148, %v3160
      %v3172 = vmul.f32 %v3149, %v3160
      %v3173 = vmul.f32 %v3150, %v3160
      %v3174 = vmul.f32 %v3151, %v3160
      %v3175 = vmul.f32 %v3152, %v3160
      %v3176 = vmul.f32 %v3153, %v3160
      %v3177 = vmul.f32 %v3154, %v3160
      %v3178 = vld [vmem:[%s10] sm:$0x1]
      %v3180 = vlaneseq
      %v3181 = vshrl.u32 %v3180, 7
      %v3182 = vsub.s32 0, %v3181
      %v3183 = vrot.slane %v3178, %v3182
      %v3185 = vadd.f32 %v3162, %v3183
      %v3186 = vadd.f32 %v3163, %v3183
      %v3187 = vadd.f32 %v3164, %v3183
      %v3188 = vadd.f32 %v3165, %v3183
      %v3189 = vadd.f32 %v3166, %v3183
      %v3190 = vadd.f32 %v3167, %v3183
      %v3191 = vadd.f32 %v3168, %v3183
      %v3192 = vadd.f32 %v3169, %v3183
      %v3193 = vadd.f32 %v3170, %v3183
      %v3194 = vadd.f32 %v3171, %v3183
      %v3195 = vadd.f32 %v3172, %v3183
      %v3196 = vadd.f32 %v3173, %v3183
      %v3197 = vadd.f32 %v3174, %v3183
      %v3198 = vadd.f32 %v3175, %v3183
      %v3199 = vadd.f32 %v3176, %v3183
      %v3200 = vadd.f32 %v3177, %v3183
      %v3201 = vxor.u32 %v3185, 2147483648
      %v3202 = vxor.u32 %v3186, 2147483648
      %v3203 = vxor.u32 %v3187, 2147483648
      %v3204 = vxor.u32 %v3188, 2147483648
      %v3205 = vxor.u32 %v3189, 2147483648
      %v3206 = vxor.u32 %v3190, 2147483648
      %v3207 = vxor.u32 %v3191, 2147483648
      %v3208 = vxor.u32 %v3192, 2147483648
      %v3209 = vxor.u32 %v3193, 2147483648
      %v3210 = vxor.u32 %v3194, 2147483648
      %v3211 = vxor.u32 %v3195, 2147483648
      %v3212 = vxor.u32 %v3196, 2147483648
      %v3213 = vxor.u32 %v3197, 2147483648
      %v3214 = vxor.u32 %v3198, 2147483648
      %v3215 = vxor.u32 %v3199, 2147483648
      %v3216 = vxor.u32 %v3200, 2147483648
      %v3217 = vmul.f32 %v3201, 1.442695
      %v3218 = vpow.pop %v3217
      %v3219 = vmul.f32 %v3202, 1.442695
      %v3220 = vpow.pop %v3219
      %v3221 = vmul.f32 %v3203, 1.442695
      %v3222 = vpow.pop %v3221
      %v3223 = vmul.f32 %v3204, 1.442695
      %v3224 = vpow.pop %v3223
      %v3225 = vmul.f32 %v3205, 1.442695
      %v3226 = vpow.pop %v3225
      %v3227 = vmul.f32 %v3206, 1.442695
      %v3228 = vpow.pop %v3227
      %v3229 = vmul.f32 %v3207, 1.442695
      %v3230 = vpow.pop %v3229
      %v3231 = vmul.f32 %v3208, 1.442695
      %v3232 = vpow.pop %v3231
      %v3233 = vmul.f32 %v3209, 1.442695
      %v3234 = vpow.pop %v3233
      %v3235 = vmul.f32 %v3210, 1.442695
      %v3236 = vpow.pop %v3235
      %v3237 = vmul.f32 %v3211, 1.442695
      %v3238 = vpow.pop %v3237
      %v3239 = vmul.f32 %v3212, 1.442695
      %v3240 = vpow.pop %v3239
      %v3241 = vmul.f32 %v3213, 1.442695
      %v3242 = vpow.pop %v3241
      %v3243 = vmul.f32 %v3214, 1.442695
      %v3244 = vpow.pop %v3243
      %v3245 = vmul.f32 %v3215, 1.442695
      %v3246 = vpow.pop %v3245
      %v3247 = vmul.f32 %v3216, 1.442695
      %v3248 = vpow.pop %v3247
      %v3249 = vadd.f32 %v3218, 1.0
      %v3250 = vadd.f32 %v3220, 1.0
      %v3251 = vadd.f32 %v3222, 1.0
      %v3252 = vadd.f32 %v3224, 1.0
      %v3253 = vadd.f32 %v3226, 1.0
      %v3254 = vadd.f32 %v3228, 1.0
      %v3255 = vadd.f32 %v3230, 1.0
      %v3256 = vadd.f32 %v3232, 1.0
      %v3257 = vadd.f32 %v3234, 1.0
      %v3258 = vadd.f32 %v3236, 1.0
      %v3259 = vadd.f32 %v3238, 1.0
      %v3260 = vadd.f32 %v3240, 1.0
      %v3261 = vadd.f32 %v3242, 1.0
      %v3262 = vadd.f32 %v3244, 1.0
      %v3263 = vadd.f32 %v3246, 1.0
      %v3264 = vadd.f32 %v3248, 1.0
      %v3265 = vrcp.pop %v3249
      %v3266 = vmul.f32 1.0, %v3265
      %v3267 = vrcp.pop %v3250
      %v3268 = vmul.f32 1.0, %v3267
      %v3269 = vrcp.pop %v3251
      %v3270 = vmul.f32 1.0, %v3269
      %v3271 = vrcp.pop %v3252
      %v3272 = vmul.f32 1.0, %v3271
      %v3273 = vrcp.pop %v3253
      %v3274 = vmul.f32 1.0, %v3273
      %v3275 = vrcp.pop %v3254
      %v3276 = vmul.f32 1.0, %v3275
      %v3277 = vrcp.pop %v3255
      %v3278 = vmul.f32 1.0, %v3277
      %v3279 = vrcp.pop %v3256
      %v3280 = vmul.f32 1.0, %v3279
      %v3281 = vrcp.pop %v3257
      %v3282 = vmul.f32 1.0, %v3281
      %v3283 = vrcp.pop %v3258
      %v3284 = vmul.f32 1.0, %v3283
      %v3285 = vrcp.pop %v3259
      %v3286 = vmul.f32 1.0, %v3285
      %v3287 = vrcp.pop %v3260
      %v3288 = vmul.f32 1.0, %v3287
      %v3289 = vrcp.pop %v3261
      %v3290 = vmul.f32 1.0, %v3289
      %v3291 = vrcp.pop %v3262
      %v3292 = vmul.f32 1.0, %v3291
      %v3293 = vrcp.pop %v3263
      %v3294 = vmul.f32 1.0, %v3293
      %v3295 = vrcp.pop %v3264
      %v3296 = vmul.f32 1.0, %v3295
      %v3297 = vmul.f32 %v3185, %v3266
      %v3298 = vmul.f32 %v3186, %v3268
      %v3299 = vmul.f32 %v3187, %v3270
      %v3300 = vmul.f32 %v3188, %v3272
      %v3301 = vmul.f32 %v3189, %v3274
      %v3302 = vmul.f32 %v3190, %v3276
      %v3303 = vmul.f32 %v3191, %v3278
      %v3304 = vmul.f32 %v3192, %v3280
      %v3305 = vmul.f32 %v3193, %v3282
      %v3306 = vmul.f32 %v3194, %v3284
      %v3307 = vmul.f32 %v3195, %v3286
      %v3308 = vmul.f32 %v3196, %v3288
      %v3309 = vmul.f32 %v3197, %v3290
      %v3310 = vmul.f32 %v3198, %v3292
      %v3311 = vmul.f32 %v3199, %v3294
      %v3312 = vmul.f32 %v3200, %v3296
      %v3313 = vld [vmem:[%s504] sm:$0xff]
      %v3314 = vld [vmem:[%s504 + $0x8] sm:$0xff]
      %v3315 = vld [vmem:[%s504 + $0x10] sm:$0xff]
      %v3316 = vld [vmem:[%s504 + $0x18] sm:$0xff]
      %v3317 = vld [vmem:[%s504 + $0x20] sm:$0xff]
      %v3318 = vld [vmem:[%s504 + $0x28] sm:$0xff]
      %v3319 = vld [vmem:[%s504 + $0x30] sm:$0xff]
      %v3320 = vld [vmem:[%s504 + $0x38] sm:$0xff]
      %v3321 = vld [vmem:[%s504 + $0x40] sm:$0xff]
      %v3322 = vld [vmem:[%s504 + $0x48] sm:$0xff]
      %v3323 = vld [vmem:[%s504 + $0x50] sm:$0xff]
      %v3324 = vld [vmem:[%s504 + $0x58] sm:$0xff]
      %v3325 = vld [vmem:[%s504 + $0x60] sm:$0xff]
      %v3326 = vld [vmem:[%s504 + $0x68] sm:$0xff]
      %v3327 = vld [vmem:[%s504 + $0x70] sm:$0xff]
      %v3328 = vld [vmem:[%s504 + $0x78] sm:$0xff]
      %v3329 = vadd.f32 %v3297, %v3313
      %v3330 = vadd.f32 %v3298, %v3314
      %v3331 = vadd.f32 %v3299, %v3315
      %v3332 = vadd.f32 %v3300, %v3316
      %v3333 = vadd.f32 %v3301, %v3317
      %v3334 = vadd.f32 %v3302, %v3318
      %v3335 = vadd.f32 %v3303, %v3319
      %v3336 = vadd.f32 %v3304, %v3320
      %v3337 = vadd.f32 %v3305, %v3321
      %v3338 = vadd.f32 %v3306, %v3322
      %v3339 = vadd.f32 %v3307, %v3323
      %v3340 = vadd.f32 %v3308, %v3324
      %v3341 = vadd.f32 %v3309, %v3325
      %v3342 = vadd.f32 %v3310, %v3326
      %v3343 = vadd.f32 %v3311, %v3327
      %v3344 = vadd.f32 %v3312, %v3328
      %3345 = vst [vmem:[%s548] sm:$0xff] %v3329
      %3346 = vst [vmem:[%s548 + $0x8] sm:$0xff] %v3330
      %3347 = vst [vmem:[%s548 + $0x10] sm:$0xff] %v3331
      %3348 = vst [vmem:[%s548 + $0x18] sm:$0xff] %v3332
      %3349 = vst [vmem:[%s548 + $0x20] sm:$0xff] %v3333
      %3350 = vst [vmem:[%s548 + $0x28] sm:$0xff] %v3334
      %3351 = vst [vmem:[%s548 + $0x30] sm:$0xff] %v3335
      %3352 = vst [vmem:[%s548 + $0x38] sm:$0xff] %v3336
      %3353 = vst [vmem:[%s548 + $0x40] sm:$0xff] %v3337
      %3354 = vst [vmem:[%s548 + $0x48] sm:$0xff] %v3338
      %3355 = vst [vmem:[%s548 + $0x50] sm:$0xff] %v3339
      %3356 = vst [vmem:[%s548 + $0x58] sm:$0xff] %v3340
      %3357 = vst [vmem:[%s548 + $0x60] sm:$0xff] %v3341
      %3358 = vst [vmem:[%s548 + $0x68] sm:$0xff] %v3342
      %3359 = vst [vmem:[%s548 + $0x70] sm:$0xff] %v3343
      %3360 = vst [vmem:[%s548 + $0x78] sm:$0xff] %v3344
      %s3361 = smul.u32 16, %s27
      %p3362 = scmp.lt.s32.totalorder %s26, 1
      %s3363 = scalar_select %p3362, %s26, 1
      %p3364 = scmp.lt.s32.totalorder %s3361, 31
      %s3365 = scalar_select %p3364, %s3361, 31
      %s3366 = smul.addr %s3363, 32
      %s3367 = sadd.s32 %s3365, %s3366
      %s3368 = smul.addr %s3367, 8
      %s3369 = scalar_lea.vmem %s11, %s3368
      // Predicated region
      $region65: #{bottleneck_forward.1} parent=63 // pred_check
        %p3370 = pneg %p322
      $region66: #{bottleneck_forward.1} parent=63 // pred_check_branch
        %3372 = sbr.rel (%p3370) target = $region68
      $region67: #{bottleneck_forward.1} parent=63 // pred_region
        %s3373 = smul.u32 16, %s27
      $region68: #{bottleneck_forward.1} parent=63 // pred_fallthru
        _
    $region64: #{bottleneck_forward.1} parent=5 // pred_fallthru
      _
    %p3374 = scmp.le.s32.totalorder 2, %s17
    // Predicated region
    $region69: #{bottleneck_forward.1} parent=5 // pred_check
      %p3375 = pneg %p3374
    $region70: #{bottleneck_forward.1} parent=5 // pred_check_branch
      %3377 = sbr.rel (%p3375) target = $region72
    $region71: #{bottleneck_forward.1} parent=5 // pred_region
      %s3378 = ssub.s32 %s17, 2
      // Predicated region
      $region73: #{bottleneck_forward.1} parent=71 // pred_check
        %p3379 = pneg %p328
      $region74: #{bottleneck_forward.1} parent=71 // pred_check_branch
        %3381 = sbr.rel (%p3379) target = $region76
      $region75: #{bottleneck_forward.1} parent=71 // pred_region
        %s3382 = smul.u32 16, %s29
        %p3383 = scmp.lt.s32.totalorder %s28, 1
        %s3384 = scalar_select %p3383, %s28, 1
        %p3385 = scmp.lt.s32.totalorder %s3382, 31
        %s3386 = scalar_select %p3385, %s3382, 31
        %s3387 = smul.addr %s3384, 32
        %s3388 = sadd.s32 %s3386, %s3387
        %s3389 = smul.addr %s3388, 8
        %s3390 = scalar_lea.vmem %s11, %s3389
      $region76: #{bottleneck_forward.1} parent=71 // pred_fallthru
        _
    $region72: #{bottleneck_forward.1} parent=5 // pred_fallthru
      _
  $region6: #{bottleneck_forward.1} parent=0 // loop_footer
    %s21 = sadd.s32 1, %s17
  $region7: #{bottleneck_forward.1} parent=0 // loop_footer_branch
    %16 = sbr.rel target = $region3
  $region8: #{bottleneck_forward.1} parent=0 // loop_exit
    _

</llo_original>
